<compile_context>
chip_gen: v7x
topology: tpu7x:2x2x1
jax: 0.10.0
libtpu: 0.0.40
codegen_flags: <defaults>
</compile_context>

<pallas_src>
import functools
import math

import numpy as np
import jax
import jax.numpy as jnp
from jax.experimental import pallas as pl
from jax.experimental.pallas import tpu as pltpu


def _round8(n):
    return ((n + 7) // 8) * 8


def _round128(n):
    return ((n + 127) // 128) * 128


# ----------------------------------------------------------------------------
# Clenshaw-Curtis quadrature tables (exact port of UMNN compute_cc_weights)
# ----------------------------------------------------------------------------
def compute_cc_weights(nb_steps):
    lam = np.arange(0, nb_steps + 1, 1).reshape(-1, 1)
    lam = np.cos((lam @ lam.T) * math.pi / nb_steps)
    lam[:, 0] = .5
    lam[:, -1] = .5 * lam[:, -1]
    lam = lam * 2 / nb_steps
    W = np.arange(0, nb_steps + 1, 1).reshape(-1, 1)
    W[np.arange(1, nb_steps + 1, 2)] = 0
    W = 2 / (1 - W ** 2)
    W[0] = 1
    W[np.arange(1, nb_steps + 1, 2)] = 0
    cc_weights = (lam.T @ W).astype(np.float32)                    # (T1, 1)
    steps = np.cos(np.arange(0, nb_steps + 1, 1).reshape(-1, 1)
                   * math.pi / nb_steps).astype(np.float32)        # (T1, 1)
    return cc_weights, steps


# ----------------------------------------------------------------------------
# Deterministic parameter initialization (shapes from MonotonicNN/IntegrandNN)
# ----------------------------------------------------------------------------
def _linear_init(key, fan_in, fan_out):
    kw, kb = jax.random.split(key)
    bound = 1.0 / float(np.sqrt(fan_in))
    W = jax.random.uniform(kw, (fan_in, fan_out), jnp.float32, -bound, bound)
    b = jax.random.uniform(kb, (1, fan_out), jnp.float32, -bound, bound)
    return W, b


def init_monotonic_params(key, in_d, hiddens):
    H1, H2 = hiddens
    ks = jax.random.split(key, 6)
    iW1, ib1 = _linear_init(ks[0], in_d, H1)        # integrand: cat(x, h) -> H1
    iW2, ib2 = _linear_init(ks[1], H1, H2)
    iW3, ib3 = _linear_init(ks[2], H2, 1)
    nW1, nb1 = _linear_init(ks[3], in_d - 1, H1)    # conditioner net: h -> 2
    nW2, nb2 = _linear_init(ks[4], H1, H2)
    nW3, nb3 = _linear_init(ks[5], H2, 2)
    return dict(iW1=iW1, ib1=ib1, iW2=iW2, ib2=ib2, iW3=iW3, ib3=ib3,
                nW1=nW1, nb1=nb1, nW2=nW2, nb2=nb2, nW3=nW3, nb3=nb3)


def init_slowd_params(key, mon_in, cond_in, hiddens):
    keys = jax.random.split(key, mon_in + 2)
    inner = [init_monotonic_params(keys[i], cond_in + 1, hiddens)
             for i in range(mon_in)]
    outer = init_monotonic_params(keys[mon_in], 1 + cond_in, hiddens)
    logw = jax.random.normal(keys[mon_in + 1], (1, mon_in), jnp.float32)
    return dict(inner=inner, outer=outer, logw=logw)


# ----------------------------------------------------------------------------
# Host-side one-time packing.
#   Wm    : merged first-layer weight (M+C+1, LWP) with bias folded in (row M+C)
#   pmain : 128-lane slab with the fused deeper layers + outer net + log-weights
# ----------------------------------------------------------------------------
def pack_params(params, hiddens, M, C):
    H1, H2 = hiddens
    K = M + 1
    HI1 = _round128(M * H1)            # inner layer-1 width padded to 128 lanes
    HI2 = _round128(M * H2)            # inner layer-2 width padded to 128 lanes
    KH1 = K * H1                       # fused conditioner widths (128 at demo)
    KH2 = K * H2
    DIN = M + C + 1                    # [x | h | 1]
    DINP = _round8(DIN)
    LW = 2 * HI1 + KH1 + H1            # xw | hp | cond-l1 | outer hp_o
    LWP = _round128(LW)

    oW1 = np.asarray(params['outer']['iW1'])
    nets = list(params['inner']) + [params['outer']]

    # --- merged first-layer weight; last used row (index M+C) carries biases --
    Wm = np.zeros((DINP, LWP), np.float32)
    for i, p in enumerate(params['inner']):
        iW1 = np.asarray(p['iW1'])
        Wm[i, i * H1:(i + 1) * H1] = iW1[0, :]                       # x -> xw
        Wm[M:M + C, HI1 + i * H1:HI1 + (i + 1) * H1] = iW1[1:, :]     # h -> hp
        Wm[M + C, HI1 + i * H1:HI1 + (i + 1) * H1] = np.asarray(p['ib1'])[0]
    base_c = 2 * HI1
    for i, p in enumerate(nets):                                      # cond l1
        Wm[M:M + C, base_c + i * H1:base_c + (i + 1) * H1] = np.asarray(p['nW1'])
        Wm[M + C, base_c + i * H1:base_c + (i + 1) * H1] = np.asarray(p['nb1'])[0]
    base_o = 2 * HI1 + KH1                                            # outer hp
    Wm[M:M + C, base_o:base_o + H1] = oW1[1:, :]
    Wm[M + C, base_o:base_o + H1] = np.asarray(params['outer']['ib1'])[0]

    # --- fused inner integrand deeper layers (block-diag, padded to 128) -----
    W2B = np.zeros((HI1, HI2), np.float32)
    b2c = np.zeros((1, HI2), np.float32)
    W3B = np.zeros((HI2, M), np.float32)      # output kept at exactly M columns
    b3c = np.zeros((1, M), np.float32)
    for i, p in enumerate(params['inner']):
        W2B[i * H1:(i + 1) * H1, i * H2:(i + 1) * H2] = np.asarray(p['iW2'])
        b2c[0, i * H2:(i + 1) * H2] = np.asarray(p['ib2'])[0]
        W3B[i * H2:(i + 1) * H2, i] = np.asarray(p['iW3'])[:, 0]
        b3c[0, i] = np.asarray(p['ib3'])[0, 0]

    # --- fused conditioner deeper layers of all M+1 MonotonicNNs -------------
    Wn2 = np.zeros((KH1, KH2), np.float32)
    bn2 = np.zeros((1, KH2), np.float32)
    Wn3 = np.zeros((KH2, 2 * K), np.float32)  # [offset_0..K-1, logscale_0..K-1]
    bn3 = np.zeros((1, 2 * K), np.float32)
    for i, p in enumerate(nets):
        Wn2[i * H1:(i + 1) * H1, i * H2:(i + 1) * H2] = np.asarray(p['nW2'])
        bn2[0, i * H2:(i + 1) * H2] = np.asarray(p['nb2'])[0]
        nW3 = np.asarray(p['nW3'])
        nb3 = np.asarray(p['nb3'])
        Wn3[i * H2:(i + 1) * H2, i] = nW3[:, 0]
        Wn3[i * H2:(i + 1) * H2, K + i] = nW3[:, 1]
        bn3[0, i] = nb3[0, 0]
        bn3[0, K + i] = nb3[0, 1]

    blocks = {
        'W2B': W2B, 'b2c': b2c, 'W3B': W3B, 'b3c': b3c,
        'Wn2': Wn2, 'bn2': bn2, 'Wn3': Wn3, 'bn3': bn3,
        'oWax': oW1[0:1, :],
        'oW2': np.asarray(params['outer']['iW2']),
        'ob2': np.asarray(params['outer']['ib2']),
        'oW3': np.asarray(params['outer']['iW3']),
        'ob3': np.asarray(params['outer']['ib3']),
        'logw': np.asarray(params['logw']),
    }
    lanes = _round128(max(a.shape[1] for a in blocks.values()))
    layout, pieces, off = {}, [], 0
    for name, arr in blocks.items():
        arr = np.asarray(arr, np.float32)
        r, c = arr.shape
        rp = _round8(r)                       # keep every block 8-row aligned
        pad = np.zeros((rp, lanes), np.float32)
        pad[:r, :c] = arr
        pieces.append(pad)
        layout[name] = (off, r, c)
        off += rp
    pmain = np.concatenate(pieces, axis=0)    # (rows, 128) single main slab
    meta = dict(HI1=HI1, HI2=HI2, KH1=KH1, LW=LW, DINP=DINP)
    return jnp.asarray(Wm), jnp.asarray(pmain), layout, meta


# ----------------------------------------------------------------------------
# Pallas kernel (one batch tile of Bt rows per grid step)
# ----------------------------------------------------------------------------
def _slowd_kernel(xh_ref, wm_ref, pm_ref, out_ref, *,
                  M, H1, H2, HI1, KH1, Bt, sh, cw, layout, out_w, mdt):
    f32 = jnp.float32
    T1 = len(sh)
    K = M + 1

    def P(name):                                # static slice of the main slab
        off, r, c = layout[name]
        return pm_ref[off:off + r, 0:c]

    def mm(a, b):                               # MXU dot, f32 accumulation
        return jnp.dot(a.astype(mdt), b.astype(mdt), preferred_element_type=f32)

    def quad_rows(xw, hp):
        # (Bt,F),(Bt,F) -> (T1*Bt,F): row t*Bt+b = sh[t]*xw[b] + hp[b].
        # sh[t] are compile-time floats -> pure VPU scale/adds + aligned concat.
        return jnp.concatenate([sh[t] * xw + hp for t in range(T1)], axis=0)

    def cc_reduce(f):
        # (T1*Bt,F) -> (Bt,F): pairwise tree over sum_t cw[t]*f[t*Bt:(t+1)*Bt].
        terms = [cw[t] * f[t * Bt:(t + 1) * Bt, :] for t in range(T1)]
        while len(terms) > 1:
            nxt = [terms[k] + terms[k + 1] for k in range(0, len(terms) - 1, 2)]
            if len(terms) % 2:
                nxt.append(terms[-1])
            terms = nxt
        return terms[0]

    def relu(v):
        return jnp.maximum(v, 0.0)

    def elu1(v):
        return jnp.where(v > 0.0, v, jnp.exp(jnp.minimum(v, 0.0)) - 1.0) + 1.0

    xh = xh_ref[...].astype(f32)                # (Bt, DINP) = [x | h | 1 | pad]
    x = xh[:, 0:M]                              # (Bt, M)

    # ---- ONE merged first-layer projection for everything (bias via ones) ---
    proj = mm(xh, wm_ref[...])                  # (Bt, LWP)
    xw = proj[:, 0:HI1]                         # inner x-part   (bias-free)
    hp = proj[:, HI1:2 * HI1]                   # inner h-part + ib1
    c1 = relu(proj[:, 2 * HI1:2 * HI1 + KH1])   # conditioner l1 + nb1
    hp_o = proj[:, 2 * HI1 + KH1:2 * HI1 + KH1 + H1]   # outer h-part + ob1

    # ---- fused conditioner nets of all M+1 MonotonicNNs (batch rows only) ---
    c2 = relu(mm(c1, P('Wn2')) + P('bn2'))
    c3 = mm(c2, P('Wn3')) + P('bn3')            # (Bt, 2K)
    offs = c3[:, 0:K]                           # (Bt, K)
    scal = jnp.exp(c3[:, K:2 * K])              # (Bt, K)

    # ---- fused inner integrands (M nets, block-diag, 128-lane padded) -------
    a1 = relu(quad_rows(xw, hp))                                # (N, HI1)
    a2 = relu(mm(a1, P('W2B')) + P('b2c'))                      # (N, HI2)
    f = elu1(mm(a2, P('W3B')) + P('b3c'))                       # (N, M) only!
    integ = cc_reduce(f) * x * 0.5                              # (Bt, M)
    y_inner = scal[:, 0:M] * integ + offs[:, 0:M]               # (Bt, M)

    w = jnp.exp(P('logw'))                                      # (1, M)
    inner_sum = jnp.sum(w * y_inner, axis=1, keepdims=True)     # (Bt, 1)

    # ---- outer integrand (K=1 first layer on the VPU, not the MXU) ----------
    xw_o = inner_sum * P('oWax')                                # (Bt, H1)
    a1o = relu(quad_rows(xw_o, hp_o))                           # (N, H1)
    a2o = relu(mm(a1o, P('oW2')) + P('ob2'))                    # (N, H2)
    fo = elu1(mm(a2o, P('oW3')) + P('ob3'))                     # (N, 1)
    integ_o = cc_reduce(fo) * inner_sum * 0.5                   # (Bt, 1)
    y = scal[:, M:M + 1] * integ_o + offs[:, M:M + 1]           # (Bt, 1)

    # Lane-dense unmasked store; wrapper slices column 0.
    out_ref[...] = jnp.broadcast_to(y, (Bt, out_w))


# ----------------------------------------------------------------------------
# Wrapper: one-time packing + jitted batch-tiled pallas_call
# ----------------------------------------------------------------------------
def make_slowd_forward(params, mon_in, cond_in, hiddens, nb_steps,
                       block_b=128, matmul_dtype=jnp.float32,
                       vmem_limit_bytes=None):
    # block_b: batch rows per grid step (clamped to the padded batch size).
    #   128 is VMEM-safe on v5e/v6e/v7x defaults; 256 is fine on v6e/v7x and
    #   needs vmem_limit_bytes (e.g. 48<<20) on v5e.  Keep block_b small enough
    #   that large batches still give >=2 grid steps per TensorCore on v7x.
    # matmul_dtype: jnp.bfloat16 halves MXU passes (accumulation stays f32) but
    #   re-check your tolerance before enabling.
    assert block_b % 8 == 0 and block_b > 0
    M, C = mon_in, cond_in
    H1, H2 = hiddens
    Wm, pmain, layout, meta = pack_params(params, hiddens, M, C)
    HI1, KH1, DINP = meta['HI1'], meta['KH1'], meta['DINP']
    cc_w, steps = compute_cc_weights(nb_steps)
    sh = tuple(float(v) for v in ((steps[:, 0] + 1.0) * 0.5))   # abscissa scales
    cw = tuple(float(v) for v in cc_w[:, 0])                    # CC weights
    out_w = 128
    prow, pcol = pmain.shape
    wrow, wcol = Wm.shape

    @jax.jit
    def forward(mon_x, cond_h):
        B = mon_x.shape[0]
        bt = min(block_b, _round8(B))           # clamp tile to padded batch
        Bp = ((B + bt - 1) // bt) * bt
        ones = jnp.ones((B, 1), jnp.float32)
        xh = jnp.concatenate([mon_x.astype(jnp.float32),
                              cond_h.astype(jnp.float32), ones], axis=1)
        if DINP > M + C + 1:
            xh = jnp.pad(xh, ((0, 0), (0, DINP - (M + C + 1))))
        if Bp != B:
            xh = jnp.pad(xh, ((0, Bp - B), (0, 0)))

        kernel = functools.partial(
            _slowd_kernel, M=M, H1=H1, H2=H2, HI1=HI1, KH1=KH1, Bt=bt,
            sh=sh, cw=cw, layout=layout, out_w=out_w, mdt=matmul_dtype)

        cp_kwargs = dict(dimension_semantics=("parallel",))
        if vmem_limit_bytes is not None:
            cp_kwargs['vmem_limit_bytes'] = vmem_limit_bytes

        out = pl.pallas_call(
            kernel,
            out_shape=jax.ShapeDtypeStruct((Bp, out_w), jnp.float32),
            grid=(Bp // bt,),
            in_specs=[
                pl.BlockSpec((bt, DINP), lambda i: (i, 0)),
                pl.BlockSpec((wrow, wcol), lambda i: (0, 0)),   # resident weights
                pl.BlockSpec((prow, pcol), lambda i: (0, 0)),   # resident weights
            ],
            out_specs=pl.BlockSpec((bt, out_w), lambda i: (i, 0)),
            compiler_params=pltpu.CompilerParams(**cp_kwargs),
        )(xh, Wm, pmain)
        return out[:B, 0:1]

    return forward


# ----------------------------------------------------------------------------
# Pure-JAX reference (mirrors the PyTorch semantics) used for validation
# ----------------------------------------------------------------------------
def _monotonic_ref(x, h, p, cc_w, steps):
    B = x.shape[0]
    T1 = steps.shape[0]
    x0 = jnp.zeros_like(x)
    xT = x
    x0_t = jnp.broadcast_to(x0[:, None, :], (B, T1, 1))
    xT_t = jnp.broadcast_to(xT[:, None, :], (B, T1, 1))
    h_t = jnp.broadcast_to(h[:, None, :], (B, T1, h.shape[1]))
    steps_t = jnp.broadcast_to(steps[None, :, :], (B, T1, 1))
    X = x0_t + (xT_t - x0_t) * (steps_t + 1.0) / 2.0
    inp = jnp.concatenate([X, h_t], axis=-1).reshape(B * T1, -1)
    a = jnp.maximum(inp @ p['iW1'] + p['ib1'], 0.0)
    a = jnp.maximum(a @ p['iW2'] + p['ib2'], 0.0)
    a = a @ p['iW3'] + p['ib3']
    f = jnp.where(a > 0.0, a, jnp.exp(jnp.minimum(a, 0.0)) - 1.0) + 1.0
    f = f.reshape(B, T1, 1)
    z = (f * cc_w[None, :, :]).sum(axis=1)
    integral = z * (xT - x0) / 2.0
    o = jnp.maximum(h @ p['nW1'] + p['nb1'], 0.0)
    o = jnp.maximum(o @ p['nW2'] + p['nb2'], 0.0)
    o = o @ p['nW3'] + p['nb3']
    return jnp.exp(o[:, 1:2]) * integral + o[:, 0:1]


def slowd_forward_ref(params, mon_x, cond_h, nb_steps):
    cc_w, steps = compute_cc_weights(nb_steps)
    cc_w = jnp.asarray(cc_w)
    steps = jnp.asarray(steps)
    B, M = mon_x.shape
    outs = [_monotonic_ref(mon_x[:, i:i + 1], cond_h, params['inner'][i],
                           cc_w, steps) for i in range(M)]
    inner_out = jnp.concatenate(outs, axis=1)                           # (B, M)
    inner_sum = (jnp.exp(params['logw']) * inner_out).sum(axis=1, keepdims=True)
    return _monotonic_ref(inner_sum, cond_h, params['outer'], cc_w, steps)


# ----------------------------------------------------------------------------
if __name__ == "__main__":
    B, M, C = 16, 3, 3         # batch, mon_in, cond_in
    hiddens = [32, 32]         # (M+1)*H1 = 128 lanes for the fused conditioners
    nb_steps = 16              # T1 = 17 quadrature points

    key = jax.random.PRNGKey(0)
    kp, kx, kh = jax.random.split(key, 3)
    params = init_slowd_params(kp, M, C, hiddens)
    mon_x = jax.random.normal(kx, (B, M), jnp.float32)
    cond_h = jax.random.normal(kh, (B, C), jnp.float32)

    ref = jax.block_until_ready(slowd_forward_ref(params, mon_x, cond_h, nb_steps))

    # Default (large-tile) config: tile clamps to the small test batch.
    forward = make_slowd_forward(params, M, C, hiddens, nb_steps)
    out = jax.block_until_ready(forward(mon_x, cond_h))
    assert out.shape == (B, 1)
    np.testing.assert_allclose(np.asarray(out), np.asarray(ref),
                               rtol=5e-3, atol=5e-3)

    # Also exercise the multi-tile + batch-padding path with a tiny tile.
    B2 = 40
    kx2, kh2 = jax.random.split(jax.random.PRNGKey(1))
    mon_x2 = jax.random.normal(kx2, (B2, M), jnp.float32)
    cond_h2 = jax.random.normal(kh2, (B2, C), jnp.float32)
    forward_small = make_slowd_forward(params, M, C, hiddens, nb_steps, block_b=16)
    out2 = jax.block_until_ready(forward_small(mon_x2, cond_h2))
    ref2 = jax.block_until_ready(slowd_forward_ref(params, mon_x2, cond_h2, nb_steps))
    assert out2.shape == (B2, 1)
    np.testing.assert_allclose(np.asarray(out2), np.asarray(ref2),
                               rtol=5e-3, atol=5e-3)

    print("KERNEL_OK")
</pallas_src>

<mosaic_0001>
module attributes {stable_mosaic.version = 11 : i64} {
  func.func @_slowd_kernel(%arg0: i32, %arg1: memref<16x8xf32, #tpu.memory_space<vmem>>, %arg2: memref<8x512xf32, #tpu.memory_space<vmem>>, %arg3: memref<640x128xf32, #tpu.memory_space<vmem>>, %arg4: memref<16x128xf32, #tpu.memory_space<vmem>>) attributes {dimension_semantics = [#tpu.dimension_semantics<parallel>], iteration_bounds = array<i64: 1>, scalar_prefetch = 0 : i64, scratch_operands = 0 : i64, tpu.core_type = #tpu.core_type<tc>, window_params = [{transform_indices = @transform_0, window_bounds = array<i64: 16, 8>}, {pipeline_mode = #tpu.pipeline_mode<synchronous>, transform_indices = @transform_1, window_bounds = array<i64: 8, 512>}, {pipeline_mode = #tpu.pipeline_mode<synchronous>, transform_indices = @transform_2, window_bounds = array<i64: 640, 128>}, {transform_indices = @transform_3, window_bounds = array<i64: 16, 128>}]} {
    %c0 = arith.constant 0 : index
    %c0_0 = arith.constant 0 : index
    %0 = vector.load %arg1[%c0, %c0_0] : memref<16x8xf32, #tpu.memory_space<vmem>>, vector<16x8xf32>
    %1 = vector.extract_strided_slice %0 {offsets = [0, 0], sizes = [16, 3], strides = [1, 1]} : vector<16x8xf32> to vector<16x3xf32>
    %c0_1 = arith.constant 0 : index
    %c0_2 = arith.constant 0 : index
    %2 = vector.load %arg2[%c0_1, %c0_2] : memref<8x512xf32, #tpu.memory_space<vmem>>, vector<8x512xf32>
    %cst = arith.constant dense<0.000000e+00> : vector<16x512xf32>
    %3 = tpu.matmul %0, %2, %cst {dimension_numbers = #tpu.dot_dimension_numbers<[1], [0], [0], [1], [0, 0, 1, 1], [], []>} : vector<16x8xf32>, vector<8x512xf32>, vector<16x512xf32> -> vector<16x512xf32>
    %4 = vector.extract_strided_slice %3 {offsets = [0, 0], sizes = [16, 128], strides = [1, 1]} : vector<16x512xf32> to vector<16x128xf32>
    %5 = vector.extract_strided_slice %3 {offsets = [0, 128], sizes = [16, 128], strides = [1, 1]} : vector<16x512xf32> to vector<16x128xf32>
    %6 = vector.extract_strided_slice %3 {offsets = [0, 256], sizes = [16, 128], strides = [1, 1]} : vector<16x512xf32> to vector<16x128xf32>
    %cst_3 = arith.constant 0.000000e+00 : f32
    %7 = vector.broadcast %cst_3 : f32 to vector<16x128xf32>
    %8 = arith.maximumf %6, %7 : vector<16x128xf32>
    %9 = vector.extract_strided_slice %3 {offsets = [0, 384], sizes = [16, 32], strides = [1, 1]} : vector<16x512xf32> to vector<16x32xf32>
    %c272 = arith.constant 272 : index
    %c0_4 = arith.constant 0 : index
    %10 = vector.load %arg3[%c272, %c0_4] : memref<640x128xf32, #tpu.memory_space<vmem>>, vector<128x128xf32>
    %cst_5 = arith.constant dense<0.000000e+00> : vector<16x128xf32>
    %11 = tpu.matmul %8, %10, %cst_5 {dimension_numbers = #tpu.dot_dimension_numbers<[1], [0], [0], [1], [0, 0, 1, 1], [], []>} : vector<16x128xf32>, vector<128x128xf32>, vector<16x128xf32> -> vector<16x128xf32>
    %c400 = arith.constant 400 : index
    %c0_6 = arith.constant 0 : index
    %12 = vector.load %arg3[%c400, %c0_6] : memref<640x128xf32, #tpu.memory_space<vmem>>, vector<1x128xf32>
    %13 = vector.broadcast %12 : vector<1x128xf32> to vector<16x128xf32>
    %14 = arith.addf %11, %13 : vector<16x128xf32>
    %cst_7 = arith.constant 0.000000e+00 : f32
    %15 = vector.broadcast %cst_7 : f32 to vector<16x128xf32>
    %16 = arith.maximumf %14, %15 : vector<16x128xf32>
    %c408 = arith.constant 408 : index
    %c0_8 = arith.constant 0 : index
    %17 = vector.load %arg3[%c408, %c0_8] : memref<640x128xf32, #tpu.memory_space<vmem>>, vector<128x8xf32>
    %cst_9 = arith.constant dense<0.000000e+00> : vector<16x8xf32>
    %18 = tpu.matmul %16, %17, %cst_9 {dimension_numbers = #tpu.dot_dimension_numbers<[1], [0], [0], [1], [0, 0, 1, 1], [], []>} : vector<16x128xf32>, vector<128x8xf32>, vector<16x8xf32> -> vector<16x8xf32>
    %c536 = arith.constant 536 : index
    %c0_10 = arith.constant 0 : index
    %19 = vector.load %arg3[%c536, %c0_10] : memref<640x128xf32, #tpu.memory_space<vmem>>, vector<1x8xf32>
    %20 = vector.broadcast %19 : vector<1x8xf32> to vector<16x8xf32>
    %21 = arith.addf %18, %20 : vector<16x8xf32>
    %22 = vector.extract_strided_slice %21 {offsets = [0, 0], sizes = [16, 4], strides = [1, 1]} : vector<16x8xf32> to vector<16x4xf32>
    %23 = vector.extract_strided_slice %21 {offsets = [0, 4], sizes = [16, 4], strides = [1, 1]} : vector<16x8xf32> to vector<16x4xf32>
    %24 = math.exp %23 : vector<16x4xf32>
    %cst_11 = arith.constant 1.000000e+00 : f32
    %25 = vector.broadcast %cst_11 : f32 to vector<16x128xf32>
    %26 = arith.mulf %25, %4 : vector<16x128xf32>
    %27 = arith.addf %26, %5 : vector<16x128xf32>
    %cst_12 = arith.constant 0.990392625 : f32
    %28 = vector.broadcast %cst_12 : f32 to vector<16x128xf32>
    %29 = arith.mulf %28, %4 : vector<16x128xf32>
    %30 = arith.addf %29, %5 : vector<16x128xf32>
    %cst_13 = arith.constant 0.961939752 : f32
    %31 = vector.broadcast %cst_13 : f32 to vector<16x128xf32>
    %32 = arith.mulf %31, %4 : vector<16x128xf32>
    %33 = arith.addf %32, %5 : vector<16x128xf32>
    %cst_14 = arith.constant 0.915734767 : f32
    %34 = vector.broadcast %cst_14 : f32 to vector<16x128xf32>
    %35 = arith.mulf %34, %4 : vector<16x128xf32>
    %36 = arith.addf %35, %5 : vector<16x128xf32>
    %cst_15 = arith.constant 0.853553414 : f32
    %37 = vector.broadcast %cst_15 : f32 to vector<16x128xf32>
    %38 = arith.mulf %37, %4 : vector<16x128xf32>
    %39 = arith.addf %38, %5 : vector<16x128xf32>
    %cst_16 = arith.constant 0.777785122 : f32
    %40 = vector.broadcast %cst_16 : f32 to vector<16x128xf32>
    %41 = arith.mulf %40, %4 : vector<16x128xf32>
    %42 = arith.addf %41, %5 : vector<16x128xf32>
    %cst_17 = arith.constant 0.691341698 : f32
    %43 = vector.broadcast %cst_17 : f32 to vector<16x128xf32>
    %44 = arith.mulf %43, %4 : vector<16x128xf32>
    %45 = arith.addf %44, %5 : vector<16x128xf32>
    %cst_18 = arith.constant 0.597545146 : f32
    %46 = vector.broadcast %cst_18 : f32 to vector<16x128xf32>
    %47 = arith.mulf %46, %4 : vector<16x128xf32>
    %48 = arith.addf %47, %5 : vector<16x128xf32>
    %cst_19 = arith.constant 5.000000e-01 : f32
    %49 = vector.broadcast %cst_19 : f32 to vector<16x128xf32>
    %50 = arith.mulf %49, %4 : vector<16x128xf32>
    %51 = arith.addf %50, %5 : vector<16x128xf32>
    %cst_20 = arith.constant 0.402454853 : f32
    %52 = vector.broadcast %cst_20 : f32 to vector<16x128xf32>
    %53 = arith.mulf %52, %4 : vector<16x128xf32>
    %54 = arith.addf %53, %5 : vector<16x128xf32>
    %cst_21 = arith.constant 0.308658302 : f32
    %55 = vector.broadcast %cst_21 : f32 to vector<16x128xf32>
    %56 = arith.mulf %55, %4 : vector<16x128xf32>
    %57 = arith.addf %56, %5 : vector<16x128xf32>
    %cst_22 = arith.constant 0.222214878 : f32
    %58 = vector.broadcast %cst_22 : f32 to vector<16x128xf32>
    %59 = arith.mulf %58, %4 : vector<16x128xf32>
    %60 = arith.addf %59, %5 : vector<16x128xf32>
    %cst_23 = arith.constant 0.146446615 : f32
    %61 = vector.broadcast %cst_23 : f32 to vector<16x128xf32>
    %62 = arith.mulf %61, %4 : vector<16x128xf32>
    %63 = arith.addf %62, %5 : vector<16x128xf32>
    %cst_24 = arith.constant 8.426520e-02 : f32
    %64 = vector.broadcast %cst_24 : f32 to vector<16x128xf32>
    %65 = arith.mulf %64, %4 : vector<16x128xf32>
    %66 = arith.addf %65, %5 : vector<16x128xf32>
    %cst_25 = arith.constant 0.0380602479 : f32
    %67 = vector.broadcast %cst_25 : f32 to vector<16x128xf32>
    %68 = arith.mulf %67, %4 : vector<16x128xf32>
    %69 = arith.addf %68, %5 : vector<16x128xf32>
    %cst_26 = arith.constant 0.00960737466 : f32
    %70 = vector.broadcast %cst_26 : f32 to vector<16x128xf32>
    %71 = arith.mulf %70, %4 : vector<16x128xf32>
    %72 = arith.addf %71, %5 : vector<16x128xf32>
    %cst_27 = arith.constant 0.000000e+00 : f32
    %73 = vector.broadcast %cst_27 : f32 to vector<16x128xf32>
    %74 = arith.mulf %73, %4 : vector<16x128xf32>
    %75 = arith.addf %74, %5 : vector<16x128xf32>
    %76 = tpu.concatenate %27, %30, %33, %36, %39, %42, %45, %48, %51, %54, %57, %60, %63, %66, %69, %72 in 0 : vector<16x128xf32>, vector<16x128xf32>, vector<16x128xf32>, vector<16x128xf32>, vector<16x128xf32>, vector<16x128xf32>, vector<16x128xf32>, vector<16x128xf32>, vector<16x128xf32>, vector<16x128xf32>, vector<16x128xf32>, vector<16x128xf32>, vector<16x128xf32>, vector<16x128xf32>, vector<16x128xf32>, vector<16x128xf32> -> vector<256x128xf32>
    %77 = tpu.concatenate %76, %75 in 0 : vector<256x128xf32>, vector<16x128xf32> -> vector<272x128xf32>
    %cst_28 = arith.constant 0.000000e+00 : f32
    %78 = vector.broadcast %cst_28 : f32 to vector<272x128xf32>
    %79 = arith.maximumf %77, %78 : vector<272x128xf32>
    %c0_29 = arith.constant 0 : index
    %c0_30 = arith.constant 0 : index
    %80 = vector.load %arg3[%c0_29, %c0_30] : memref<640x128xf32, #tpu.memory_space<vmem>>, vector<128x128xf32>
    %cst_31 = arith.constant dense<0.000000e+00> : vector<272x128xf32>
    %81 = tpu.matmul %79, %80, %cst_31 {dimension_numbers = #tpu.dot_dimension_numbers<[1], [0], [0], [1], [0, 0, 1, 1], [], []>} : vector<272x128xf32>, vector<128x128xf32>, vector<272x128xf32> -> vector<272x128xf32>
    %c128 = arith.constant 128 : index
    %c0_32 = arith.constant 0 : index
    %82 = vector.load %arg3[%c128, %c0_32] : memref<640x128xf32, #tpu.memory_space<vmem>>, vector<1x128xf32>
    %83 = vector.broadcast %82 : vector<1x128xf32> to vector<272x128xf32>
    %84 = arith.addf %81, %83 : vector<272x128xf32>
    %cst_33 = arith.constant 0.000000e+00 : f32
    %85 = vector.broadcast %cst_33 : f32 to vector<272x128xf32>
    %86 = arith.maximumf %84, %85 : vector<272x128xf32>
    %c136 = arith.constant 136 : index
    %c0_34 = arith.constant 0 : index
    %87 = vector.load %arg3[%c136, %c0_34] : memref<640x128xf32, #tpu.memory_space<vmem>>, vector<128x3xf32>
    %cst_35 = arith.constant dense<0.000000e+00> : vector<272x3xf32>
    %88 = tpu.matmul %86, %87, %cst_35 {dimension_numbers = #tpu.dot_dimension_numbers<[1], [0], [0], [1], [0, 0, 1, 1], [], []>} : vector<272x128xf32>, vector<128x3xf32>, vector<272x3xf32> -> vector<272x3xf32>
    %c264 = arith.constant 264 : index
    %c0_36 = arith.constant 0 : index
    %89 = vector.load %arg3[%c264, %c0_36] : memref<640x128xf32, #tpu.memory_space<vmem>>, vector<1x3xf32>
    %90 = vector.broadcast %89 : vector<1x3xf32> to vector<272x3xf32>
    %91 = arith.addf %88, %90 : vector<272x3xf32>
    %cst_37 = arith.constant 0.000000e+00 : f32
    %92 = vector.broadcast %cst_37 : f32 to vector<272x3xf32>
    %93 = arith.cmpf ogt, %91, %92 : vector<272x3xf32>
    %cst_38 = arith.constant 0.000000e+00 : f32
    %94 = vector.broadcast %cst_38 : f32 to vector<272x3xf32>
    %95 = arith.minimumf %91, %94 : vector<272x3xf32>
    %96 = math.exp %95 : vector<272x3xf32>
    %cst_39 = arith.constant 1.000000e+00 : f32
    %97 = vector.broadcast %cst_39 : f32 to vector<272x3xf32>
    %98 = arith.subf %96, %97 : vector<272x3xf32>
    %99 = arith.select %93, %91, %98 : vector<272x3xi1>, vector<272x3xf32>
    %cst_40 = arith.constant 1.000000e+00 : f32
    %100 = vector.broadcast %cst_40 : f32 to vector<272x3xf32>
    %101 = arith.addf %99, %100 : vector<272x3xf32>
    %102 = vector.extract_strided_slice %101 {offsets = [0, 0], sizes = [16, 3], strides = [1, 1]} : vector<272x3xf32> to vector<16x3xf32>
    %cst_41 = arith.constant 0.0036764706 : f32
    %103 = vector.broadcast %cst_41 : f32 to vector<16x3xf32>
    %104 = arith.mulf %103, %102 : vector<16x3xf32>
    %105 = vector.extract_strided_slice %101 {offsets = [16, 0], sizes = [16, 3], strides = [1, 1]} : vector<272x3xf32> to vector<16x3xf32>
    %cst_42 = arith.constant 3.785890e-02 : f32
    %106 = vector.broadcast %cst_42 : f32 to vector<16x3xf32>
    %107 = arith.mulf %106, %105 : vector<16x3xf32>
    %108 = vector.extract_strided_slice %101 {offsets = [32, 0], sizes = [16, 3], strides = [1, 1]} : vector<272x3xf32> to vector<16x3xf32>
    %cst_43 = arith.constant 0.0749921352 : f32
    %109 = vector.broadcast %cst_43 : f32 to vector<16x3xf32>
    %110 = arith.mulf %109, %108 : vector<16x3xf32>
    %111 = vector.extract_strided_slice %101 {offsets = [48, 0], sizes = [16, 3], strides = [1, 1]} : vector<272x3xf32> to vector<16x3xf32>
    %cst_44 = arith.constant 0.10939575 : f32
    %112 = vector.broadcast %cst_44 : f32 to vector<16x3xf32>
    %113 = arith.mulf %112, %111 : vector<16x3xf32>
    %114 = vector.extract_strided_slice %101 {offsets = [64, 0], sizes = [16, 3], strides = [1, 1]} : vector<272x3xf32> to vector<16x3xf32>
    %cst_45 = arith.constant 0.138466269 : f32
    %115 = vector.broadcast %cst_45 : f32 to vector<16x3xf32>
    %116 = arith.mulf %115, %114 : vector<16x3xf32>
    %117 = vector.extract_strided_slice %101 {offsets = [80, 0], sizes = [16, 3], strides = [1, 1]} : vector<272x3xf32> to vector<16x3xf32>
    %cst_46 = arith.constant 0.163662866 : f32
    %118 = vector.broadcast %cst_46 : f32 to vector<16x3xf32>
    %119 = arith.mulf %118, %117 : vector<16x3xf32>
    %120 = vector.extract_strided_slice %101 {offsets = [96, 0], sizes = [16, 3], strides = [1, 1]} : vector<272x3xf32> to vector<16x3xf32>
    %cst_47 = arith.constant 0.180983588 : f32
    %121 = vector.broadcast %cst_47 : f32 to vector<16x3xf32>
    %122 = arith.mulf %121, %120 : vector<16x3xf32>
    %123 = vector.extract_strided_slice %101 {offsets = [112, 0], sizes = [16, 3], strides = [1, 1]} : vector<272x3xf32> to vector<16x3xf32>
    %cst_48 = arith.constant 0.193004057 : f32
    %124 = vector.broadcast %cst_48 : f32 to vector<16x3xf32>
    %125 = arith.mulf %124, %123 : vector<16x3xf32>
    %126 = vector.extract_strided_slice %101 {offsets = [128, 0], sizes = [16, 3], strides = [1, 1]} : vector<272x3xf32> to vector<16x3xf32>
    %cst_49 = arith.constant 0.195919931 : f32
    %127 = vector.broadcast %cst_49 : f32 to vector<16x3xf32>
    %128 = arith.mulf %127, %126 : vector<16x3xf32>
    %129 = vector.extract_strided_slice %101 {offsets = [144, 0], sizes = [16, 3], strides = [1, 1]} : vector<272x3xf32> to vector<16x3xf32>
    %cst_50 = arith.constant 0.193004057 : f32
    %130 = vector.broadcast %cst_50 : f32 to vector<16x3xf32>
    %131 = arith.mulf %130, %129 : vector<16x3xf32>
    %132 = vector.extract_strided_slice %101 {offsets = [160, 0], sizes = [16, 3], strides = [1, 1]} : vector<272x3xf32> to vector<16x3xf32>
    %cst_51 = arith.constant 0.180983588 : f32
    %133 = vector.broadcast %cst_51 : f32 to vector<16x3xf32>
    %134 = arith.mulf %133, %132 : vector<16x3xf32>
    %135 = vector.extract_strided_slice %101 {offsets = [176, 0], sizes = [16, 3], strides = [1, 1]} : vector<272x3xf32> to vector<16x3xf32>
    %cst_52 = arith.constant 0.163662866 : f32
    %136 = vector.broadcast %cst_52 : f32 to vector<16x3xf32>
    %137 = arith.mulf %136, %135 : vector<16x3xf32>
    %138 = vector.extract_strided_slice %101 {offsets = [192, 0], sizes = [16, 3], strides = [1, 1]} : vector<272x3xf32> to vector<16x3xf32>
    %cst_53 = arith.constant 0.138466269 : f32
    %139 = vector.broadcast %cst_53 : f32 to vector<16x3xf32>
    %140 = arith.mulf %139, %138 : vector<16x3xf32>
    %141 = vector.extract_strided_slice %101 {offsets = [208, 0], sizes = [16, 3], strides = [1, 1]} : vector<272x3xf32> to vector<16x3xf32>
    %cst_54 = arith.constant 0.10939575 : f32
    %142 = vector.broadcast %cst_54 : f32 to vector<16x3xf32>
    %143 = arith.mulf %142, %141 : vector<16x3xf32>
    %144 = vector.extract_strided_slice %101 {offsets = [224, 0], sizes = [16, 3], strides = [1, 1]} : vector<272x3xf32> to vector<16x3xf32>
    %cst_55 = arith.constant 0.0749921352 : f32
    %145 = vector.broadcast %cst_55 : f32 to vector<16x3xf32>
    %146 = arith.mulf %145, %144 : vector<16x3xf32>
    %147 = vector.extract_strided_slice %101 {offsets = [240, 0], sizes = [16, 3], strides = [1, 1]} : vector<272x3xf32> to vector<16x3xf32>
    %cst_56 = arith.constant 3.785890e-02 : f32
    %148 = vector.broadcast %cst_56 : f32 to vector<16x3xf32>
    %149 = arith.mulf %148, %147 : vector<16x3xf32>
    %150 = vector.extract_strided_slice %101 {offsets = [256, 0], sizes = [16, 3], strides = [1, 1]} : vector<272x3xf32> to vector<16x3xf32>
    %cst_57 = arith.constant 0.0036764706 : f32
    %151 = vector.broadcast %cst_57 : f32 to vector<16x3xf32>
    %152 = arith.mulf %151, %150 : vector<16x3xf32>
    %153 = arith.addf %104, %107 : vector<16x3xf32>
    %154 = arith.addf %110, %113 : vector<16x3xf32>
    %155 = arith.addf %116, %119 : vector<16x3xf32>
    %156 = arith.addf %122, %125 : vector<16x3xf32>
    %157 = arith.addf %128, %131 : vector<16x3xf32>
    %158 = arith.addf %134, %137 : vector<16x3xf32>
    %159 = arith.addf %140, %143 : vector<16x3xf32>
    %160 = arith.addf %146, %149 : vector<16x3xf32>
    %161 = arith.addf %153, %154 : vector<16x3xf32>
    %162 = arith.addf %155, %156 : vector<16x3xf32>
    %163 = arith.addf %157, %158 : vector<16x3xf32>
    %164 = arith.addf %159, %160 : vector<16x3xf32>
    %165 = arith.addf %161, %162 : vector<16x3xf32>
    %166 = arith.addf %163, %164 : vector<16x3xf32>
    %167 = arith.addf %165, %166 : vector<16x3xf32>
    %168 = arith.addf %167, %152 : vector<16x3xf32>
    %169 = arith.mulf %168, %1 : vector<16x3xf32>
    %cst_58 = arith.constant 5.000000e-01 : f32
    %170 = vector.broadcast %cst_58 : f32 to vector<16x3xf32>
    %171 = arith.mulf %169, %170 : vector<16x3xf32>
    %172 = vector.extract_strided_slice %24 {offsets = [0, 0], sizes = [16, 3], strides = [1, 1]} : vector<16x4xf32> to vector<16x3xf32>
    %173 = arith.mulf %172, %171 : vector<16x3xf32>
    %174 = vector.extract_strided_slice %22 {offsets = [0, 0], sizes = [16, 3], strides = [1, 1]} : vector<16x4xf32> to vector<16x3xf32>
    %175 = arith.addf %173, %174 : vector<16x3xf32>
    %c632 = arith.constant 632 : index
    %c0_59 = arith.constant 0 : index
    %176 = vector.load %arg3[%c632, %c0_59] : memref<640x128xf32, #tpu.memory_space<vmem>>, vector<1x3xf32>
    %177 = math.exp %176 : vector<1x3xf32>
    %178 = vector.broadcast %177 : vector<1x3xf32> to vector<16x3xf32>
    %179 = arith.mulf %178, %175 : vector<16x3xf32>
    %cst_60 = arith.constant dense<0.000000e+00> : vector<16xf32>
    %180 = vector.multi_reduction <add>, %179, %cst_60 [1] : vector<16x3xf32> to vector<16xf32>
    %181 = vector.shape_cast %180 : vector<16xf32> to vector<16x1xf32>
    %c544 = arith.constant 544 : index
    %c0_61 = arith.constant 0 : index
    %182 = vector.load %arg3[%c544, %c0_61] : memref<640x128xf32, #tpu.memory_space<vmem>>, vector<1x32xf32>
    %183 = vector.broadcast %181 : vector<16x1xf32> to vector<16x32xf32>
    %184 = vector.broadcast %182 : vector<1x32xf32> to vector<16x32xf32>
    %185 = arith.mulf %183, %184 : vector<16x32xf32>
    %cst_62 = arith.constant 1.000000e+00 : f32
    %186 = vector.broadcast %cst_62 : f32 to vector<16x32xf32>
    %187 = arith.mulf %186, %185 : vector<16x32xf32>
    %188 = arith.addf %187, %9 : vector<16x32xf32>
    %cst_63 = arith.constant 0.990392625 : f32
    %189 = vector.broadcast %cst_63 : f32 to vector<16x32xf32>
    %190 = arith.mulf %189, %185 : vector<16x32xf32>
    %191 = arith.addf %190, %9 : vector<16x32xf32>
    %cst_64 = arith.constant 0.961939752 : f32
    %192 = vector.broadcast %cst_64 : f32 to vector<16x32xf32>
    %193 = arith.mulf %192, %185 : vector<16x32xf32>
    %194 = arith.addf %193, %9 : vector<16x32xf32>
    %cst_65 = arith.constant 0.915734767 : f32
    %195 = vector.broadcast %cst_65 : f32 to vector<16x32xf32>
    %196 = arith.mulf %195, %185 : vector<16x32xf32>
    %197 = arith.addf %196, %9 : vector<16x32xf32>
    %cst_66 = arith.constant 0.853553414 : f32
    %198 = vector.broadcast %cst_66 : f32 to vector<16x32xf32>
    %199 = arith.mulf %198, %185 : vector<16x32xf32>
    %200 = arith.addf %199, %9 : vector<16x32xf32>
    %cst_67 = arith.constant 0.777785122 : f32
    %201 = vector.broadcast %cst_67 : f32 to vector<16x32xf32>
    %202 = arith.mulf %201, %185 : vector<16x32xf32>
    %203 = arith.addf %202, %9 : vector<16x32xf32>
    %cst_68 = arith.constant 0.691341698 : f32
    %204 = vector.broadcast %cst_68 : f32 to vector<16x32xf32>
    %205 = arith.mulf %204, %185 : vector<16x32xf32>
    %206 = arith.addf %205, %9 : vector<16x32xf32>
    %cst_69 = arith.constant 0.597545146 : f32
    %207 = vector.broadcast %cst_69 : f32 to vector<16x32xf32>
    %208 = arith.mulf %207, %185 : vector<16x32xf32>
    %209 = arith.addf %208, %9 : vector<16x32xf32>
    %cst_70 = arith.constant 5.000000e-01 : f32
    %210 = vector.broadcast %cst_70 : f32 to vector<16x32xf32>
    %211 = arith.mulf %210, %185 : vector<16x32xf32>
    %212 = arith.addf %211, %9 : vector<16x32xf32>
    %cst_71 = arith.constant 0.402454853 : f32
    %213 = vector.broadcast %cst_71 : f32 to vector<16x32xf32>
    %214 = arith.mulf %213, %185 : vector<16x32xf32>
    %215 = arith.addf %214, %9 : vector<16x32xf32>
    %cst_72 = arith.constant 0.308658302 : f32
    %216 = vector.broadcast %cst_72 : f32 to vector<16x32xf32>
    %217 = arith.mulf %216, %185 : vector<16x32xf32>
    %218 = arith.addf %217, %9 : vector<16x32xf32>
    %cst_73 = arith.constant 0.222214878 : f32
    %219 = vector.broadcast %cst_73 : f32 to vector<16x32xf32>
    %220 = arith.mulf %219, %185 : vector<16x32xf32>
    %221 = arith.addf %220, %9 : vector<16x32xf32>
    %cst_74 = arith.constant 0.146446615 : f32
    %222 = vector.broadcast %cst_74 : f32 to vector<16x32xf32>
    %223 = arith.mulf %222, %185 : vector<16x32xf32>
    %224 = arith.addf %223, %9 : vector<16x32xf32>
    %cst_75 = arith.constant 8.426520e-02 : f32
    %225 = vector.broadcast %cst_75 : f32 to vector<16x32xf32>
    %226 = arith.mulf %225, %185 : vector<16x32xf32>
    %227 = arith.addf %226, %9 : vector<16x32xf32>
    %cst_76 = arith.constant 0.0380602479 : f32
    %228 = vector.broadcast %cst_76 : f32 to vector<16x32xf32>
    %229 = arith.mulf %228, %185 : vector<16x32xf32>
    %230 = arith.addf %229, %9 : vector<16x32xf32>
    %cst_77 = arith.constant 0.00960737466 : f32
    %231 = vector.broadcast %cst_77 : f32 to vector<16x32xf32>
    %232 = arith.mulf %231, %185 : vector<16x32xf32>
    %233 = arith.addf %232, %9 : vector<16x32xf32>
    %cst_78 = arith.constant 0.000000e+00 : f32
    %234 = vector.broadcast %cst_78 : f32 to vector<16x32xf32>
    %235 = arith.mulf %234, %185 : vector<16x32xf32>
    %236 = arith.addf %235, %9 : vector<16x32xf32>
    %237 = tpu.concatenate %188, %191, %194, %197, %200, %203, %206, %209, %212, %215, %218, %221, %224, %227, %230, %233 in 0 : vector<16x32xf32>, vector<16x32xf32>, vector<16x32xf32>, vector<16x32xf32>, vector<16x32xf32>, vector<16x32xf32>, vector<16x32xf32>, vector<16x32xf32>, vector<16x32xf32>, vector<16x32xf32>, vector<16x32xf32>, vector<16x32xf32>, vector<16x32xf32>, vector<16x32xf32>, vector<16x32xf32>, vector<16x32xf32> -> vector<256x32xf32>
    %238 = tpu.concatenate %237, %236 in 0 : vector<256x32xf32>, vector<16x32xf32> -> vector<272x32xf32>
    %cst_79 = arith.constant 0.000000e+00 : f32
    %239 = vector.broadcast %cst_79 : f32 to vector<272x32xf32>
    %240 = arith.maximumf %238, %239 : vector<272x32xf32>
    %c552 = arith.constant 552 : index
    %c0_80 = arith.constant 0 : index
    %241 = vector.load %arg3[%c552, %c0_80] : memref<640x128xf32, #tpu.memory_space<vmem>>, vector<32x32xf32>
    %cst_81 = arith.constant dense<0.000000e+00> : vector<272x32xf32>
    %242 = tpu.matmul %240, %241, %cst_81 {dimension_numbers = #tpu.dot_dimension_numbers<[1], [0], [0], [1], [0, 0, 1, 1], [], []>} : vector<272x32xf32>, vector<32x32xf32>, vector<272x32xf32> -> vector<272x32xf32>
    %c584 = arith.constant 584 : index
    %c0_82 = arith.constant 0 : index
    %243 = vector.load %arg3[%c584, %c0_82] : memref<640x128xf32, #tpu.memory_space<vmem>>, vector<1x32xf32>
    %244 = vector.broadcast %243 : vector<1x32xf32> to vector<272x32xf32>
    %245 = arith.addf %242, %244 : vector<272x32xf32>
    %cst_83 = arith.constant 0.000000e+00 : f32
    %246 = vector.broadcast %cst_83 : f32 to vector<272x32xf32>
    %247 = arith.maximumf %245, %246 : vector<272x32xf32>
    %c592 = arith.constant 592 : index
    %c0_84 = arith.constant 0 : index
    %248 = vector.load %arg3[%c592, %c0_84] : memref<640x128xf32, #tpu.memory_space<vmem>>, vector<32x1xf32>
    %cst_85 = arith.constant dense<0.000000e+00> : vector<272x1xf32>
    %249 = tpu.matmul %247, %248, %cst_85 {dimension_numbers = #tpu.dot_dimension_numbers<[1], [0], [0], [1], [0, 0, 1, 1], [], []>} : vector<272x32xf32>, vector<32x1xf32>, vector<272x1xf32> -> vector<272x1xf32>
    %c624 = arith.constant 624 : index
    %c0_86 = arith.constant 0 : index
    %250 = vector.load %arg3[%c624, %c0_86] : memref<640x128xf32, #tpu.memory_space<vmem>>, vector<1x1xf32>
    %251 = vector.broadcast %250 : vector<1x1xf32> to vector<272x1xf32>
    %252 = arith.addf %249, %251 : vector<272x1xf32>
    %cst_87 = arith.constant 0.000000e+00 : f32
    %253 = vector.broadcast %cst_87 : f32 to vector<272x1xf32>
    %254 = arith.cmpf ogt, %252, %253 : vector<272x1xf32>
    %cst_88 = arith.constant 0.000000e+00 : f32
    %255 = vector.broadcast %cst_88 : f32 to vector<272x1xf32>
    %256 = arith.minimumf %252, %255 : vector<272x1xf32>
    %257 = math.exp %256 : vector<272x1xf32>
    %cst_89 = arith.constant 1.000000e+00 : f32
    %258 = vector.broadcast %cst_89 : f32 to vector<272x1xf32>
    %259 = arith.subf %257, %258 : vector<272x1xf32>
    %260 = arith.select %254, %252, %259 : vector<272x1xi1>, vector<272x1xf32>
    %cst_90 = arith.constant 1.000000e+00 : f32
    %261 = vector.broadcast %cst_90 : f32 to vector<272x1xf32>
    %262 = arith.addf %260, %261 : vector<272x1xf32>
    %263 = vector.extract_strided_slice %262 {offsets = [0, 0], sizes = [16, 1], strides = [1, 1]} : vector<272x1xf32> to vector<16x1xf32>
    %cst_91 = arith.constant 0.0036764706 : f32
    %264 = vector.broadcast %cst_91 : f32 to vector<16x1xf32>
    %265 = arith.mulf %264, %263 : vector<16x1xf32>
    %266 = vector.extract_strided_slice %262 {offsets = [16, 0], sizes = [16, 1], strides = [1, 1]} : vector<272x1xf32> to vector<16x1xf32>
    %cst_92 = arith.constant 3.785890e-02 : f32
    %267 = vector.broadcast %cst_92 : f32 to vector<16x1xf32>
    %268 = arith.mulf %267, %266 : vector<16x1xf32>
    %269 = vector.extract_strided_slice %262 {offsets = [32, 0], sizes = [16, 1], strides = [1, 1]} : vector<272x1xf32> to vector<16x1xf32>
    %cst_93 = arith.constant 0.0749921352 : f32
    %270 = vector.broadcast %cst_93 : f32 to vector<16x1xf32>
    %271 = arith.mulf %270, %269 : vector<16x1xf32>
    %272 = vector.extract_strided_slice %262 {offsets = [48, 0], sizes = [16, 1], strides = [1, 1]} : vector<272x1xf32> to vector<16x1xf32>
    %cst_94 = arith.constant 0.10939575 : f32
    %273 = vector.broadcast %cst_94 : f32 to vector<16x1xf32>
    %274 = arith.mulf %273, %272 : vector<16x1xf32>
    %275 = vector.extract_strided_slice %262 {offsets = [64, 0], sizes = [16, 1], strides = [1, 1]} : vector<272x1xf32> to vector<16x1xf32>
    %cst_95 = arith.constant 0.138466269 : f32
    %276 = vector.broadcast %cst_95 : f32 to vector<16x1xf32>
    %277 = arith.mulf %276, %275 : vector<16x1xf32>
    %278 = vector.extract_strided_slice %262 {offsets = [80, 0], sizes = [16, 1], strides = [1, 1]} : vector<272x1xf32> to vector<16x1xf32>
    %cst_96 = arith.constant 0.163662866 : f32
    %279 = vector.broadcast %cst_96 : f32 to vector<16x1xf32>
    %280 = arith.mulf %279, %278 : vector<16x1xf32>
    %281 = vector.extract_strided_slice %262 {offsets = [96, 0], sizes = [16, 1], strides = [1, 1]} : vector<272x1xf32> to vector<16x1xf32>
    %cst_97 = arith.constant 0.180983588 : f32
    %282 = vector.broadcast %cst_97 : f32 to vector<16x1xf32>
    %283 = arith.mulf %282, %281 : vector<16x1xf32>
    %284 = vector.extract_strided_slice %262 {offsets = [112, 0], sizes = [16, 1], strides = [1, 1]} : vector<272x1xf32> to vector<16x1xf32>
    %cst_98 = arith.constant 0.193004057 : f32
    %285 = vector.broadcast %cst_98 : f32 to vector<16x1xf32>
    %286 = arith.mulf %285, %284 : vector<16x1xf32>
    %287 = vector.extract_strided_slice %262 {offsets = [128, 0], sizes = [16, 1], strides = [1, 1]} : vector<272x1xf32> to vector<16x1xf32>
    %cst_99 = arith.constant 0.195919931 : f32
    %288 = vector.broadcast %cst_99 : f32 to vector<16x1xf32>
    %289 = arith.mulf %288, %287 : vector<16x1xf32>
    %290 = vector.extract_strided_slice %262 {offsets = [144, 0], sizes = [16, 1], strides = [1, 1]} : vector<272x1xf32> to vector<16x1xf32>
    %cst_100 = arith.constant 0.193004057 : f32
    %291 = vector.broadcast %cst_100 : f32 to vector<16x1xf32>
    %292 = arith.mulf %291, %290 : vector<16x1xf32>
    %293 = vector.extract_strided_slice %262 {offsets = [160, 0], sizes = [16, 1], strides = [1, 1]} : vector<272x1xf32> to vector<16x1xf32>
    %cst_101 = arith.constant 0.180983588 : f32
    %294 = vector.broadcast %cst_101 : f32 to vector<16x1xf32>
    %295 = arith.mulf %294, %293 : vector<16x1xf32>
    %296 = vector.extract_strided_slice %262 {offsets = [176, 0], sizes = [16, 1], strides = [1, 1]} : vector<272x1xf32> to vector<16x1xf32>
    %cst_102 = arith.constant 0.163662866 : f32
    %297 = vector.broadcast %cst_102 : f32 to vector<16x1xf32>
    %298 = arith.mulf %297, %296 : vector<16x1xf32>
    %299 = vector.extract_strided_slice %262 {offsets = [192, 0], sizes = [16, 1], strides = [1, 1]} : vector<272x1xf32> to vector<16x1xf32>
    %cst_103 = arith.constant 0.138466269 : f32
    %300 = vector.broadcast %cst_103 : f32 to vector<16x1xf32>
    %301 = arith.mulf %300, %299 : vector<16x1xf32>
    %302 = vector.extract_strided_slice %262 {offsets = [208, 0], sizes = [16, 1], strides = [1, 1]} : vector<272x1xf32> to vector<16x1xf32>
    %cst_104 = arith.constant 0.10939575 : f32
    %303 = vector.broadcast %cst_104 : f32 to vector<16x1xf32>
    %304 = arith.mulf %303, %302 : vector<16x1xf32>
    %305 = vector.extract_strided_slice %262 {offsets = [224, 0], sizes = [16, 1], strides = [1, 1]} : vector<272x1xf32> to vector<16x1xf32>
    %cst_105 = arith.constant 0.0749921352 : f32
    %306 = vector.broadcast %cst_105 : f32 to vector<16x1xf32>
    %307 = arith.mulf %306, %305 : vector<16x1xf32>
    %308 = vector.extract_strided_slice %262 {offsets = [240, 0], sizes = [16, 1], strides = [1, 1]} : vector<272x1xf32> to vector<16x1xf32>
    %cst_106 = arith.constant 3.785890e-02 : f32
    %309 = vector.broadcast %cst_106 : f32 to vector<16x1xf32>
    %310 = arith.mulf %309, %308 : vector<16x1xf32>
    %311 = vector.extract_strided_slice %262 {offsets = [256, 0], sizes = [16, 1], strides = [1, 1]} : vector<272x1xf32> to vector<16x1xf32>
    %cst_107 = arith.constant 0.0036764706 : f32
    %312 = vector.broadcast %cst_107 : f32 to vector<16x1xf32>
    %313 = arith.mulf %312, %311 : vector<16x1xf32>
    %314 = arith.addf %265, %268 : vector<16x1xf32>
    %315 = arith.addf %271, %274 : vector<16x1xf32>
    %316 = arith.addf %277, %280 : vector<16x1xf32>
    %317 = arith.addf %283, %286 : vector<16x1xf32>
    %318 = arith.addf %289, %292 : vector<16x1xf32>
    %319 = arith.addf %295, %298 : vector<16x1xf32>
    %320 = arith.addf %301, %304 : vector<16x1xf32>
    %321 = arith.addf %307, %310 : vector<16x1xf32>
    %322 = arith.addf %314, %315 : vector<16x1xf32>
    %323 = arith.addf %316, %317 : vector<16x1xf32>
    %324 = arith.addf %318, %319 : vector<16x1xf32>
    %325 = arith.addf %320, %321 : vector<16x1xf32>
    %326 = arith.addf %322, %323 : vector<16x1xf32>
    %327 = arith.addf %324, %325 : vector<16x1xf32>
    %328 = arith.addf %326, %327 : vector<16x1xf32>
    %329 = arith.addf %328, %313 : vector<16x1xf32>
    %330 = arith.mulf %329, %181 : vector<16x1xf32>
    %cst_108 = arith.constant 5.000000e-01 : f32
    %331 = vector.broadcast %cst_108 : f32 to vector<16x1xf32>
    %332 = arith.mulf %330, %331 : vector<16x1xf32>
    %333 = vector.extract_strided_slice %24 {offsets = [0, 3], sizes = [16, 1], strides = [1, 1]} : vector<16x4xf32> to vector<16x1xf32>
    %334 = arith.mulf %333, %332 : vector<16x1xf32>
    %335 = vector.extract_strided_slice %22 {offsets = [0, 3], sizes = [16, 1], strides = [1, 1]} : vector<16x4xf32> to vector<16x1xf32>
    %336 = arith.addf %334, %335 : vector<16x1xf32>
    %337 = vector.shape_cast %336 : vector<16x1xf32> to vector<16x1xf32>
    %338 = vector.broadcast %337 : vector<16x1xf32> to vector<16x128xf32>
    %c0_109 = arith.constant 0 : index
    %c0_110 = arith.constant 0 : index
    %339 = vector.load %arg4[%c0_109, %c0_110] : memref<16x128xf32, #tpu.memory_space<vmem>>, vector<16x128xf32>
    tpu.vector_store %arg4[%c0_109, %c0_110], %338 {strides = array<i32>} : memref<16x128xf32, #tpu.memory_space<vmem>>, vector<16x128xf32>,
    return
  }
  func.func @transform_0(%arg0: i32) -> (i32, i32) {
    %c0_i32 = arith.constant 0 : i32
    %c0_i32_0 = arith.constant 0 : i32
    return %arg0, %c0_i32 : i32, i32
  }
  func.func @transform_1(%arg0: i32) -> (i32, i32) {
    %c0_i32 = arith.constant 0 : i32
    %c0_i32_0 = arith.constant 0 : i32
    %c0_i32_1 = arith.constant 0 : i32
    return %c0_i32, %c0_i32_0 : i32, i32
  }
  func.func @transform_2(%arg0: i32) -> (i32, i32) {
    %c0_i32 = arith.constant 0 : i32
    %c0_i32_0 = arith.constant 0 : i32
    %c0_i32_1 = arith.constant 0 : i32
    return %c0_i32, %c0_i32_0 : i32, i32
  }
  func.func @transform_3(%arg0: i32) -> (i32, i32) {
    %c0_i32 = arith.constant 0 : i32
    %c0_i32_0 = arith.constant 0 : i32
    return %arg0, %c0_i32 : i32, i32
  }
}

</mosaic_0001>

<llo_original>
// kernel: forward.1
$region0: #{forward.1}
  #allocation0 [shape = 'u32[]', space=smem, size = 0x4, offset = 0x4, fixed_abs, tag = 'smem constant byte address 0x4 - core index']
  #allocation1 [shape = 'u32[144,128]{1,0:T(1,128)}', space=vmem, size = 0x12000, scoped, tag = 'internal scratch']
  %s0 = inlined_call_operand.vmem [shape: f32[16,8], index: 0, kind: input, shape index: {}]
  %s1 = inlined_call_operand.vmem [shape: f32[8,512], index: 1, kind: input, shape index: {}]
  %s2 = inlined_call_operand.hbm [shape: f32[640,128], index: 2, kind: input, shape index: {}]
  %s3 = inlined_call_operand.vmem [shape: f32[16,128], index: 3, kind: output, shape index: {}]
  %s4 = sld [smem:[#allocation0]]
  $region26: #{forward.1} parent=0
    _
  %s6 = ssub.s32 1, %s4
  %s7 = scalar_select 0, %s6, %s4
  $region1: #{forward.1} parent=0
    #allocation2 [shape = 'u8[327680]{0}', space=vmem, size = 0x50000, scoped, tag = 'input window, operand 2, single buffered']
    #allocation3 [shape = 's32[1]{0}', space=sflag, size = 0x4, scoped, tag = 'scoped memory for forward.1']
    %8 = vsyncpa [#allocation3], 0
    // Predicated region
    $region2: #{forward.1} parent=1 // pred_check
      _
    $region3: #{forward.1} parent=1 // pred_check_branch
      %10 = sbr.rel (0) target = $region5
    $region4: #{forward.1} parent=1 // pred_region
      _
    $region5: #{forward.1} parent=1 // pred_fallthru
      _
    // Predicated region
    $region6: #{forward.1} parent=1 // pred_check
      _
    $region7: #{forward.1} parent=1 // pred_check_branch
      %12 = sbr.rel (0) target = $region9
    $region8: #{forward.1} parent=1 // pred_region
      _
    $region9: #{forward.1} parent=1 // pred_fallthru
      _
    // Predicated region
    $region10: #{forward.1} parent=1 // pred_check
      _
    $region11: #{forward.1} parent=1 // pred_check_branch
      %14 = sbr.rel (0) target = $region13
    $region12: #{forward.1} parent=1 // pred_region
      %s16 = ssub.s32 10240, 10240
      %17 = vsyncadd [#allocation3], %s16
      %s18 = sshll.u32 [#allocation2], 4
      %s19 = int_to_ptr.vmem [resolvable:$true] %s18
      %24 = dma.hbm_to_vmem [thread:$0]  %s2, 10240, %s19, [#allocation3], 128, 128, 8
    $region13: #{forward.1} parent=1 // pred_fallthru
      _
    // Predicated region
    $region14: #{forward.1} parent=1 // pred_check
      _
    $region15: #{forward.1} parent=1 // pred_check_branch
      %26 = sbr.rel (0) target = $region17
    $region16: #{forward.1} parent=1 // pred_region
      %27 = dma.done [#allocation3], 10240
    $region17: #{forward.1} parent=1 // pred_fallthru
      _
    %v28 = vld [vmem:[%s0] sm:$0xff]
    %v29 = vld [vmem:[%s0 + $0x8] sm:$0xff]
    %v30 = vld [vmem:[%s1] sm:$0xff]
    %v31 = vld [vmem:[%s1 + $0x8] sm:$0xff]
    %v32 = vld [vmem:[%s1 + $0x10] sm:$0xff]
    %v33 = vld [vmem:[%s1 + $0x18] sm:$0xff]
    %vm34 = vcmask 64512
    %v36 = vsel %vm34, %v28, 0
    %v39 = vsel %vm34, %v29, 0
    %41 = vmatprep.subr.mxu0 %v31
    %42 = vmatpush1.msra.mxu0 %v30
    %43 = vmatprep.subr.mxu0 0.0
    %44 = vmatpush1.msra.mxu0 0.0
    %45 = vmatprep.subr.mxu0 0.0
    %46 = vmatpush1.msra.mxu0 0.0
    %47 = vmatprep.subr.mxu0 0.0
    %48 = vmatpush1.msra.mxu0 0.0
    %49 = vmatprep.subr.mxu0 0.0
    %50 = vmatpush1.msra.mxu0 0.0
    %51 = vmatprep.subr.mxu0 0.0
    %52 = vmatpush1.msra.mxu0 0.0
    %53 = vmatprep.subr.mxu0 0.0
    %54 = vmatpush1.msra.mxu0 0.0
    %55 = vmatprep.subr.mxu0 0.0
    %56 = vmatpush1.msra.mxu0 0.0
    %57 = vmatprep.subr.mxu0 0.0
    %58 = vmatpush1.msra.mxu0 0.0
    %59 = vmatprep.subr.mxu0 0.0
    %60 = vmatpush1.msra.mxu0 0.0
    %61 = vmatprep.subr.mxu0 0.0
    %62 = vmatpush1.msra.mxu0 0.0
    %63 = vmatprep.subr.mxu0 0.0
    %64 = vmatpush1.msra.mxu0 0.0
    %65 = vmatprep.subr.mxu0 0.0
    %66 = vmatpush1.msra.mxu0 0.0
    %67 = vmatprep.subr.mxu0 0.0
    %68 = vmatpush1.msra.mxu0 0.0
    %69 = vmatprep.subr.mxu0 0.0
    %70 = vmatpush1.msra.mxu0 0.0
    %71 = vmatprep.subr.mxu0 0.0
    %72 = vmatpush1.msra.mxu0 0.0
    %73 = vmatprep.subr.mxu0 0.0
    %74 = vmatpush1.msra.mxu0 0.0
    %75 = vmatprep.subr.mxu0 0.0
    %76 = vmatpush1.msra.mxu0 0.0
    %77 = vmatprep.subr.mxu0 0.0
    %78 = vmatpush1.msra.mxu0 0.0
    %79 = vmatprep.subr.mxu0 0.0
    %80 = vmatpush1.msra.mxu0 0.0
    %81 = vmatprep.subr.mxu0 0.0
    %82 = vmatpush1.msra.mxu0 0.0
    %83 = vmatprep.subr.mxu0 0.0
    %84 = vmatpush1.msra.mxu0 0.0
    %85 = vmatprep.subr.mxu0 0.0
    %86 = vmatpush1.msra.mxu0 0.0
    %87 = vmatprep.subr.mxu0 0.0
    %88 = vmatpush1.msra.mxu0 0.0
    %89 = vmatprep.subr.mxu0 0.0
    %90 = vmatpush1.msra.mxu0 0.0
    %91 = vmatprep.subr.mxu0 0.0
    %92 = vmatpush1.msra.mxu0 0.0
    %93 = vmatprep.subr.mxu0 0.0
    %94 = vmatpush1.msra.mxu0 0.0
    %95 = vmatprep.subr.mxu0 0.0
    %96 = vmatpush1.msra.mxu0 0.0
    %97 = vmatprep.subr.mxu0 0.0
    %98 = vmatpush1.msra.mxu0 0.0
    %99 = vmatprep.subr.mxu0 0.0
    %100 = vmatpush1.msra.mxu0 0.0
    %101 = vmatprep.subr.mxu0 0.0
    %102 = vmatpush1.msra.mxu0 0.0
    %103 = vmatprep.subr.mxu0 0.0
    %104 = vmatpush1.msra.mxu0 0.0
    %105 = vmatprep.mubr.f32.mxu0 0.0
    %106 = vmatmul.mubr.f32.gmra.mrb[0].mxu0 %v36
    %v107 = vpop.f32.mrb[0].mxu0
    %v108 = vadd.f32 0.0, %v107
    %v109 = vpop.f32.mrb[0].mxu0
    %v110 = vadd.f32 0.0, %v109
    %111 = vmatprep.mubr.f32.mxu0 0.0
    %112 = vmatmul.mubr.f32.gmra.mrb[0].mxu0 %v39
    %v113 = vpop.f32.mrb[0].mxu0
    %v114 = vadd.f32 0.0, %v113
    %v115 = vpop.f32.mrb[0].mxu0
    %v116 = vadd.f32 0.0, %v115
    %117 = vdwg.mxu0
    %118 = vmatprep.subr.mxu0 %v33
    %119 = vmatpush1.msra.mxu0 %v32
    %120 = vmatprep.subr.mxu0 0.0
    %121 = vmatpush1.msra.mxu0 0.0
    %122 = vmatprep.subr.mxu0 0.0
    %123 = vmatpush1.msra.mxu0 0.0
    %124 = vmatprep.subr.mxu0 0.0
    %125 = vmatpush1.msra.mxu0 0.0
    %126 = vmatprep.subr.mxu0 0.0
    %127 = vmatpush1.msra.mxu0 0.0
    %128 = vmatprep.subr.mxu0 0.0
    %129 = vmatpush1.msra.mxu0 0.0
    %130 = vmatprep.subr.mxu0 0.0
    %131 = vmatpush1.msra.mxu0 0.0
    %132 = vmatprep.subr.mxu0 0.0
    %133 = vmatpush1.msra.mxu0 0.0
    %134 = vmatprep.subr.mxu0 0.0
    %135 = vmatpush1.msra.mxu0 0.0
    %136 = vmatprep.subr.mxu0 0.0
    %137 = vmatpush1.msra.mxu0 0.0
    %138 = vmatprep.subr.mxu0 0.0
    %139 = vmatpush1.msra.mxu0 0.0
    %140 = vmatprep.subr.mxu0 0.0
    %141 = vmatpush1.msra.mxu0 0.0
    %142 = vmatprep.subr.mxu0 0.0
    %143 = vmatpush1.msra.mxu0 0.0
    %144 = vmatprep.subr.mxu0 0.0
    %145 = vmatpush1.msra.mxu0 0.0
    %146 = vmatprep.subr.mxu0 0.0
    %147 = vmatpush1.msra.mxu0 0.0
    %148 = vmatprep.subr.mxu0 0.0
    %149 = vmatpush1.msra.mxu0 0.0
    %150 = vmatprep.subr.mxu0 0.0
    %151 = vmatpush1.msra.mxu0 0.0
    %152 = vmatprep.subr.mxu0 0.0
    %153 = vmatpush1.msra.mxu0 0.0
    %154 = vmatprep.subr.mxu0 0.0
    %155 = vmatpush1.msra.mxu0 0.0
    %156 = vmatprep.subr.mxu0 0.0
    %157 = vmatpush1.msra.mxu0 0.0
    %158 = vmatprep.subr.mxu0 0.0
    %159 = vmatpush1.msra.mxu0 0.0
    %160 = vmatprep.subr.mxu0 0.0
    %161 = vmatpush1.msra.mxu0 0.0
    %162 = vmatprep.subr.mxu0 0.0
    %163 = vmatpush1.msra.mxu0 0.0
    %164 = vmatprep.subr.mxu0 0.0
    %165 = vmatpush1.msra.mxu0 0.0
    %166 = vmatprep.subr.mxu0 0.0
    %167 = vmatpush1.msra.mxu0 0.0
    %168 = vmatprep.subr.mxu0 0.0
    %169 = vmatpush1.msra.mxu0 0.0
    %170 = vmatprep.subr.mxu0 0.0
    %171 = vmatpush1.msra.mxu0 0.0
    %172 = vmatprep.subr.mxu0 0.0
    %173 = vmatpush1.msra.mxu0 0.0
    %174 = vmatprep.subr.mxu0 0.0
    %175 = vmatpush1.msra.mxu0 0.0
    %176 = vmatprep.subr.mxu0 0.0
    %177 = vmatpush1.msra.mxu0 0.0
    %178 = vmatprep.subr.mxu0 0.0
    %179 = vmatpush1.msra.mxu0 0.0
    %180 = vmatprep.subr.mxu0 0.0
    %181 = vmatpush1.msra.mxu0 0.0
    %182 = vmatprep.mubr.f32.mxu0 0.0
    %183 = vmatmul.mubr.f32.gmra.mrb[0].mxu0 %v36
    %v184 = vpop.f32.mrb[0].mxu0
    %v185 = vadd.f32 0.0, %v184
    %v186 = vpop.f32.mrb[0].mxu0
    %v187 = vadd.f32 0.0, %v186
    %188 = vmatprep.mubr.f32.mxu0 0.0
    %189 = vmatmul.mubr.f32.gmra.mrb[0].mxu0 %v39
    %v190 = vpop.f32.mrb[0].mxu0
    %v191 = vadd.f32 0.0, %v190
    %v192 = vpop.f32.mrb[0].mxu0
    %v193 = vadd.f32 0.0, %v192
    %194 = vdwg.mxu0
    %v195 = vmax.f32 %v185, 0.0
    %v196 = vmax.f32 %v191, 0.0
    %v197 = vld [vmem:[#allocation2 + $0x110] sm:$0xff]
    %v198 = vld [vmem:[#allocation2 + $0x118] sm:$0xff]
    %v199 = vld [vmem:[#allocation2 + $0x120] sm:$0xff]
    %v200 = vld [vmem:[#allocation2 + $0x128] sm:$0xff]
    %v201 = vld [vmem:[#allocation2 + $0x130] sm:$0xff]
    %v202 = vld [vmem:[#allocation2 + $0x138] sm:$0xff]
    %v203 = vld [vmem:[#allocation2 + $0x140] sm:$0xff]
    %v204 = vld [vmem:[#allocation2 + $0x148] sm:$0xff]
    %v205 = vld [vmem:[#allocation2 + $0x150] sm:$0xff]
    %v206 = vld [vmem:[#allocation2 + $0x158] sm:$0xff]
    %v207 = vld [vmem:[#allocation2 + $0x160] sm:$0xff]
    %v208 = vld [vmem:[#allocation2 + $0x168] sm:$0xff]
    %v209 = vld [vmem:[#allocation2 + $0x170] sm:$0xff]
    %v210 = vld [vmem:[#allocation2 + $0x178] sm:$0xff]
    %v211 = vld [vmem:[#allocation2 + $0x180] sm:$0xff]
    %v212 = vld [vmem:[#allocation2 + $0x188] sm:$0xff]
    %v213 = vld [vmem:[#allocation2 + $0x190] sm:$0x1]
    %v214 = vlaneseq
    %v215 = vshrl.u32 %v214, 7
    %v216 = vsub.s32 0, %v215
    %v217 = vrot.slane %v213, %v216
    %218 = vmatprep.subr.mxu0 0.0
    %219 = vmatpush1.msra.mxu0 %v197
    %220 = vmatprep.subr.mxu0 0.0
    %221 = vmatpush1.msra.mxu0 %v198
    %222 = vmatprep.subr.mxu0 0.0
    %223 = vmatpush1.msra.mxu0 %v199
    %224 = vmatprep.subr.mxu0 0.0
    %225 = vmatpush1.msra.mxu0 %v200
    %226 = vmatprep.subr.mxu0 0.0
    %227 = vmatpush1.msra.mxu0 %v201
    %228 = vmatprep.subr.mxu0 0.0
    %229 = vmatpush1.msra.mxu0 %v202
    %230 = vmatprep.subr.mxu0 0.0
    %231 = vmatpush1.msra.mxu0 %v203
    %232 = vmatprep.subr.mxu0 0.0
    %233 = vmatpush1.msra.mxu0 %v204
    %234 = vmatprep.subr.mxu0 0.0
    %235 = vmatpush1.msra.mxu0 %v205
    %236 = vmatprep.subr.mxu0 0.0
    %237 = vmatpush1.msra.mxu0 %v206
    %238 = vmatprep.subr.mxu0 0.0
    %239 = vmatpush1.msra.mxu0 %v207
    %240 = vmatprep.subr.mxu0 0.0
    %241 = vmatpush1.msra.mxu0 %v208
    %242 = vmatprep.subr.mxu0 0.0
    %243 = vmatpush1.msra.mxu0 %v209
    %244 = vmatprep.subr.mxu0 0.0
    %245 = vmatpush1.msra.mxu0 %v210
    %246 = vmatprep.subr.mxu0 0.0
    %247 = vmatpush1.msra.mxu0 %v211
    %248 = vmatprep.subr.mxu0 0.0
    %249 = vmatpush1.msra.mxu0 %v212
    %250 = vmatprep.subr.mxu0 0.0
    %251 = vmatpush1.msra.mxu0 0.0
    %252 = vmatprep.subr.mxu0 0.0
    %253 = vmatpush1.msra.mxu0 0.0
    %254 = vmatprep.subr.mxu0 0.0
    %255 = vmatpush1.msra.mxu0 0.0
    %256 = vmatprep.subr.mxu0 0.0
    %257 = vmatpush1.msra.mxu0 0.0
    %258 = vmatprep.subr.mxu0 0.0
    %259 = vmatpush1.msra.mxu0 0.0
    %260 = vmatprep.subr.mxu0 0.0
    %261 = vmatpush1.msra.mxu0 0.0
    %262 = vmatprep.subr.mxu0 0.0
    %263 = vmatpush1.msra.mxu0 0.0
    %264 = vmatprep.subr.mxu0 0.0
    %265 = vmatpush1.msra.mxu0 0.0
    %266 = vmatprep.subr.mxu0 0.0
    %267 = vmatpush1.msra.mxu0 0.0
    %268 = vmatprep.subr.mxu0 0.0
    %269 = vmatpush1.msra.mxu0 0.0
    %270 = vmatprep.subr.mxu0 0.0
    %271 = vmatpush1.msra.mxu0 0.0
    %272 = vmatprep.subr.mxu0 0.0
    %273 = vmatpush1.msra.mxu0 0.0
    %274 = vmatprep.subr.mxu0 0.0
    %275 = vmatpush1.msra.mxu0 0.0
    %276 = vmatprep.subr.mxu0 0.0
    %277 = vmatpush1.msra.mxu0 0.0
    %278 = vmatprep.subr.mxu0 0.0
    %279 = vmatpush1.msra.mxu0 0.0
    %280 = vmatprep.subr.mxu0 0.0
    %281 = vmatpush1.msra.mxu0 0.0
    %282 = vmatprep.mubr.f32.mxu0 0.0
    %283 = vmatmul.mubr.f32.gmra.mrb[0].mxu0 %v195
    %v284 = vpop.f32.mrb[0].mxu0
    %v285 = vadd.f32 %v217, %v284
    %v286 = vpop.f32.mrb[0].mxu0
    %287 = vmatprep.mubr.f32.mxu0 0.0
    %288 = vmatmul.mubr.f32.gmra.mrb[0].mxu0 %v196
    %v289 = vpop.f32.mrb[0].mxu0
    %v290 = vadd.f32 %v217, %v289
    %v291 = vpop.f32.mrb[0].mxu0
    %292 = vdwg.mxu0
    %v293 = vmax.f32 %v285, 0.0
    %v294 = vmax.f32 %v290, 0.0
    %v295 = vld [vmem:[#allocation2 + $0x198] sm:$0xff]
    %v296 = vld [vmem:[#allocation2 + $0x1a0] sm:$0xff]
    %v297 = vld [vmem:[#allocation2 + $0x1a8] sm:$0xff]
    %v298 = vld [vmem:[#allocation2 + $0x1b0] sm:$0xff]
    %v299 = vld [vmem:[#allocation2 + $0x1b8] sm:$0xff]
    %v300 = vld [vmem:[#allocation2 + $0x1c0] sm:$0xff]
    %v301 = vld [vmem:[#allocation2 + $0x1c8] sm:$0xff]
    %v302 = vld [vmem:[#allocation2 + $0x1d0] sm:$0xff]
    %v303 = vld [vmem:[#allocation2 + $0x1d8] sm:$0xff]
    %v304 = vld [vmem:[#allocation2 + $0x1e0] sm:$0xff]
    %v305 = vld [vmem:[#allocation2 + $0x1e8] sm:$0xff]
    %v306 = vld [vmem:[#allocation2 + $0x1f0] sm:$0xff]
    %v307 = vld [vmem:[#allocation2 + $0x1f8] sm:$0xff]
    %v308 = vld [vmem:[#allocation2 + $0x200] sm:$0xff]
    %v309 = vld [vmem:[#allocation2 + $0x208] sm:$0xff]
    %v310 = vld [vmem:[#allocation2 + $0x210] sm:$0xff]
    %v311 = vld [vmem:[#allocation2 + $0x218] sm:$0x1]
    %v312 = vlaneseq
    %v313 = vshrl.u32 %v312, 7
    %v314 = vsub.s32 0, %v313
    %v315 = vrot.slane %v311, %v314
    %316 = vmatprep.subr.mxu0 0.0
    %317 = vmatpush1.msra.mxu0 %v295
    %318 = vmatprep.subr.mxu0 0.0
    %319 = vmatpush1.msra.mxu0 %v296
    %320 = vmatprep.subr.mxu0 0.0
    %321 = vmatpush1.msra.mxu0 %v297
    %322 = vmatprep.subr.mxu0 0.0
    %323 = vmatpush1.msra.mxu0 %v298
    %324 = vmatprep.subr.mxu0 0.0
    %325 = vmatpush1.msra.mxu0 %v299
    %326 = vmatprep.subr.mxu0 0.0
    %327 = vmatpush1.msra.mxu0 %v300
    %328 = vmatprep.subr.mxu0 0.0
    %329 = vmatpush1.msra.mxu0 %v301
    %330 = vmatprep.subr.mxu0 0.0
    %331 = vmatpush1.msra.mxu0 %v302
    %332 = vmatprep.subr.mxu0 0.0
    %333 = vmatpush1.msra.mxu0 %v303
    %334 = vmatprep.subr.mxu0 0.0
    %335 = vmatpush1.msra.mxu0 %v304
    %336 = vmatprep.subr.mxu0 0.0
    %337 = vmatpush1.msra.mxu0 %v305
    %338 = vmatprep.subr.mxu0 0.0
    %339 = vmatpush1.msra.mxu0 %v306
    %340 = vmatprep.subr.mxu0 0.0
    %341 = vmatpush1.msra.mxu0 %v307
    %342 = vmatprep.subr.mxu0 0.0
    %343 = vmatpush1.msra.mxu0 %v308
    %344 = vmatprep.subr.mxu0 0.0
    %345 = vmatpush1.msra.mxu0 %v309
    %346 = vmatprep.subr.mxu0 0.0
    %347 = vmatpush1.msra.mxu0 %v310
    %348 = vmatprep.subr.mxu0 0.0
    %349 = vmatpush1.msra.mxu0 0.0
    %350 = vmatprep.subr.mxu0 0.0
    %351 = vmatpush1.msra.mxu0 0.0
    %352 = vmatprep.subr.mxu0 0.0
    %353 = vmatpush1.msra.mxu0 0.0
    %354 = vmatprep.subr.mxu0 0.0
    %355 = vmatpush1.msra.mxu0 0.0
    %356 = vmatprep.subr.mxu0 0.0
    %357 = vmatpush1.msra.mxu0 0.0
    %358 = vmatprep.subr.mxu0 0.0
    %359 = vmatpush1.msra.mxu0 0.0
    %360 = vmatprep.subr.mxu0 0.0
    %361 = vmatpush1.msra.mxu0 0.0
    %362 = vmatprep.subr.mxu0 0.0
    %363 = vmatpush1.msra.mxu0 0.0
    %364 = vmatprep.subr.mxu0 0.0
    %365 = vmatpush1.msra.mxu0 0.0
    %366 = vmatprep.subr.mxu0 0.0
    %367 = vmatpush1.msra.mxu0 0.0
    %368 = vmatprep.subr.mxu0 0.0
    %369 = vmatpush1.msra.mxu0 0.0
    %370 = vmatprep.subr.mxu0 0.0
    %371 = vmatpush1.msra.mxu0 0.0
    %372 = vmatprep.subr.mxu0 0.0
    %373 = vmatpush1.msra.mxu0 0.0
    %374 = vmatprep.subr.mxu0 0.0
    %375 = vmatpush1.msra.mxu0 0.0
    %376 = vmatprep.subr.mxu0 0.0
    %377 = vmatpush1.msra.mxu0 0.0
    %378 = vmatprep.subr.mxu0 0.0
    %379 = vmatpush1.msra.mxu0 0.0
    %380 = vmatprep.mubr.f32.mxu0 0.0
    %381 = vmatmul.mubr.f32.gmra.mrb[0].mxu0 %v293
    %v382 = vpop.f32.mrb[0].mxu0
    %v383 = vadd.f32 %v315, %v382
    %v384 = vpop.f32.mrb[0].mxu0
    %385 = vmatprep.mubr.f32.mxu0 0.0
    %386 = vmatmul.mubr.f32.gmra.mrb[0].mxu0 %v294
    %v387 = vpop.f32.mrb[0].mxu0
    %v388 = vadd.f32 %v315, %v387
    %v389 = vpop.f32.mrb[0].mxu0
    %390 = vdwg.mxu0
    %v391 = vmul.f32 %v383, 1.442695
    %v392 = vpow.pop %v391
    %v393 = vmul.f32 %v388, 1.442695
    %v394 = vpow.pop %v393
    %v395 = vadd.f32 %v108, %v110
    %v396 = vadd.f32 %v114, %v116
    %v397 = vmul.f32 %v108, 0.9903926
    %v398 = vmul.f32 %v114, 0.9903926
    %v399 = vadd.f32 %v397, %v110
    %v400 = vadd.f32 %v398, %v116
    %v401 = vmul.f32 %v108, 0.96193975
    %v402 = vmul.f32 %v114, 0.96193975
    %v403 = vadd.f32 %v401, %v110
    %v404 = vadd.f32 %v402, %v116
    %v405 = vmul.f32 %v108, 0.91573477
    %v406 = vmul.f32 %v114, 0.91573477
    %v407 = vadd.f32 %v405, %v110
    %v408 = vadd.f32 %v406, %v116
    %v409 = vmul.f32 %v108, 0.8535534
    %v410 = vmul.f32 %v114, 0.8535534
    %v411 = vadd.f32 %v409, %v110
    %v412 = vadd.f32 %v410, %v116
    %v413 = vmul.f32 %v108, 0.7777851
    %v414 = vmul.f32 %v114, 0.7777851
    %v415 = vadd.f32 %v413, %v110
    %v416 = vadd.f32 %v414, %v116
    %v417 = vmul.f32 %v108, 0.6913417
    %v418 = vmul.f32 %v114, 0.6913417
    %v419 = vadd.f32 %v417, %v110
    %v420 = vadd.f32 %v418, %v116
    %v421 = vmul.f32 %v108, 0.59754515
    %v422 = vmul.f32 %v114, 0.59754515
    %v423 = vadd.f32 %v421, %v110
    %v424 = vadd.f32 %v422, %v116
    %v425 = vmul.f32 %v108, 0.5
    %v426 = vmul.f32 %v114, 0.5
    %v427 = vadd.f32 %v425, %v110
    %v428 = vadd.f32 %v426, %v116
    %v429 = vmul.f32 %v108, 0.40245485
    %v430 = vmul.f32 %v114, 0.40245485
    %v431 = vadd.f32 %v429, %v110
    %v432 = vadd.f32 %v430, %v116
    %v433 = vmul.f32 %v108, 0.3086583
    %v434 = vmul.f32 %v114, 0.3086583
    %v435 = vadd.f32 %v433, %v110
    %v436 = vadd.f32 %v434, %v116
    %v437 = vmul.f32 %v108, 0.22221488
    %v438 = vmul.f32 %v114, 0.22221488
    %v439 = vadd.f32 %v437, %v110
    %v440 = vadd.f32 %v438, %v116
    %v441 = vmul.f32 %v108, 0.14644662
    %v442 = vmul.f32 %v114, 0.14644662
    %v443 = vadd.f32 %v441, %v110
    %v444 = vadd.f32 %v442, %v116
    %v445 = vmul.f32 %v108, 0.0842652
    %v446 = vmul.f32 %v114, 0.0842652
    %v447 = vadd.f32 %v445, %v110
    %v448 = vadd.f32 %v446, %v116
    %v449 = vmul.f32 %v108, 0.038060248
    %v450 = vmul.f32 %v114, 0.038060248
    %v451 = vadd.f32 %v449, %v110
    %v452 = vadd.f32 %v450, %v116
    %v453 = vmul.f32 %v108, 0.009607375
    %v454 = vmul.f32 %v114, 0.009607375
    %v455 = vadd.f32 %v453, %v110
    %v456 = vadd.f32 %v454, %v116
    %v457 = vmul.f32 %v108, 0.0
    %v458 = vmul.f32 %v114, 0.0
    %v459 = vadd.f32 %v457, %v110
    %v460 = vadd.f32 %v458, %v116
    %v461 = vmax.f32 %v395, 0.0
    %v462 = vmax.f32 %v396, 0.0
    %v463 = vmax.f32 %v399, 0.0
    %v464 = vmax.f32 %v400, 0.0
    %v465 = vmax.f32 %v403, 0.0
    %v466 = vmax.f32 %v404, 0.0
    %v467 = vmax.f32 %v407, 0.0
    %v468 = vmax.f32 %v408, 0.0
    %v469 = vmax.f32 %v411, 0.0
    %v470 = vmax.f32 %v412, 0.0
    %v471 = vmax.f32 %v415, 0.0
    %v472 = vmax.f32 %v416, 0.0
    %v473 = vmax.f32 %v419, 0.0
    %v474 = vmax.f32 %v420, 0.0
    %v475 = vmax.f32 %v423, 0.0
    %v476 = vmax.f32 %v424, 0.0
    %v477 = vmax.f32 %v427, 0.0
    %v478 = vmax.f32 %v428, 0.0
    %v479 = vmax.f32 %v431, 0.0
    %v480 = vmax.f32 %v432, 0.0
    %v481 = vmax.f32 %v435, 0.0
    %v482 = vmax.f32 %v436, 0.0
    %v483 = vmax.f32 %v439, 0.0
    %v484 = vmax.f32 %v440, 0.0
    %v485 = vmax.f32 %v443, 0.0
    %v486 = vmax.f32 %v444, 0.0
    %v487 = vmax.f32 %v447, 0.0
    %v488 = vmax.f32 %v448, 0.0
    %v489 = vmax.f32 %v451, 0.0
    %v490 = vmax.f32 %v452, 0.0
    %v491 = vmax.f32 %v455, 0.0
    %v492 = vmax.f32 %v456, 0.0
    %v493 = vmax.f32 %v459, 0.0
    %v494 = vmax.f32 %v460, 0.0
    %v495 = vld [vmem:[#allocation2] sm:$0xff]
    %v496 = vld [vmem:[#allocation2 + $0x8] sm:$0xff]
    %v497 = vld [vmem:[#allocation2 + $0x10] sm:$0xff]
    %v498 = vld [vmem:[#allocation2 + $0x18] sm:$0xff]
    %v499 = vld [vmem:[#allocation2 + $0x20] sm:$0xff]
    %v500 = vld [vmem:[#allocation2 + $0x28] sm:$0xff]
    %v501 = vld [vmem:[#allocation2 + $0x30] sm:$0xff]
    %v502 = vld [vmem:[#allocation2 + $0x38] sm:$0xff]
    %v503 = vld [vmem:[#allocation2 + $0x40] sm:$0xff]
    %v504 = vld [vmem:[#allocation2 + $0x48] sm:$0xff]
    %v505 = vld [vmem:[#allocation2 + $0x50] sm:$0xff]
    %v506 = vld [vmem:[#allocation2 + $0x58] sm:$0xff]
    %v507 = vld [vmem:[#allocation2 + $0x60] sm:$0xff]
    %v508 = vld [vmem:[#allocation2 + $0x68] sm:$0xff]
    %v509 = vld [vmem:[#allocation2 + $0x70] sm:$0xff]
    %v510 = vld [vmem:[#allocation2 + $0x78] sm:$0xff]
    %v511 = vld [vmem:[#allocation2 + $0x80] sm:$0x1]
    %v512 = vlaneseq
    %v513 = vshrl.u32 %v512, 7
    %v514 = vsub.s32 0, %v513
    %v515 = vrot.slane %v511, %v514
    %516 = vmatprep.subr.mxu0 0.0
    %517 = vmatpush1.msra.mxu0 %v495
    %518 = vmatprep.subr.mxu0 0.0
    %519 = vmatpush1.msra.mxu0 %v496
    %520 = vmatprep.subr.mxu0 0.0
    %521 = vmatpush1.msra.mxu0 %v497
    %522 = vmatprep.subr.mxu0 0.0
    %523 = vmatpush1.msra.mxu0 %v498
    %524 = vmatprep.subr.mxu0 0.0
    %525 = vmatpush1.msra.mxu0 %v499
    %526 = vmatprep.subr.mxu0 0.0
    %527 = vmatpush1.msra.mxu0 %v500
    %528 = vmatprep.subr.mxu0 0.0
    %529 = vmatpush1.msra.mxu0 %v501
    %530 = vmatprep.subr.mxu0 0.0
    %531 = vmatpush1.msra.mxu0 %v502
    %532 = vmatprep.subr.mxu0 0.0
    %533 = vmatpush1.msra.mxu0 %v503
    %534 = vmatprep.subr.mxu0 0.0
    %535 = vmatpush1.msra.mxu0 %v504
    %536 = vmatprep.subr.mxu0 0.0
    %537 = vmatpush1.msra.mxu0 %v505
    %538 = vmatprep.subr.mxu0 0.0
    %539 = vmatpush1.msra.mxu0 %v506
    %540 = vmatprep.subr.mxu0 0.0
    %541 = vmatpush1.msra.mxu0 %v507
    %542 = vmatprep.subr.mxu0 0.0
    %543 = vmatpush1.msra.mxu0 %v508
    %544 = vmatprep.subr.mxu0 0.0
    %545 = vmatpush1.msra.mxu0 %v509
    %546 = vmatprep.subr.mxu0 0.0
    %547 = vmatpush1.msra.mxu0 %v510
    %548 = vmatprep.subr.mxu0 0.0
    %549 = vmatpush1.msra.mxu0 0.0
    %550 = vmatprep.subr.mxu0 0.0
    %551 = vmatpush1.msra.mxu0 0.0
    %552 = vmatprep.subr.mxu0 0.0
    %553 = vmatpush1.msra.mxu0 0.0
    %554 = vmatprep.subr.mxu0 0.0
    %555 = vmatpush1.msra.mxu0 0.0
    %556 = vmatprep.subr.mxu0 0.0
    %557 = vmatpush1.msra.mxu0 0.0
    %558 = vmatprep.subr.mxu0 0.0
    %559 = vmatpush1.msra.mxu0 0.0
    %560 = vmatprep.subr.mxu0 0.0
    %561 = vmatpush1.msra.mxu0 0.0
    %562 = vmatprep.subr.mxu0 0.0
    %563 = vmatpush1.msra.mxu0 0.0
    %564 = vmatprep.subr.mxu0 0.0
    %565 = vmatpush1.msra.mxu0 0.0
    %566 = vmatprep.subr.mxu0 0.0
    %567 = vmatpush1.msra.mxu0 0.0
    %568 = vmatprep.subr.mxu0 0.0
    %569 = vmatpush1.msra.mxu0 0.0
    %570 = vmatprep.subr.mxu0 0.0
    %571 = vmatpush1.msra.mxu0 0.0
    %572 = vmatprep.subr.mxu0 0.0
    %573 = vmatpush1.msra.mxu0 0.0
    %574 = vmatprep.subr.mxu0 0.0
    %575 = vmatpush1.msra.mxu0 0.0
    %576 = vmatprep.subr.mxu0 0.0
    %577 = vmatpush1.msra.mxu0 0.0
    %578 = vmatprep.subr.mxu0 0.0
    %579 = vmatpush1.msra.mxu0 0.0
    %580 = vmatprep.mubr.f32.mxu0 0.0
    %581 = vmatmul.mubr.f32.gmra.mrb[0].mxu0 %v461
    %v582 = vpop.f32.mrb[0].mxu0
    %v583 = vadd.f32 %v515, %v582
    %v584 = vpop.f32.mrb[0].mxu0
    %585 = vmatprep.mubr.f32.mxu0 0.0
    %586 = vmatmul.mubr.f32.gmra.mrb[0].mxu0 %v462
    %v587 = vpop.f32.mrb[0].mxu0
    %v588 = vadd.f32 %v515, %v587
    %v589 = vpop.f32.mrb[0].mxu0
    %590 = vmatprep.mubr.f32.mxu0 0.0
    %591 = vmatmul.mubr.f32.gmra.mrb[0].mxu0 %v463
    %v592 = vpop.f32.mrb[0].mxu0
    %v593 = vadd.f32 %v515, %v592
    %v594 = vpop.f32.mrb[0].mxu0
    %595 = vmatprep.mubr.f32.mxu0 0.0
    %596 = vmatmul.mubr.f32.gmra.mrb[0].mxu0 %v464
    %v597 = vpop.f32.mrb[0].mxu0
    %v598 = vadd.f32 %v515, %v597
    %v599 = vpop.f32.mrb[0].mxu0
    %600 = vmatprep.mubr.f32.mxu0 0.0
    %601 = vmatmul.mubr.f32.gmra.mrb[0].mxu0 %v465
    %v602 = vpop.f32.mrb[0].mxu0
    %v603 = vadd.f32 %v515, %v602
    %v604 = vpop.f32.mrb[0].mxu0
    %605 = vmatprep.mubr.f32.mxu0 0.0
    %606 = vmatmul.mubr.f32.gmra.mrb[0].mxu0 %v466
    %v607 = vpop.f32.mrb[0].mxu0
    %v608 = vadd.f32 %v515, %v607
    %v609 = vpop.f32.mrb[0].mxu0
    %610 = vmatprep.mubr.f32.mxu0 0.0
    %611 = vmatmul.mubr.f32.gmra.mrb[0].mxu0 %v467
    %v612 = vpop.f32.mrb[0].mxu0
    %v613 = vadd.f32 %v515, %v612
    %v614 = vpop.f32.mrb[0].mxu0
    %615 = vmatprep.mubr.f32.mxu0 0.0
    %616 = vmatmul.mubr.f32.gmra.mrb[0].mxu0 %v468
    %v617 = vpop.f32.mrb[0].mxu0
    %v618 = vadd.f32 %v515, %v617
    %v619 = vpop.f32.mrb[0].mxu0
    %620 = vmatprep.mubr.f32.mxu0 0.0
    %621 = vmatmul.mubr.f32.gmra.mrb[0].mxu0 %v469
    %v622 = vpop.f32.mrb[0].mxu0
    %v623 = vadd.f32 %v515, %v622
    %v624 = vpop.f32.mrb[0].mxu0
    %625 = vmatprep.mubr.f32.mxu0 0.0
    %626 = vmatmul.mubr.f32.gmra.mrb[0].mxu0 %v470
    %v627 = vpop.f32.mrb[0].mxu0
    %v628 = vadd.f32 %v515, %v627
    %v629 = vpop.f32.mrb[0].mxu0
    %630 = vmatprep.mubr.f32.mxu0 0.0
    %631 = vmatmul.mubr.f32.gmra.mrb[0].mxu0 %v471
    %v632 = vpop.f32.mrb[0].mxu0
    %v633 = vadd.f32 %v515, %v632
    %v634 = vpop.f32.mrb[0].mxu0
    %635 = vmatprep.mubr.f32.mxu0 0.0
    %636 = vmatmul.mubr.f32.gmra.mrb[0].mxu0 %v472
    %v637 = vpop.f32.mrb[0].mxu0
    %v638 = vadd.f32 %v515, %v637
    %v639 = vpop.f32.mrb[0].mxu0
    %640 = vmatprep.mubr.f32.mxu0 0.0
    %641 = vmatmul.mubr.f32.gmra.mrb[0].mxu0 %v473
    %v642 = vpop.f32.mrb[0].mxu0
    %v643 = vadd.f32 %v515, %v642
    %v644 = vpop.f32.mrb[0].mxu0
    %645 = vmatprep.mubr.f32.mxu0 0.0
    %646 = vmatmul.mubr.f32.gmra.mrb[0].mxu0 %v474
    %v647 = vpop.f32.mrb[0].mxu0
    %v648 = vadd.f32 %v515, %v647
    %v649 = vpop.f32.mrb[0].mxu0
    %650 = vmatprep.mubr.f32.mxu0 0.0
    %651 = vmatmul.mubr.f32.gmra.mrb[0].mxu0 %v475
    %v652 = vpop.f32.mrb[0].mxu0
    %v653 = vadd.f32 %v515, %v652
    %v654 = vpop.f32.mrb[0].mxu0
    %655 = vmatprep.mubr.f32.mxu0 0.0
    %656 = vmatmul.mubr.f32.gmra.mrb[0].mxu0 %v476
    %v657 = vpop.f32.mrb[0].mxu0
    %v658 = vadd.f32 %v515, %v657
    %v659 = vpop.f32.mrb[0].mxu0
    %660 = vmatprep.mubr.f32.mxu0 0.0
    %661 = vmatmul.mubr.f32.gmra.mrb[0].mxu0 %v477
    %v662 = vpop.f32.mrb[0].mxu0
    %v663 = vadd.f32 %v515, %v662
    %v664 = vpop.f32.mrb[0].mxu0
    %665 = vmatprep.mubr.f32.mxu0 0.0
    %666 = vmatmul.mubr.f32.gmra.mrb[0].mxu0 %v478
    %v667 = vpop.f32.mrb[0].mxu0
    %v668 = vadd.f32 %v515, %v667
    %v669 = vpop.f32.mrb[0].mxu0
    %670 = vmatprep.mubr.f32.mxu0 0.0
    %671 = vmatmul.mubr.f32.gmra.mrb[0].mxu0 %v479
    %v672 = vpop.f32.mrb[0].mxu0
    %v673 = vadd.f32 %v515, %v672
    %v674 = vpop.f32.mrb[0].mxu0
    %675 = vmatprep.mubr.f32.mxu0 0.0
    %676 = vmatmul.mubr.f32.gmra.mrb[0].mxu0 %v480
    %v677 = vpop.f32.mrb[0].mxu0
    %v678 = vadd.f32 %v515, %v677
    %v679 = vpop.f32.mrb[0].mxu0
    %680 = vmatprep.mubr.f32.mxu0 0.0
    %681 = vmatmul.mubr.f32.gmra.mrb[0].mxu0 %v481
    %v682 = vpop.f32.mrb[0].mxu0
    %v683 = vadd.f32 %v515, %v682
    %v684 = vpop.f32.mrb[0].mxu0
    %685 = vmatprep.mubr.f32.mxu0 0.0
    %686 = vmatmul.mubr.f32.gmra.mrb[0].mxu0 %v482
    %v687 = vpop.f32.mrb[0].mxu0
    %v688 = vadd.f32 %v515, %v687
    %v689 = vpop.f32.mrb[0].mxu0
    %690 = vmatprep.mubr.f32.mxu0 0.0
    %691 = vmatmul.mubr.f32.gmra.mrb[0].mxu0 %v483
    %v692 = vpop.f32.mrb[0].mxu0
    %v693 = vadd.f32 %v515, %v692
    %v694 = vpop.f32.mrb[0].mxu0
    %695 = vmatprep.mubr.f32.mxu0 0.0
    %696 = vmatmul.mubr.f32.gmra.mrb[0].mxu0 %v484
    %v697 = vpop.f32.mrb[0].mxu0
    %v698 = vadd.f32 %v515, %v697
    %v699 = vpop.f32.mrb[0].mxu0
    %700 = vmatprep.mubr.f32.mxu0 0.0
    %701 = vmatmul.mubr.f32.gmra.mrb[0].mxu0 %v485
    %v702 = vpop.f32.mrb[0].mxu0
    %v703 = vadd.f32 %v515, %v702
    %v704 = vpop.f32.mrb[0].mxu0
    %705 = vmatprep.mubr.f32.mxu0 0.0
    %706 = vmatmul.mubr.f32.gmra.mrb[0].mxu0 %v486
    %v707 = vpop.f32.mrb[0].mxu0
    %v708 = vadd.f32 %v515, %v707
    %v709 = vpop.f32.mrb[0].mxu0
    %710 = vmatprep.mubr.f32.mxu0 0.0
    %711 = vmatmul.mubr.f32.gmra.mrb[0].mxu0 %v487
    %v712 = vpop.f32.mrb[0].mxu0
    %v713 = vadd.f32 %v515, %v712
    %v714 = vpop.f32.mrb[0].mxu0
    %715 = vmatprep.mubr.f32.mxu0 0.0
    %716 = vmatmul.mubr.f32.gmra.mrb[0].mxu0 %v488
    %v717 = vpop.f32.mrb[0].mxu0
    %v718 = vadd.f32 %v515, %v717
    %v719 = vpop.f32.mrb[0].mxu0
    %720 = vmatprep.mubr.f32.mxu0 0.0
    %721 = vmatmul.mubr.f32.gmra.mrb[0].mxu0 %v489
    %v722 = vpop.f32.mrb[0].mxu0
    %v723 = vadd.f32 %v515, %v722
    %v724 = vpop.f32.mrb[0].mxu0
    %725 = vmatprep.mubr.f32.mxu0 0.0
    %726 = vmatmul.mubr.f32.gmra.mrb[0].mxu0 %v490
    %v727 = vpop.f32.mrb[0].mxu0
    %v728 = vadd.f32 %v515, %v727
    %v729 = vpop.f32.mrb[0].mxu0
    %730 = vmatprep.mubr.f32.mxu0 0.0
    %731 = vmatmul.mubr.f32.gmra.mrb[0].mxu0 %v491
    %v732 = vpop.f32.mrb[0].mxu0
    %v733 = vadd.f32 %v515, %v732
    %v734 = vpop.f32.mrb[0].mxu0
    %735 = vmatprep.mubr.f32.mxu0 0.0
    %736 = vmatmul.mubr.f32.gmra.mrb[0].mxu0 %v492
    %v737 = vpop.f32.mrb[0].mxu0
    %v738 = vadd.f32 %v515, %v737
    %v739 = vpop.f32.mrb[0].mxu0
    %740 = vmatprep.mubr.f32.mxu0 0.0
    %741 = vmatmul.mubr.f32.gmra.mrb[0].mxu0 %v493
    %v742 = vpop.f32.mrb[0].mxu0
    %v743 = vadd.f32 %v515, %v742
    %v744 = vpop.f32.mrb[0].mxu0
    %745 = vmatprep.mubr.f32.mxu0 0.0
    %746 = vmatmul.mubr.f32.gmra.mrb[0].mxu0 %v494
    %v747 = vpop.f32.mrb[0].mxu0
    %v748 = vadd.f32 %v515, %v747
    %v749 = vpop.f32.mrb[0].mxu0
    %750 = vdwg.mxu0
    %v751 = vmax.f32 %v583, 0.0
    %v752 = vmax.f32 %v588, 0.0
    %v753 = vmax.f32 %v593, 0.0
    %v754 = vmax.f32 %v598, 0.0
    %v755 = vmax.f32 %v603, 0.0
    %v756 = vmax.f32 %v608, 0.0
    %v757 = vmax.f32 %v613, 0.0
    %v758 = vmax.f32 %v618, 0.0
    %v759 = vmax.f32 %v623, 0.0
    %v760 = vmax.f32 %v628, 0.0
    %v761 = vmax.f32 %v633, 0.0
    %v762 = vmax.f32 %v638, 0.0
    %v763 = vmax.f32 %v643, 0.0
    %v764 = vmax.f32 %v648, 0.0
    %v765 = vmax.f32 %v653, 0.0
    %v766 = vmax.f32 %v658, 0.0
    %v767 = vmax.f32 %v663, 0.0
    %v768 = vmax.f32 %v668, 0.0
    %v769 = vmax.f32 %v673, 0.0
    %v770 = vmax.f32 %v678, 0.0
    %v771 = vmax.f32 %v683, 0.0
    %v772 = vmax.f32 %v688, 0.0
    %v773 = vmax.f32 %v693, 0.0
    %v774 = vmax.f32 %v698, 0.0
    %v775 = vmax.f32 %v703, 0.0
    %v776 = vmax.f32 %v708, 0.0
    %v777 = vmax.f32 %v713, 0.0
    %v778 = vmax.f32 %v718, 0.0
    %v779 = vmax.f32 %v723, 0.0
    %v780 = vmax.f32 %v728, 0.0
    %v781 = vmax.f32 %v733, 0.0
    %v782 = vmax.f32 %v738, 0.0
    %v783 = vmax.f32 %v743, 0.0
    %v784 = vmax.f32 %v748, 0.0
    %v785 = vld [vmem:[#allocation2 + $0x88] sm:$0xff]
    %v786 = vld [vmem:[#allocation2 + $0x90] sm:$0xff]
    %v787 = vld [vmem:[#allocation2 + $0x98] sm:$0xff]
    %v788 = vld [vmem:[#allocation2 + $0xa0] sm:$0xff]
    %v789 = vld [vmem:[#allocation2 + $0xa8] sm:$0xff]
    %v790 = vld [vmem:[#allocation2 + $0xb0] sm:$0xff]
    %v791 = vld [vmem:[#allocation2 + $0xb8] sm:$0xff]
    %v792 = vld [vmem:[#allocation2 + $0xc0] sm:$0xff]
    %v793 = vld [vmem:[#allocation2 + $0xc8] sm:$0xff]
    %v794 = vld [vmem:[#allocation2 + $0xd0] sm:$0xff]
    %v795 = vld [vmem:[#allocation2 + $0xd8] sm:$0xff]
    %v796 = vld [vmem:[#allocation2 + $0xe0] sm:$0xff]
    %v797 = vld [vmem:[#allocation2 + $0xe8] sm:$0xff]
    %v798 = vld [vmem:[#allocation2 + $0xf0] sm:$0xff]
    %v799 = vld [vmem:[#allocation2 + $0xf8] sm:$0xff]
    %v800 = vld [vmem:[#allocation2 + $0x100] sm:$0xff]
    %v801 = vld [vmem:[#allocation2 + $0x108] sm:$0x1]
    %v802 = vlaneseq
    %v803 = vshrl.u32 %v802, 7
    %v804 = vsub.s32 0, %v803
    %v805 = vrot.slane %v801, %v804
    %806 = vmatprep.subr.mxu0 0.0
    %807 = vmatpush1.msra.mxu0 %v785
    %808 = vmatprep.subr.mxu0 0.0
    %809 = vmatpush1.msra.mxu0 %v786
    %810 = vmatprep.subr.mxu0 0.0
    %811 = vmatpush1.msra.mxu0 %v787
    %812 = vmatprep.subr.mxu0 0.0
    %813 = vmatpush1.msra.mxu0 %v788
    %814 = vmatprep.subr.mxu0 0.0
    %815 = vmatpush1.msra.mxu0 %v789
    %816 = vmatprep.subr.mxu0 0.0
    %817 = vmatpush1.msra.mxu0 %v790
    %818 = vmatprep.subr.mxu0 0.0
    %819 = vmatpush1.msra.mxu0 %v791
    %820 = vmatprep.subr.mxu0 0.0
    %821 = vmatpush1.msra.mxu0 %v792
    %822 = vmatprep.subr.mxu0 0.0
    %823 = vmatpush1.msra.mxu0 %v793
    %824 = vmatprep.subr.mxu0 0.0
    %825 = vmatpush1.msra.mxu0 %v794
    %826 = vmatprep.subr.mxu0 0.0
    %827 = vmatpush1.msra.mxu0 %v795
    %828 = vmatprep.subr.mxu0 0.0
    %829 = vmatpush1.msra.mxu0 %v796
    %830 = vmatprep.subr.mxu0 0.0
    %831 = vmatpush1.msra.mxu0 %v797
    %832 = vmatprep.subr.mxu0 0.0
    %833 = vmatpush1.msra.mxu0 %v798
    %834 = vmatprep.subr.mxu0 0.0
    %835 = vmatpush1.msra.mxu0 %v799
    %836 = vmatprep.subr.mxu0 0.0
    %837 = vmatpush1.msra.mxu0 %v800
    %838 = vmatprep.subr.mxu0 0.0
    %839 = vmatpush1.msra.mxu0 0.0
    %840 = vmatprep.subr.mxu0 0.0
    %841 = vmatpush1.msra.mxu0 0.0
    %842 = vmatprep.subr.mxu0 0.0
    %843 = vmatpush1.msra.mxu0 0.0
    %844 = vmatprep.subr.mxu0 0.0
    %845 = vmatpush1.msra.mxu0 0.0
    %846 = vmatprep.subr.mxu0 0.0
    %847 = vmatpush1.msra.mxu0 0.0
    %848 = vmatprep.subr.mxu0 0.0
    %849 = vmatpush1.msra.mxu0 0.0
    %850 = vmatprep.subr.mxu0 0.0
    %851 = vmatpush1.msra.mxu0 0.0
    %852 = vmatprep.subr.mxu0 0.0
    %853 = vmatpush1.msra.mxu0 0.0
    %854 = vmatprep.subr.mxu0 0.0
    %855 = vmatpush1.msra.mxu0 0.0
    %856 = vmatprep.subr.mxu0 0.0
    %857 = vmatpush1.msra.mxu0 0.0
    %858 = vmatprep.subr.mxu0 0.0
    %859 = vmatpush1.msra.mxu0 0.0
    %860 = vmatprep.subr.mxu0 0.0
    %861 = vmatpush1.msra.mxu0 0.0
    %862 = vmatprep.subr.mxu0 0.0
    %863 = vmatpush1.msra.mxu0 0.0
    %864 = vmatprep.subr.mxu0 0.0
    %865 = vmatpush1.msra.mxu0 0.0
    %866 = vmatprep.subr.mxu0 0.0
    %867 = vmatpush1.msra.mxu0 0.0
    %868 = vmatprep.subr.mxu0 0.0
    %869 = vmatpush1.msra.mxu0 0.0
    %870 = vmatprep.mubr.f32.mxu0 0.0
    %871 = vmatmul.mubr.f32.gmra.mrb[0].mxu0 %v751
    %v872 = vpop.f32.mrb[0].mxu0
    %v873 = vadd.f32 %v805, %v872
    %v874 = vpop.f32.mrb[0].mxu0
    %875 = vmatprep.mubr.f32.mxu0 0.0
    %876 = vmatmul.mubr.f32.gmra.mrb[0].mxu0 %v752
    %v877 = vpop.f32.mrb[0].mxu0
    %v878 = vadd.f32 %v805, %v877
    %v879 = vpop.f32.mrb[0].mxu0
    %880 = vmatprep.mubr.f32.mxu0 0.0
    %881 = vmatmul.mubr.f32.gmra.mrb[0].mxu0 %v753
    %v882 = vpop.f32.mrb[0].mxu0
    %v883 = vadd.f32 %v805, %v882
    %v884 = vpop.f32.mrb[0].mxu0
    %885 = vmatprep.mubr.f32.mxu0 0.0
    %886 = vmatmul.mubr.f32.gmra.mrb[0].mxu0 %v754
    %v887 = vpop.f32.mrb[0].mxu0
    %v888 = vadd.f32 %v805, %v887
    %v889 = vpop.f32.mrb[0].mxu0
    %890 = vmatprep.mubr.f32.mxu0 0.0
    %891 = vmatmul.mubr.f32.gmra.mrb[0].mxu0 %v755
    %v892 = vpop.f32.mrb[0].mxu0
    %v893 = vadd.f32 %v805, %v892
    %v894 = vpop.f32.mrb[0].mxu0
    %895 = vmatprep.mubr.f32.mxu0 0.0
    %896 = vmatmul.mubr.f32.gmra.mrb[0].mxu0 %v756
    %v897 = vpop.f32.mrb[0].mxu0
    %v898 = vadd.f32 %v805, %v897
    %v899 = vpop.f32.mrb[0].mxu0
    %900 = vmatprep.mubr.f32.mxu0 0.0
    %901 = vmatmul.mubr.f32.gmra.mrb[0].mxu0 %v757
    %v902 = vpop.f32.mrb[0].mxu0
    %v903 = vadd.f32 %v805, %v902
    %v904 = vpop.f32.mrb[0].mxu0
    %905 = vmatprep.mubr.f32.mxu0 0.0
    %906 = vmatmul.mubr.f32.gmra.mrb[0].mxu0 %v758
    %v907 = vpop.f32.mrb[0].mxu0
    %v908 = vadd.f32 %v805, %v907
    %v909 = vpop.f32.mrb[0].mxu0
    %910 = vmatprep.mubr.f32.mxu0 0.0
    %911 = vmatmul.mubr.f32.gmra.mrb[0].mxu0 %v759
    %v912 = vpop.f32.mrb[0].mxu0
    %v913 = vadd.f32 %v805, %v912
    %v914 = vpop.f32.mrb[0].mxu0
    %915 = vmatprep.mubr.f32.mxu0 0.0
    %916 = vmatmul.mubr.f32.gmra.mrb[0].mxu0 %v760
    %v917 = vpop.f32.mrb[0].mxu0
    %v918 = vadd.f32 %v805, %v917
    %v919 = vpop.f32.mrb[0].mxu0
    %920 = vmatprep.mubr.f32.mxu0 0.0
    %921 = vmatmul.mubr.f32.gmra.mrb[0].mxu0 %v761
    %v922 = vpop.f32.mrb[0].mxu0
    %v923 = vadd.f32 %v805, %v922
    %v924 = vpop.f32.mrb[0].mxu0
    %925 = vmatprep.mubr.f32.mxu0 0.0
    %926 = vmatmul.mubr.f32.gmra.mrb[0].mxu0 %v762
    %v927 = vpop.f32.mrb[0].mxu0
    %v928 = vadd.f32 %v805, %v927
    %v929 = vpop.f32.mrb[0].mxu0
    %930 = vmatprep.mubr.f32.mxu0 0.0
    %931 = vmatmul.mubr.f32.gmra.mrb[0].mxu0 %v763
    %v932 = vpop.f32.mrb[0].mxu0
    %v933 = vadd.f32 %v805, %v932
    %v934 = vpop.f32.mrb[0].mxu0
    %935 = vmatprep.mubr.f32.mxu0 0.0
    %936 = vmatmul.mubr.f32.gmra.mrb[0].mxu0 %v764
    %v937 = vpop.f32.mrb[0].mxu0
    %v938 = vadd.f32 %v805, %v937
    %v939 = vpop.f32.mrb[0].mxu0
    %940 = vmatprep.mubr.f32.mxu0 0.0
    %941 = vmatmul.mubr.f32.gmra.mrb[0].mxu0 %v765
    %v942 = vpop.f32.mrb[0].mxu0
    %v943 = vadd.f32 %v805, %v942
    %v944 = vpop.f32.mrb[0].mxu0
    %945 = vmatprep.mubr.f32.mxu0 0.0
    %946 = vmatmul.mubr.f32.gmra.mrb[0].mxu0 %v766
    %v947 = vpop.f32.mrb[0].mxu0
    %v948 = vadd.f32 %v805, %v947
    %v949 = vpop.f32.mrb[0].mxu0
    %950 = vmatprep.mubr.f32.mxu0 0.0
    %951 = vmatmul.mubr.f32.gmra.mrb[0].mxu0 %v767
    %v952 = vpop.f32.mrb[0].mxu0
    %v953 = vadd.f32 %v805, %v952
    %v954 = vpop.f32.mrb[0].mxu0
    %955 = vmatprep.mubr.f32.mxu0 0.0
    %956 = vmatmul.mubr.f32.gmra.mrb[0].mxu0 %v768
    %v957 = vpop.f32.mrb[0].mxu0
    %v958 = vadd.f32 %v805, %v957
    %v959 = vpop.f32.mrb[0].mxu0
    %960 = vmatprep.mubr.f32.mxu0 0.0
    %961 = vmatmul.mubr.f32.gmra.mrb[0].mxu0 %v769
    %v962 = vpop.f32.mrb[0].mxu0
    %v963 = vadd.f32 %v805, %v962
    %v964 = vpop.f32.mrb[0].mxu0
    %965 = vmatprep.mubr.f32.mxu0 0.0
    %966 = vmatmul.mubr.f32.gmra.mrb[0].mxu0 %v770
    %v967 = vpop.f32.mrb[0].mxu0
    %v968 = vadd.f32 %v805, %v967
    %v969 = vpop.f32.mrb[0].mxu0
    %970 = vmatprep.mubr.f32.mxu0 0.0
    %971 = vmatmul.mubr.f32.gmra.mrb[0].mxu0 %v771
    %v972 = vpop.f32.mrb[0].mxu0
    %v973 = vadd.f32 %v805, %v972
    %v974 = vpop.f32.mrb[0].mxu0
    %975 = vmatprep.mubr.f32.mxu0 0.0
    %976 = vmatmul.mubr.f32.gmra.mrb[0].mxu0 %v772
    %v977 = vpop.f32.mrb[0].mxu0
    %v978 = vadd.f32 %v805, %v977
    %v979 = vpop.f32.mrb[0].mxu0
    %980 = vmatprep.mubr.f32.mxu0 0.0
    %981 = vmatmul.mubr.f32.gmra.mrb[0].mxu0 %v773
    %v982 = vpop.f32.mrb[0].mxu0
    %v983 = vadd.f32 %v805, %v982
    %v984 = vpop.f32.mrb[0].mxu0
    %985 = vmatprep.mubr.f32.mxu0 0.0
    %986 = vmatmul.mubr.f32.gmra.mrb[0].mxu0 %v774
    %v987 = vpop.f32.mrb[0].mxu0
    %v988 = vadd.f32 %v805, %v987
    %v989 = vpop.f32.mrb[0].mxu0
    %990 = vmatprep.mubr.f32.mxu0 0.0
    %991 = vmatmul.mubr.f32.gmra.mrb[0].mxu0 %v775
    %v992 = vpop.f32.mrb[0].mxu0
    %v993 = vadd.f32 %v805, %v992
    %v994 = vpop.f32.mrb[0].mxu0
    %995 = vmatprep.mubr.f32.mxu0 0.0
    %996 = vmatmul.mubr.f32.gmra.mrb[0].mxu0 %v776
    %v997 = vpop.f32.mrb[0].mxu0
    %v998 = vadd.f32 %v805, %v997
    %v999 = vpop.f32.mrb[0].mxu0
    %1000 = vmatprep.mubr.f32.mxu0 0.0
    %1001 = vmatmul.mubr.f32.gmra.mrb[0].mxu0 %v777
    %v1002 = vpop.f32.mrb[0].mxu0
    %v1003 = vadd.f32 %v805, %v1002
    %v1004 = vpop.f32.mrb[0].mxu0
    %1005 = vmatprep.mubr.f32.mxu0 0.0
    %1006 = vmatmul.mubr.f32.gmra.mrb[0].mxu0 %v778
    %v1007 = vpop.f32.mrb[0].mxu0
    %v1008 = vadd.f32 %v805, %v1007
    %v1009 = vpop.f32.mrb[0].mxu0
    %1010 = vmatprep.mubr.f32.mxu0 0.0
    %1011 = vmatmul.mubr.f32.gmra.mrb[0].mxu0 %v779
    %v1012 = vpop.f32.mrb[0].mxu0
    %v1013 = vadd.f32 %v805, %v1012
    %v1014 = vpop.f32.mrb[0].mxu0
    %1015 = vmatprep.mubr.f32.mxu0 0.0
    %1016 = vmatmul.mubr.f32.gmra.mrb[0].mxu0 %v780
    %v1017 = vpop.f32.mrb[0].mxu0
    %v1018 = vadd.f32 %v805, %v1017
    %v1019 = vpop.f32.mrb[0].mxu0
    %1020 = vmatprep.mubr.f32.mxu0 0.0
    %1021 = vmatmul.mubr.f32.gmra.mrb[0].mxu0 %v781
    %v1022 = vpop.f32.mrb[0].mxu0
    %v1023 = vadd.f32 %v805, %v1022
    %v1024 = vpop.f32.mrb[0].mxu0
    %1025 = vmatprep.mubr.f32.mxu0 0.0
    %1026 = vmatmul.mubr.f32.gmra.mrb[0].mxu0 %v782
    %v1027 = vpop.f32.mrb[0].mxu0
    %v1028 = vadd.f32 %v805, %v1027
    %v1029 = vpop.f32.mrb[0].mxu0
    %1030 = vmatprep.mubr.f32.mxu0 0.0
    %1031 = vmatmul.mubr.f32.gmra.mrb[0].mxu0 %v783
    %v1032 = vpop.f32.mrb[0].mxu0
    %v1033 = vadd.f32 %v805, %v1032
    %v1034 = vpop.f32.mrb[0].mxu0
    %1035 = vmatprep.mubr.f32.mxu0 0.0
    %1036 = vmatmul.mubr.f32.gmra.mrb[0].mxu0 %v784
    %v1037 = vpop.f32.mrb[0].mxu0
    %v1038 = vadd.f32 %v805, %v1037
    %v1039 = vpop.f32.mrb[0].mxu0
    %1040 = vdwg.mxu0
    %vm1041 = vcmp.gt.f32.partialorder %v873, 0.0
    %vm1042 = vcmp.gt.f32.partialorder %v878, 0.0
    %vm1043 = vcmp.gt.f32.partialorder %v883, 0.0
    %vm1044 = vcmp.gt.f32.partialorder %v888, 0.0
    %vm1045 = vcmp.gt.f32.partialorder %v893, 0.0
    %vm1046 = vcmp.gt.f32.partialorder %v898, 0.0
    %vm1047 = vcmp.gt.f32.partialorder %v903, 0.0
    %vm1048 = vcmp.gt.f32.partialorder %v908, 0.0
    %vm1049 = vcmp.gt.f32.partialorder %v913, 0.0
    %vm1050 = vcmp.gt.f32.partialorder %v918, 0.0
    %vm1051 = vcmp.gt.f32.partialorder %v923, 0.0
    %vm1052 = vcmp.gt.f32.partialorder %v928, 0.0
    %vm1053 = vcmp.gt.f32.partialorder %v933, 0.0
    %vm1054 = vcmp.gt.f32.partialorder %v938, 0.0
    %vm1055 = vcmp.gt.f32.partialorder %v943, 0.0
    %vm1056 = vcmp.gt.f32.partialorder %v948, 0.0
    %vm1057 = vcmp.gt.f32.partialorder %v953, 0.0
    %vm1058 = vcmp.gt.f32.partialorder %v958, 0.0
    %vm1059 = vcmp.gt.f32.partialorder %v963, 0.0
    %vm1060 = vcmp.gt.f32.partialorder %v968, 0.0
    %vm1061 = vcmp.gt.f32.partialorder %v973, 0.0
    %vm1062 = vcmp.gt.f32.partialorder %v978, 0.0
    %vm1063 = vcmp.gt.f32.partialorder %v983, 0.0
    %vm1064 = vcmp.gt.f32.partialorder %v988, 0.0
    %vm1065 = vcmp.gt.f32.partialorder %v993, 0.0
    %vm1066 = vcmp.gt.f32.partialorder %v998, 0.0
    %vm1067 = vcmp.gt.f32.partialorder %v1003, 0.0
    %vm1068 = vcmp.gt.f32.partialorder %v1008, 0.0
    %vm1069 = vcmp.gt.f32.partialorder %v1013, 0.0
    %vm1070 = vcmp.gt.f32.partialorder %v1018, 0.0
    %vm1071 = vcmp.gt.f32.partialorder %v1023, 0.0
    %vm1072 = vcmp.gt.f32.partialorder %v1028, 0.0
    %vm1073 = vcmp.gt.f32.partialorder %v1033, 0.0
    %vm1074 = vcmp.gt.f32.partialorder %v1038, 0.0
    %v1075 = vmin.f32 %v873, 0.0
    %v1076 = vmin.f32 %v878, 0.0
    %v1077 = vmin.f32 %v883, 0.0
    %v1078 = vmin.f32 %v888, 0.0
    %v1079 = vmin.f32 %v893, 0.0
    %v1080 = vmin.f32 %v898, 0.0
    %v1081 = vmin.f32 %v903, 0.0
    %v1082 = vmin.f32 %v908, 0.0
    %v1083 = vmin.f32 %v913, 0.0
    %v1084 = vmin.f32 %v918, 0.0
    %v1085 = vmin.f32 %v923, 0.0
    %v1086 = vmin.f32 %v928, 0.0
    %v1087 = vmin.f32 %v933, 0.0
    %v1088 = vmin.f32 %v938, 0.0
    %v1089 = vmin.f32 %v943, 0.0
    %v1090 = vmin.f32 %v948, 0.0
    %v1091 = vmin.f32 %v953, 0.0
    %v1092 = vmin.f32 %v958, 0.0
    %v1093 = vmin.f32 %v963, 0.0
    %v1094 = vmin.f32 %v968, 0.0
    %v1095 = vmin.f32 %v973, 0.0
    %v1096 = vmin.f32 %v978, 0.0
    %v1097 = vmin.f32 %v983, 0.0
    %v1098 = vmin.f32 %v988, 0.0
    %v1099 = vmin.f32 %v993, 0.0
    %v1100 = vmin.f32 %v998, 0.0
    %v1101 = vmin.f32 %v1003, 0.0
    %v1102 = vmin.f32 %v1008, 0.0
    %v1103 = vmin.f32 %v1013, 0.0
    %v1104 = vmin.f32 %v1018, 0.0
    %v1105 = vmin.f32 %v1023, 0.0
    %v1106 = vmin.f32 %v1028, 0.0
    %v1107 = vmin.f32 %v1033, 0.0
    %v1108 = vmin.f32 %v1038, 0.0
    %v1109 = vmul.f32 %v1075, 1.442695
    %v1110 = vpow.pop %v1109
    %v1111 = vmul.f32 %v1076, 1.442695
    %v1112 = vpow.pop %v1111
    %v1113 = vmul.f32 %v1077, 1.442695
    %v1114 = vpow.pop %v1113
    %v1115 = vmul.f32 %v1078, 1.442695
    %v1116 = vpow.pop %v1115
    %v1117 = vmul.f32 %v1079, 1.442695
    %v1118 = vpow.pop %v1117
    %v1119 = vmul.f32 %v1080, 1.442695
    %v1120 = vpow.pop %v1119
    %v1121 = vmul.f32 %v1081, 1.442695
    %v1122 = vpow.pop %v1121
    %v1123 = vmul.f32 %v1082, 1.442695
    %v1124 = vpow.pop %v1123
    %v1125 = vmul.f32 %v1083, 1.442695
    %v1126 = vpow.pop %v1125
    %v1127 = vmul.f32 %v1084, 1.442695
    %v1128 = vpow.pop %v1127
    %v1129 = vmul.f32 %v1085, 1.442695
    %v1130 = vpow.pop %v1129
    %v1131 = vmul.f32 %v1086, 1.442695
    %v1132 = vpow.pop %v1131
    %v1133 = vmul.f32 %v1087, 1.442695
    %v1134 = vpow.pop %v1133
    %v1135 = vmul.f32 %v1088, 1.442695
    %v1136 = vpow.pop %v1135
    %v1137 = vmul.f32 %v1089, 1.442695
    %v1138 = vpow.pop %v1137
    %v1139 = vmul.f32 %v1090, 1.442695
    %v1140 = vpow.pop %v1139
    %v1141 = vmul.f32 %v1091, 1.442695
    %v1142 = vpow.pop %v1141
    %v1143 = vmul.f32 %v1092, 1.442695
    %v1144 = vpow.pop %v1143
    %v1145 = vmul.f32 %v1093, 1.442695
    %v1146 = vpow.pop %v1145
    %v1147 = vmul.f32 %v1094, 1.442695
    %v1148 = vpow.pop %v1147
    %v1149 = vmul.f32 %v1095, 1.442695
    %v1150 = vpow.pop %v1149
    %v1151 = vmul.f32 %v1096, 1.442695
    %v1152 = vpow.pop %v1151
    %v1153 = vmul.f32 %v1097, 1.442695
    %v1154 = vpow.pop %v1153
    %v1155 = vmul.f32 %v1098, 1.442695
    %v1156 = vpow.pop %v1155
    %v1157 = vmul.f32 %v1099, 1.442695
    %v1158 = vpow.pop %v1157
    %v1159 = vmul.f32 %v1100, 1.442695
    %v1160 = vpow.pop %v1159
    %v1161 = vmul.f32 %v1101, 1.442695
    %v1162 = vpow.pop %v1161
    %v1163 = vmul.f32 %v1102, 1.442695
    %v1164 = vpow.pop %v1163
    %v1165 = vmul.f32 %v1103, 1.442695
    %v1166 = vpow.pop %v1165
    %v1167 = vmul.f32 %v1104, 1.442695
    %v1168 = vpow.pop %v1167
    %v1169 = vmul.f32 %v1105, 1.442695
    %v1170 = vpow.pop %v1169
    %v1171 = vmul.f32 %v1106, 1.442695
    %v1172 = vpow.pop %v1171
    %v1173 = vmul.f32 %v1107, 1.442695
    %v1174 = vpow.pop %v1173
    %v1175 = vmul.f32 %v1108, 1.442695
    %v1176 = vpow.pop %v1175
    %v1177 = vsub.f32 %v1110, 1.0
    %v1178 = vsub.f32 %v1112, 1.0
    %v1179 = vsub.f32 %v1114, 1.0
    %v1180 = vsub.f32 %v1116, 1.0
    %v1181 = vsub.f32 %v1118, 1.0
    %v1182 = vsub.f32 %v1120, 1.0
    %v1183 = vsub.f32 %v1122, 1.0
    %v1184 = vsub.f32 %v1124, 1.0
    %v1185 = vsub.f32 %v1126, 1.0
    %v1186 = vsub.f32 %v1128, 1.0
    %v1187 = vsub.f32 %v1130, 1.0
    %v1188 = vsub.f32 %v1132, 1.0
    %v1189 = vsub.f32 %v1134, 1.0
    %v1190 = vsub.f32 %v1136, 1.0
    %v1191 = vsub.f32 %v1138, 1.0
    %v1192 = vsub.f32 %v1140, 1.0
    %v1193 = vsub.f32 %v1142, 1.0
    %v1194 = vsub.f32 %v1144, 1.0
    %v1195 = vsub.f32 %v1146, 1.0
    %v1196 = vsub.f32 %v1148, 1.0
    %v1197 = vsub.f32 %v1150, 1.0
    %v1198 = vsub.f32 %v1152, 1.0
    %v1199 = vsub.f32 %v1154, 1.0
    %v1200 = vsub.f32 %v1156, 1.0
    %v1201 = vsub.f32 %v1158, 1.0
    %v1202 = vsub.f32 %v1160, 1.0
    %v1203 = vsub.f32 %v1162, 1.0
    %v1204 = vsub.f32 %v1164, 1.0
    %v1205 = vsub.f32 %v1166, 1.0
    %v1206 = vsub.f32 %v1168, 1.0
    %v1207 = vsub.f32 %v1170, 1.0
    %v1208 = vsub.f32 %v1172, 1.0
    %v1209 = vsub.f32 %v1174, 1.0
    %v1210 = vsub.f32 %v1176, 1.0
    %v1211 = vsel %vm1041, %v873, %v1177
    %v1212 = vsel %vm1042, %v878, %v1178
    %v1213 = vsel %vm1043, %v883, %v1179
    %v1214 = vsel %vm1044, %v888, %v1180
    %v1215 = vsel %vm1045, %v893, %v1181
    %v1216 = vsel %vm1046, %v898, %v1182
    %v1217 = vsel %vm1047, %v903, %v1183
    %v1218 = vsel %vm1048, %v908, %v1184
    %v1219 = vsel %vm1049, %v913, %v1185
    %v1220 = vsel %vm1050, %v918, %v1186
    %v1221 = vsel %vm1051, %v923, %v1187
    %v1222 = vsel %vm1052, %v928, %v1188
    %v1223 = vsel %vm1053, %v933, %v1189
    %v1224 = vsel %vm1054, %v938, %v1190
    %v1225 = vsel %vm1055, %v943, %v1191
    %v1226 = vsel %vm1056, %v948, %v1192
    %v1227 = vsel %vm1057, %v953, %v1193
    %v1228 = vsel %vm1058, %v958, %v1194
    %v1229 = vsel %vm1059, %v963, %v1195
    %v1230 = vsel %vm1060, %v968, %v1196
    %v1231 = vsel %vm1061, %v973, %v1197
    %v1232 = vsel %vm1062, %v978, %v1198
    %v1233 = vsel %vm1063, %v983, %v1199
    %v1234 = vsel %vm1064, %v988, %v1200
    %v1235 = vsel %vm1065, %v993, %v1201
    %v1236 = vsel %vm1066, %v998, %v1202
    %v1237 = vsel %vm1067, %v1003, %v1203
    %v1238 = vsel %vm1068, %v1008, %v1204
    %v1239 = vsel %vm1069, %v1013, %v1205
    %v1240 = vsel %vm1070, %v1018, %v1206
    %v1241 = vsel %vm1071, %v1023, %v1207
    %v1242 = vsel %vm1072, %v1028, %v1208
    %v1243 = vsel %vm1073, %v1033, %v1209
    %v1244 = vsel %vm1074, %v1038, %v1210
    %v1245 = vadd.f32 %v1211, 1.0
    %v1246 = vadd.f32 %v1212, 1.0
    %v1247 = vadd.f32 %v1213, 1.0
    %v1248 = vadd.f32 %v1214, 1.0
    %v1249 = vadd.f32 %v1215, 1.0
    %v1250 = vadd.f32 %v1216, 1.0
    %v1251 = vadd.f32 %v1217, 1.0
    %v1252 = vadd.f32 %v1218, 1.0
    %v1253 = vadd.f32 %v1219, 1.0
    %v1254 = vadd.f32 %v1220, 1.0
    %v1255 = vadd.f32 %v1221, 1.0
    %v1256 = vadd.f32 %v1222, 1.0
    %v1257 = vadd.f32 %v1223, 1.0
    %v1258 = vadd.f32 %v1224, 1.0
    %v1259 = vadd.f32 %v1225, 1.0
    %v1260 = vadd.f32 %v1226, 1.0
    %v1261 = vadd.f32 %v1227, 1.0
    %v1262 = vadd.f32 %v1228, 1.0
    %v1263 = vadd.f32 %v1229, 1.0
    %v1264 = vadd.f32 %v1230, 1.0
    %v1265 = vadd.f32 %v1231, 1.0
    %v1266 = vadd.f32 %v1232, 1.0
    %v1267 = vadd.f32 %v1233, 1.0
    %v1268 = vadd.f32 %v1234, 1.0
    %v1269 = vadd.f32 %v1235, 1.0
    %v1270 = vadd.f32 %v1236, 1.0
    %v1271 = vadd.f32 %v1237, 1.0
    %v1272 = vadd.f32 %v1238, 1.0
    %v1273 = vadd.f32 %v1239, 1.0
    %v1274 = vadd.f32 %v1240, 1.0
    %v1275 = vadd.f32 %v1241, 1.0
    %v1276 = vadd.f32 %v1242, 1.0
    %v1277 = vadd.f32 %v1243, 1.0
    %v1278 = vadd.f32 %v1244, 1.0
    %v1279 = vmul.f32 %v1245, 0.0036764706
    %v1280 = vmul.f32 %v1246, 0.0036764706
    %v1281 = vmul.f32 %v1247, 0.0378589
    %v1282 = vmul.f32 %v1248, 0.0378589
    %v1283 = vmul.f32 %v1249, 0.074992135
    %v1284 = vmul.f32 %v1250, 0.074992135
    %v1285 = vmul.f32 %v1251, 0.10939575
    %v1286 = vmul.f32 %v1252, 0.10939575
    %v1287 = vmul.f32 %v1253, 0.13846627
    %v1288 = vmul.f32 %v1254, 0.13846627
    %v1289 = vmul.f32 %v1255, 0.16366287
    %v1290 = vmul.f32 %v1256, 0.16366287
    %v1291 = vmul.f32 %v1257, 0.18098359
    %v1292 = vmul.f32 %v1258, 0.18098359
    %v1293 = vmul.f32 %v1259, 0.19300406
    %v1294 = vmul.f32 %v1260, 0.19300406
    %v1295 = vmul.f32 %v1261, 0.19591993
    %v1296 = vmul.f32 %v1262, 0.19591993
    %v1297 = vmul.f32 %v1263, 0.19300406
    %v1298 = vmul.f32 %v1264, 0.19300406
    %v1299 = vmul.f32 %v1265, 0.18098359
    %v1300 = vmul.f32 %v1266, 0.18098359
    %v1301 = vmul.f32 %v1267, 0.16366287
    %v1302 = vmul.f32 %v1268, 0.16366287
    %v1303 = vmul.f32 %v1269, 0.13846627
    %v1304 = vmul.f32 %v1270, 0.13846627
    %v1305 = vmul.f32 %v1271, 0.10939575
    %v1306 = vmul.f32 %v1272, 0.10939575
    %v1307 = vmul.f32 %v1273, 0.074992135
    %v1308 = vmul.f32 %v1274, 0.074992135
    %v1309 = vmul.f32 %v1275, 0.0378589
    %v1310 = vmul.f32 %v1276, 0.0378589
    %v1311 = vmul.f32 %v1277, 0.0036764706
    %v1312 = vmul.f32 %v1278, 0.0036764706
    %v1313 = vadd.f32 %v1279, %v1281
    %v1314 = vadd.f32 %v1280, %v1282
    %v1315 = vadd.f32 %v1283, %v1285
    %v1316 = vadd.f32 %v1284, %v1286
    %v1317 = vadd.f32 %v1287, %v1289
    %v1318 = vadd.f32 %v1288, %v1290
    %v1319 = vadd.f32 %v1291, %v1293
    %v1320 = vadd.f32 %v1292, %v1294
    %v1321 = vadd.f32 %v1295, %v1297
    %v1322 = vadd.f32 %v1296, %v1298
    %v1323 = vadd.f32 %v1299, %v1301
    %v1324 = vadd.f32 %v1300, %v1302
    %v1325 = vadd.f32 %v1303, %v1305
    %v1326 = vadd.f32 %v1304, %v1306
    %v1327 = vadd.f32 %v1307, %v1309
    %v1328 = vadd.f32 %v1308, %v1310
    %v1329 = vadd.f32 %v1313, %v1315
    %v1330 = vadd.f32 %v1314, %v1316
    %v1331 = vadd.f32 %v1317, %v1319
    %v1332 = vadd.f32 %v1318, %v1320
    %v1333 = vadd.f32 %v1321, %v1323
    %v1334 = vadd.f32 %v1322, %v1324
    %v1335 = vadd.f32 %v1325, %v1327
    %v1336 = vadd.f32 %v1326, %v1328
    %v1337 = vadd.f32 %v1329, %v1331
    %v1338 = vadd.f32 %v1330, %v1332
    %v1339 = vadd.f32 %v1333, %v1335
    %v1340 = vadd.f32 %v1334, %v1336
    %v1341 = vadd.f32 %v1337, %v1339
    %v1342 = vadd.f32 %v1338, %v1340
    %v1343 = vadd.f32 %v1341, %v1311
    %v1344 = vadd.f32 %v1342, %v1312
    %v1345 = vmul.f32 %v1343, %v28
    %v1346 = vmul.f32 %v1344, %v29
    %v1347 = vmul.f32 %v1345, 0.5
    %v1348 = vmul.f32 %v1346, 0.5
    %1351 = vrot.lane.b32.xlu0 %v1347, 4
    %v1352 = vpop.permute.xlu0 %1351
    %1353 = vrot.lane.b32.xlu0 %v1348, 4
    %v1354 = vpop.permute.xlu0 %1353
    %v1357 = vmul.f32 %v392, %v1352
    %v1358 = vmul.f32 %v394, %v1354
    %1361 = vrot.lane.b32.xlu0 %v383, 4
    %v1362 = vpop.permute.xlu0 %1361
    %1363 = vrot.lane.b32.xlu0 %v388, 4
    %v1364 = vpop.permute.xlu0 %1363
    %v1367 = vadd.f32 %v1357, %v1362
    %v1368 = vadd.f32 %v1358, %v1364
    %v1369 = vld [vmem:[#allocation2 + $0x278] sm:$0x1]
    %v1370 = vmul.f32 %v1369, 1.442695
    %v1371 = vpow.pop %v1370
    %v1372 = vlaneseq
    %v1373 = vshrl.u32 %v1372, 7
    %v1374 = vsub.s32 0, %v1373
    %v1375 = vrot.slane %v1371, %v1374
    %1378 = vrot.lane.b32.xlu0 %v1367, 124
    %v1379 = vpop.permute.xlu0 %1378
    %1380 = vrot.lane.b32.xlu0 %v1368, 124
    %v1381 = vpop.permute.xlu0 %1380
    %v1384 = vmul.f32 %v1375, %v1379
    %v1385 = vmul.f32 %v1375, %v1381
    %vm1386 = vcmask 23552
    %v1387 = vsel %vm1386, %v1384, 0.0
    %1388 = vadd.xlane.f32.xlu0 %v1387
    %v1389 = vpop.xlane.xlu0 %1388
    %v1390 = vsel %vm1386, %v1385, 0.0
    %1391 = vadd.xlane.f32.xlu0 %v1390
    %v1392 = vpop.xlane.xlu0 %1391
    %v1393 = vld [vmem:[#allocation2 + $0x220] sm:$0x1]
    %v1394 = vlaneseq
    %v1395 = vshrl.u32 %v1394, 7
    %v1396 = vsub.s32 0, %v1395
    %v1397 = vrot.slane %v1393, %v1396
    %v1398 = vmul.f32 %v1389, %v1397
    %v1399 = vmul.f32 %v1392, %v1397
    %v1400 = vadd.f32 %v1398, %v187
    %v1401 = vadd.f32 %v1399, %v193
    %v1402 = vmul.f32 %v1398, 0.9903926
    %v1403 = vmul.f32 %v1399, 0.9903926
    %v1404 = vadd.f32 %v1402, %v187
    %v1405 = vadd.f32 %v1403, %v193
    %v1406 = vmul.f32 %v1398, 0.96193975
    %v1407 = vmul.f32 %v1399, 0.96193975
    %v1408 = vadd.f32 %v1406, %v187
    %v1409 = vadd.f32 %v1407, %v193
    %v1410 = vmul.f32 %v1398, 0.91573477
    %v1411 = vmul.f32 %v1399, 0.91573477
    %v1412 = vadd.f32 %v1410, %v187
    %v1413 = vadd.f32 %v1411, %v193
    %v1414 = vmul.f32 %v1398, 0.8535534
    %v1415 = vmul.f32 %v1399, 0.8535534
    %v1416 = vadd.f32 %v1414, %v187
    %v1417 = vadd.f32 %v1415, %v193
    %v1418 = vmul.f32 %v1398, 0.7777851
    %v1419 = vmul.f32 %v1399, 0.7777851
    %v1420 = vadd.f32 %v1418, %v187
    %v1421 = vadd.f32 %v1419, %v193
    %v1422 = vmul.f32 %v1398, 0.6913417
    %v1423 = vmul.f32 %v1399, 0.6913417
    %v1424 = vadd.f32 %v1422, %v187
    %v1425 = vadd.f32 %v1423, %v193
    %v1426 = vmul.f32 %v1398, 0.59754515
    %v1427 = vmul.f32 %v1399, 0.59754515
    %v1428 = vadd.f32 %v1426, %v187
    %v1429 = vadd.f32 %v1427, %v193
    %v1430 = vmul.f32 %v1398, 0.5
    %v1431 = vmul.f32 %v1399, 0.5
    %v1432 = vadd.f32 %v1430, %v187
    %v1433 = vadd.f32 %v1431, %v193
    %v1434 = vmul.f32 %v1398, 0.40245485
    %v1435 = vmul.f32 %v1399, 0.40245485
    %v1436 = vadd.f32 %v1434, %v187
    %v1437 = vadd.f32 %v1435, %v193
    %v1438 = vmul.f32 %v1398, 0.3086583
    %v1439 = vmul.f32 %v1399, 0.3086583
    %v1440 = vadd.f32 %v1438, %v187
    %v1441 = vadd.f32 %v1439, %v193
    %v1442 = vmul.f32 %v1398, 0.22221488
    %v1443 = vmul.f32 %v1399, 0.22221488
    %v1444 = vadd.f32 %v1442, %v187
    %v1445 = vadd.f32 %v1443, %v193
    %v1446 = vmul.f32 %v1398, 0.14644662
    %v1447 = vmul.f32 %v1399, 0.14644662
    %v1448 = vadd.f32 %v1446, %v187
    %v1449 = vadd.f32 %v1447, %v193
    %v1450 = vmul.f32 %v1398, 0.0842652
    %v1451 = vmul.f32 %v1399, 0.0842652
    %v1452 = vadd.f32 %v1450, %v187
    %v1453 = vadd.f32 %v1451, %v193
    %v1454 = vmul.f32 %v1398, 0.038060248
    %v1455 = vmul.f32 %v1399, 0.038060248
    %v1456 = vadd.f32 %v1454, %v187
    %v1457 = vadd.f32 %v1455, %v193
    %v1458 = vmul.f32 %v1398, 0.009607375
    %v1459 = vmul.f32 %v1399, 0.009607375
    %v1460 = vadd.f32 %v1458, %v187
    %v1461 = vadd.f32 %v1459, %v193
    %v1462 = vmul.f32 %v1398, 0.0
    %v1463 = vmul.f32 %v1399, 0.0
    %v1464 = vadd.f32 %v1462, %v187
    %v1465 = vadd.f32 %v1463, %v193
    %v1466 = vmax.f32 %v1400, 0.0
    %v1467 = vmax.f32 %v1401, 0.0
    %v1468 = vmax.f32 %v1404, 0.0
    %v1469 = vmax.f32 %v1405, 0.0
    %v1470 = vmax.f32 %v1408, 0.0
    %v1471 = vmax.f32 %v1409, 0.0
    %v1472 = vmax.f32 %v1412, 0.0
    %v1473 = vmax.f32 %v1413, 0.0
    %v1474 = vmax.f32 %v1416, 0.0
    %v1475 = vmax.f32 %v1417, 0.0
    %v1476 = vmax.f32 %v1420, 0.0
    %v1477 = vmax.f32 %v1421, 0.0
    %v1478 = vmax.f32 %v1424, 0.0
    %v1479 = vmax.f32 %v1425, 0.0
    %v1480 = vmax.f32 %v1428, 0.0
    %v1481 = vmax.f32 %v1429, 0.0
    %v1482 = vmax.f32 %v1432, 0.0
    %v1483 = vmax.f32 %v1433, 0.0
    %v1484 = vmax.f32 %v1436, 0.0
    %v1485 = vmax.f32 %v1437, 0.0
    %v1486 = vmax.f32 %v1440, 0.0
    %v1487 = vmax.f32 %v1441, 0.0
    %v1488 = vmax.f32 %v1444, 0.0
    %v1489 = vmax.f32 %v1445, 0.0
    %v1490 = vmax.f32 %v1448, 0.0
    %v1491 = vmax.f32 %v1449, 0.0
    %v1492 = vmax.f32 %v1452, 0.0
    %v1493 = vmax.f32 %v1453, 0.0
    %v1494 = vmax.f32 %v1456, 0.0
    %v1495 = vmax.f32 %v1457, 0.0
    %v1496 = vmax.f32 %v1460, 0.0
    %v1497 = vmax.f32 %v1461, 0.0
    %v1498 = vmax.f32 %v1464, 0.0
    %v1499 = vmax.f32 %v1465, 0.0
    %v1500 = vld [vmem:[#allocation2 + $0x228] sm:$0xff]
    %v1501 = vld [vmem:[#allocation2 + $0x230] sm:$0xff]
    %v1502 = vld [vmem:[#allocation2 + $0x238] sm:$0xff]
    %v1503 = vld [vmem:[#allocation2 + $0x240] sm:$0xff]
    %v1504 = vld [vmem:[#allocation2 + $0x248] sm:$0x1]
    %v1505 = vlaneseq
    %v1506 = vshrl.u32 %v1505, 7
    %v1507 = vsub.s32 0, %v1506
    %v1508 = vrot.slane %v1504, %v1507
    %vm1509 = vcmask 261120
    %v1511 = vsel %vm1509, %v1466, 0
    %v1514 = vsel %vm1509, %v1467, 0
    %v1517 = vsel %vm1509, %v1468, 0
    %v1520 = vsel %vm1509, %v1469, 0
    %v1523 = vsel %vm1509, %v1470, 0
    %v1526 = vsel %vm1509, %v1471, 0
    %v1529 = vsel %vm1509, %v1472, 0
    %v1532 = vsel %vm1509, %v1473, 0
    %v1535 = vsel %vm1509, %v1474, 0
    %v1538 = vsel %vm1509, %v1475, 0
    %v1541 = vsel %vm1509, %v1476, 0
    %v1544 = vsel %vm1509, %v1477, 0
    %v1547 = vsel %vm1509, %v1478, 0
    %v1550 = vsel %vm1509, %v1479, 0
    %v1553 = vsel %vm1509, %v1480, 0
    %v1556 = vsel %vm1509, %v1481, 0
    %v1559 = vsel %vm1509, %v1482, 0
    %v1562 = vsel %vm1509, %v1483, 0
    %v1565 = vsel %vm1509, %v1484, 0
    %v1568 = vsel %vm1509, %v1485, 0
    %v1571 = vsel %vm1509, %v1486, 0
    %v1574 = vsel %vm1509, %v1487, 0
    %v1577 = vsel %vm1509, %v1488, 0
    %v1580 = vsel %vm1509, %v1489, 0
    %v1583 = vsel %vm1509, %v1490, 0
    %v1586 = vsel %vm1509, %v1491, 0
    %v1589 = vsel %vm1509, %v1492, 0
    %v1592 = vsel %vm1509, %v1493, 0
    %v1595 = vsel %vm1509, %v1494, 0
    %v1598 = vsel %vm1509, %v1495, 0
    %v1601 = vsel %vm1509, %v1496, 0
    %v1604 = vsel %vm1509, %v1497, 0
    %v1607 = vsel %vm1509, %v1498, 0
    %v1610 = vsel %vm1509, %v1499, 0
    %1612 = vmatprep.subr.mxu0 0.0
    %1613 = vmatpush1.msra.mxu0 %v1500
    %1614 = vmatprep.subr.mxu0 0.0
    %1615 = vmatpush1.msra.mxu0 %v1501
    %1616 = vmatprep.subr.mxu0 0.0
    %1617 = vmatpush1.msra.mxu0 %v1502
    %1618 = vmatprep.subr.mxu0 0.0
    %1619 = vmatpush1.msra.mxu0 %v1503
    %1620 = vmatprep.subr.mxu0 0.0
    %1621 = vmatpush1.msra.mxu0 0.0
    %1622 = vmatprep.subr.mxu0 0.0
    %1623 = vmatpush1.msra.mxu0 0.0
    %1624 = vmatprep.subr.mxu0 0.0
    %1625 = vmatpush1.msra.mxu0 0.0
    %1626 = vmatprep.subr.mxu0 0.0
    %1627 = vmatpush1.msra.mxu0 0.0
    %1628 = vmatprep.subr.mxu0 0.0
    %1629 = vmatpush1.msra.mxu0 0.0
    %1630 = vmatprep.subr.mxu0 0.0
    %1631 = vmatpush1.msra.mxu0 0.0
    %1632 = vmatprep.subr.mxu0 0.0
    %1633 = vmatpush1.msra.mxu0 0.0
    %1634 = vmatprep.subr.mxu0 0.0
    %1635 = vmatpush1.msra.mxu0 0.0
    %1636 = vmatprep.subr.mxu0 0.0
    %1637 = vmatpush1.msra.mxu0 0.0
    %1638 = vmatprep.subr.mxu0 0.0
    %1639 = vmatpush1.msra.mxu0 0.0
    %1640 = vmatprep.subr.mxu0 0.0
    %1641 = vmatpush1.msra.mxu0 0.0
    %1642 = vmatprep.subr.mxu0 0.0
    %1643 = vmatpush1.msra.mxu0 0.0
    %1644 = vmatprep.subr.mxu0 0.0
    %1645 = vmatpush1.msra.mxu0 0.0
    %1646 = vmatprep.subr.mxu0 0.0
    %1647 = vmatpush1.msra.mxu0 0.0
    %1648 = vmatprep.subr.mxu0 0.0
    %1649 = vmatpush1.msra.mxu0 0.0
    %1650 = vmatprep.subr.mxu0 0.0
    %1651 = vmatpush1.msra.mxu0 0.0
    %1652 = vmatprep.subr.mxu0 0.0
    %1653 = vmatpush1.msra.mxu0 0.0
    %1654 = vmatprep.subr.mxu0 0.0
    %1655 = vmatpush1.msra.mxu0 0.0
    %1656 = vmatprep.subr.mxu0 0.0
    %1657 = vmatpush1.msra.mxu0 0.0
    %1658 = vmatprep.subr.mxu0 0.0
    %1659 = vmatpush1.msra.mxu0 0.0
    %1660 = vmatprep.subr.mxu0 0.0
    %1661 = vmatpush1.msra.mxu0 0.0
    %1662 = vmatprep.subr.mxu0 0.0
    %1663 = vmatpush1.msra.mxu0 0.0
    %1664 = vmatprep.subr.mxu0 0.0
    %1665 = vmatpush1.msra.mxu0 0.0
    %1666 = vmatprep.subr.mxu0 0.0
    %1667 = vmatpush1.msra.mxu0 0.0
    %1668 = vmatprep.subr.mxu0 0.0
    %1669 = vmatpush1.msra.mxu0 0.0
    %1670 = vmatprep.subr.mxu0 0.0
    %1671 = vmatpush1.msra.mxu0 0.0
    %1672 = vmatprep.subr.mxu0 0.0
    %1673 = vmatpush1.msra.mxu0 0.0
    %1674 = vmatprep.subr.mxu0 0.0
    %1675 = vmatpush1.msra.mxu0 0.0
    %1676 = vmatprep.mubr.f32.mxu0 0.0
    %1677 = vmatmul.mubr.f32.gmra.mrb[0].mxu0 %v1511
    %v1678 = vpop.f32.mrb[0].mxu0
    %v1679 = vadd.f32 %v1508, %v1678
    %v1680 = vpop.f32.mrb[0].mxu0
    %1681 = vmatprep.mubr.f32.mxu0 0.0
    %1682 = vmatmul.mubr.f32.gmra.mrb[0].mxu0 %v1514
    %v1683 = vpop.f32.mrb[0].mxu0
    %v1684 = vadd.f32 %v1508, %v1683
    %v1685 = vpop.f32.mrb[0].mxu0
    %1686 = vmatprep.mubr.f32.mxu0 0.0
    %1687 = vmatmul.mubr.f32.gmra.mrb[0].mxu0 %v1517
    %v1688 = vpop.f32.mrb[0].mxu0
    %v1689 = vadd.f32 %v1508, %v1688
    %v1690 = vpop.f32.mrb[0].mxu0
    %1691 = vmatprep.mubr.f32.mxu0 0.0
    %1692 = vmatmul.mubr.f32.gmra.mrb[0].mxu0 %v1520
    %v1693 = vpop.f32.mrb[0].mxu0
    %v1694 = vadd.f32 %v1508, %v1693
    %v1695 = vpop.f32.mrb[0].mxu0
    %1696 = vmatprep.mubr.f32.mxu0 0.0
    %1697 = vmatmul.mubr.f32.gmra.mrb[0].mxu0 %v1523
    %v1698 = vpop.f32.mrb[0].mxu0
    %v1699 = vadd.f32 %v1508, %v1698
    %v1700 = vpop.f32.mrb[0].mxu0
    %1701 = vmatprep.mubr.f32.mxu0 0.0
    %1702 = vmatmul.mubr.f32.gmra.mrb[0].mxu0 %v1526
    %v1703 = vpop.f32.mrb[0].mxu0
    %v1704 = vadd.f32 %v1508, %v1703
    %v1705 = vpop.f32.mrb[0].mxu0
    %1706 = vmatprep.mubr.f32.mxu0 0.0
    %1707 = vmatmul.mubr.f32.gmra.mrb[0].mxu0 %v1529
    %v1708 = vpop.f32.mrb[0].mxu0
    %v1709 = vadd.f32 %v1508, %v1708
    %v1710 = vpop.f32.mrb[0].mxu0
    %1711 = vmatprep.mubr.f32.mxu0 0.0
    %1712 = vmatmul.mubr.f32.gmra.mrb[0].mxu0 %v1532
    %v1713 = vpop.f32.mrb[0].mxu0
    %v1714 = vadd.f32 %v1508, %v1713
    %v1715 = vpop.f32.mrb[0].mxu0
    %1716 = vmatprep.mubr.f32.mxu0 0.0
    %1717 = vmatmul.mubr.f32.gmra.mrb[0].mxu0 %v1535
    %v1718 = vpop.f32.mrb[0].mxu0
    %v1719 = vadd.f32 %v1508, %v1718
    %v1720 = vpop.f32.mrb[0].mxu0
    %1721 = vmatprep.mubr.f32.mxu0 0.0
    %1722 = vmatmul.mubr.f32.gmra.mrb[0].mxu0 %v1538
    %v1723 = vpop.f32.mrb[0].mxu0
    %v1724 = vadd.f32 %v1508, %v1723
    %v1725 = vpop.f32.mrb[0].mxu0
    %1726 = vmatprep.mubr.f32.mxu0 0.0
    %1727 = vmatmul.mubr.f32.gmra.mrb[0].mxu0 %v1541
    %v1728 = vpop.f32.mrb[0].mxu0
    %v1729 = vadd.f32 %v1508, %v1728
    %v1730 = vpop.f32.mrb[0].mxu0
    %1731 = vmatprep.mubr.f32.mxu0 0.0
    %1732 = vmatmul.mubr.f32.gmra.mrb[0].mxu0 %v1544
    %v1733 = vpop.f32.mrb[0].mxu0
    %v1734 = vadd.f32 %v1508, %v1733
    %v1735 = vpop.f32.mrb[0].mxu0
    %1736 = vmatprep.mubr.f32.mxu0 0.0
    %1737 = vmatmul.mubr.f32.gmra.mrb[0].mxu0 %v1547
    %v1738 = vpop.f32.mrb[0].mxu0
    %v1739 = vadd.f32 %v1508, %v1738
    %v1740 = vpop.f32.mrb[0].mxu0
    %1741 = vmatprep.mubr.f32.mxu0 0.0
    %1742 = vmatmul.mubr.f32.gmra.mrb[0].mxu0 %v1550
    %v1743 = vpop.f32.mrb[0].mxu0
    %v1744 = vadd.f32 %v1508, %v1743
    %v1745 = vpop.f32.mrb[0].mxu0
    %1746 = vmatprep.mubr.f32.mxu0 0.0
    %1747 = vmatmul.mubr.f32.gmra.mrb[0].mxu0 %v1553
    %v1748 = vpop.f32.mrb[0].mxu0
    %v1749 = vadd.f32 %v1508, %v1748
    %v1750 = vpop.f32.mrb[0].mxu0
    %1751 = vmatprep.mubr.f32.mxu0 0.0
    %1752 = vmatmul.mubr.f32.gmra.mrb[0].mxu0 %v1556
    %v1753 = vpop.f32.mrb[0].mxu0
    %v1754 = vadd.f32 %v1508, %v1753
    %v1755 = vpop.f32.mrb[0].mxu0
    %1756 = vmatprep.mubr.f32.mxu0 0.0
    %1757 = vmatmul.mubr.f32.gmra.mrb[0].mxu0 %v1559
    %v1758 = vpop.f32.mrb[0].mxu0
    %v1759 = vadd.f32 %v1508, %v1758
    %v1760 = vpop.f32.mrb[0].mxu0
    %1761 = vmatprep.mubr.f32.mxu0 0.0
    %1762 = vmatmul.mubr.f32.gmra.mrb[0].mxu0 %v1562
    %v1763 = vpop.f32.mrb[0].mxu0
    %v1764 = vadd.f32 %v1508, %v1763
    %v1765 = vpop.f32.mrb[0].mxu0
    %1766 = vmatprep.mubr.f32.mxu0 0.0
    %1767 = vmatmul.mubr.f32.gmra.mrb[0].mxu0 %v1565
    %v1768 = vpop.f32.mrb[0].mxu0
    %v1769 = vadd.f32 %v1508, %v1768
    %v1770 = vpop.f32.mrb[0].mxu0
    %1771 = vmatprep.mubr.f32.mxu0 0.0
    %1772 = vmatmul.mubr.f32.gmra.mrb[0].mxu0 %v1568
    %v1773 = vpop.f32.mrb[0].mxu0
    %v1774 = vadd.f32 %v1508, %v1773
    %v1775 = vpop.f32.mrb[0].mxu0
    %1776 = vmatprep.mubr.f32.mxu0 0.0
    %1777 = vmatmul.mubr.f32.gmra.mrb[0].mxu0 %v1571
    %v1778 = vpop.f32.mrb[0].mxu0
    %v1779 = vadd.f32 %v1508, %v1778
    %v1780 = vpop.f32.mrb[0].mxu0
    %1781 = vmatprep.mubr.f32.mxu0 0.0
    %1782 = vmatmul.mubr.f32.gmra.mrb[0].mxu0 %v1574
    %v1783 = vpop.f32.mrb[0].mxu0
    %v1784 = vadd.f32 %v1508, %v1783
    %v1785 = vpop.f32.mrb[0].mxu0
    %1786 = vmatprep.mubr.f32.mxu0 0.0
    %1787 = vmatmul.mubr.f32.gmra.mrb[0].mxu0 %v1577
    %v1788 = vpop.f32.mrb[0].mxu0
    %v1789 = vadd.f32 %v1508, %v1788
    %v1790 = vpop.f32.mrb[0].mxu0
    %1791 = vmatprep.mubr.f32.mxu0 0.0
    %1792 = vmatmul.mubr.f32.gmra.mrb[0].mxu0 %v1580
    %v1793 = vpop.f32.mrb[0].mxu0
    %v1794 = vadd.f32 %v1508, %v1793
    %v1795 = vpop.f32.mrb[0].mxu0
    %1796 = vmatprep.mubr.f32.mxu0 0.0
    %1797 = vmatmul.mubr.f32.gmra.mrb[0].mxu0 %v1583
    %v1798 = vpop.f32.mrb[0].mxu0
    %v1799 = vadd.f32 %v1508, %v1798
    %v1800 = vpop.f32.mrb[0].mxu0
    %1801 = vmatprep.mubr.f32.mxu0 0.0
    %1802 = vmatmul.mubr.f32.gmra.mrb[0].mxu0 %v1586
    %v1803 = vpop.f32.mrb[0].mxu0
    %v1804 = vadd.f32 %v1508, %v1803
    %v1805 = vpop.f32.mrb[0].mxu0
    %1806 = vmatprep.mubr.f32.mxu0 0.0
    %1807 = vmatmul.mubr.f32.gmra.mrb[0].mxu0 %v1589
    %v1808 = vpop.f32.mrb[0].mxu0
    %v1809 = vadd.f32 %v1508, %v1808
    %v1810 = vpop.f32.mrb[0].mxu0
    %1811 = vmatprep.mubr.f32.mxu0 0.0
    %1812 = vmatmul.mubr.f32.gmra.mrb[0].mxu0 %v1592
    %v1813 = vpop.f32.mrb[0].mxu0
    %v1814 = vadd.f32 %v1508, %v1813
    %v1815 = vpop.f32.mrb[0].mxu0
    %1816 = vmatprep.mubr.f32.mxu0 0.0
    %1817 = vmatmul.mubr.f32.gmra.mrb[0].mxu0 %v1595
    %v1818 = vpop.f32.mrb[0].mxu0
    %v1819 = vadd.f32 %v1508, %v1818
    %v1820 = vpop.f32.mrb[0].mxu0
    %1821 = vmatprep.mubr.f32.mxu0 0.0
    %1822 = vmatmul.mubr.f32.gmra.mrb[0].mxu0 %v1598
    %v1823 = vpop.f32.mrb[0].mxu0
    %v1824 = vadd.f32 %v1508, %v1823
    %v1825 = vpop.f32.mrb[0].mxu0
    %1826 = vmatprep.mubr.f32.mxu0 0.0
    %1827 = vmatmul.mubr.f32.gmra.mrb[0].mxu0 %v1601
    %v1828 = vpop.f32.mrb[0].mxu0
    %v1829 = vadd.f32 %v1508, %v1828
    %v1830 = vpop.f32.mrb[0].mxu0
    %1831 = vmatprep.mubr.f32.mxu0 0.0
    %1832 = vmatmul.mubr.f32.gmra.mrb[0].mxu0 %v1604
    %v1833 = vpop.f32.mrb[0].mxu0
    %v1834 = vadd.f32 %v1508, %v1833
    %v1835 = vpop.f32.mrb[0].mxu0
    %1836 = vmatprep.mubr.f32.mxu0 0.0
    %1837 = vmatmul.mubr.f32.gmra.mrb[0].mxu0 %v1607
    %v1838 = vpop.f32.mrb[0].mxu0
    %v1839 = vadd.f32 %v1508, %v1838
    %v1840 = vpop.f32.mrb[0].mxu0
    %1841 = vmatprep.mubr.f32.mxu0 0.0
    %1842 = vmatmul.mubr.f32.gmra.mrb[0].mxu0 %v1610
    %v1843 = vpop.f32.mrb[0].mxu0
    %v1844 = vadd.f32 %v1508, %v1843
    %v1845 = vpop.f32.mrb[0].mxu0
    %1846 = vdwg.mxu0
    %v1847 = vmax.f32 %v1679, 0.0
    %v1848 = vmax.f32 %v1684, 0.0
    %v1849 = vmax.f32 %v1689, 0.0
    %v1850 = vmax.f32 %v1694, 0.0
    %v1851 = vmax.f32 %v1699, 0.0
    %v1852 = vmax.f32 %v1704, 0.0
    %v1853 = vmax.f32 %v1709, 0.0
    %v1854 = vmax.f32 %v1714, 0.0
    %v1855 = vmax.f32 %v1719, 0.0
    %v1856 = vmax.f32 %v1724, 0.0
    %v1857 = vmax.f32 %v1729, 0.0
    %v1858 = vmax.f32 %v1734, 0.0
    %v1859 = vmax.f32 %v1739, 0.0
    %v1860 = vmax.f32 %v1744, 0.0
    %v1861 = vmax.f32 %v1749, 0.0
    %v1862 = vmax.f32 %v1754, 0.0
    %v1863 = vmax.f32 %v1759, 0.0
    %v1864 = vmax.f32 %v1764, 0.0
    %v1865 = vmax.f32 %v1769, 0.0
    %v1866 = vmax.f32 %v1774, 0.0
    %v1867 = vmax.f32 %v1779, 0.0
    %v1868 = vmax.f32 %v1784, 0.0
    %v1869 = vmax.f32 %v1789, 0.0
    %v1870 = vmax.f32 %v1794, 0.0
    %v1871 = vmax.f32 %v1799, 0.0
    %v1872 = vmax.f32 %v1804, 0.0
    %v1873 = vmax.f32 %v1809, 0.0
    %v1874 = vmax.f32 %v1814, 0.0
    %v1875 = vmax.f32 %v1819, 0.0
    %v1876 = vmax.f32 %v1824, 0.0
    %v1877 = vmax.f32 %v1829, 0.0
    %v1878 = vmax.f32 %v1834, 0.0
    %v1879 = vmax.f32 %v1839, 0.0
    %v1880 = vmax.f32 %v1844, 0.0
    %v1881 = vld [vmem:[#allocation2 + $0x250] sm:$0xff]
    %v1882 = vld [vmem:[#allocation2 + $0x258] sm:$0xff]
    %v1883 = vld [vmem:[#allocation2 + $0x260] sm:$0xff]
    %v1884 = vld [vmem:[#allocation2 + $0x268] sm:$0xff]
    %v1885 = vld [vmem:[#allocation2 + $0x270] sm:$0x1]
    %v1886 = vlaneseq
    %v1887 = vshrl.u32 %v1886, 7
    %v1888 = vsub.s32 0, %v1887
    %v1889 = vrot.slane %v1885, %v1888
    %v1891 = vsel %vm1509, %v1847, 0
    %v1894 = vsel %vm1509, %v1848, 0
    %v1897 = vsel %vm1509, %v1849, 0
    %v1900 = vsel %vm1509, %v1850, 0
    %v1903 = vsel %vm1509, %v1851, 0
    %v1906 = vsel %vm1509, %v1852, 0
    %v1909 = vsel %vm1509, %v1853, 0
    %v1912 = vsel %vm1509, %v1854, 0
    %v1915 = vsel %vm1509, %v1855, 0
    %v1918 = vsel %vm1509, %v1856, 0
    %v1921 = vsel %vm1509, %v1857, 0
    %v1924 = vsel %vm1509, %v1858, 0
    %v1927 = vsel %vm1509, %v1859, 0
    %v1930 = vsel %vm1509, %v1860, 0
    %v1933 = vsel %vm1509, %v1861, 0
    %v1936 = vsel %vm1509, %v1862, 0
    %v1939 = vsel %vm1509, %v1863, 0
    %v1942 = vsel %vm1509, %v1864, 0
    %v1945 = vsel %vm1509, %v1865, 0
    %v1948 = vsel %vm1509, %v1866, 0
    %v1951 = vsel %vm1509, %v1867, 0
    %v1954 = vsel %vm1509, %v1868, 0
    %v1957 = vsel %vm1509, %v1869, 0
    %v1960 = vsel %vm1509, %v1870, 0
    %v1963 = vsel %vm1509, %v1871, 0
    %v1966 = vsel %vm1509, %v1872, 0
    %v1969 = vsel %vm1509, %v1873, 0
    %v1972 = vsel %vm1509, %v1874, 0
    %v1975 = vsel %vm1509, %v1875, 0
    %v1978 = vsel %vm1509, %v1876, 0
    %v1981 = vsel %vm1509, %v1877, 0
    %v1984 = vsel %vm1509, %v1878, 0
    %v1987 = vsel %vm1509, %v1879, 0
    %v1990 = vsel %vm1509, %v1880, 0
    %1992 = vmatprep.subr.mxu0 0.0
    %1993 = vmatpush1.msra.mxu0 %v1881
    %1994 = vmatprep.subr.mxu0 0.0
    %1995 = vmatpush1.msra.mxu0 %v1882
    %1996 = vmatprep.subr.mxu0 0.0
    %1997 = vmatpush1.msra.mxu0 %v1883
    %1998 = vmatprep.subr.mxu0 0.0
    %1999 = vmatpush1.msra.mxu0 %v1884
    %2000 = vmatprep.subr.mxu0 0.0
    %2001 = vmatpush1.msra.mxu0 0.0
    %2002 = vmatprep.subr.mxu0 0.0
    %2003 = vmatpush1.msra.mxu0 0.0
    %2004 = vmatprep.subr.mxu0 0.0
    %2005 = vmatpush1.msra.mxu0 0.0
    %2006 = vmatprep.subr.mxu0 0.0
    %2007 = vmatpush1.msra.mxu0 0.0
    %2008 = vmatprep.subr.mxu0 0.0
    %2009 = vmatpush1.msra.mxu0 0.0
    %2010 = vmatprep.subr.mxu0 0.0
    %2011 = vmatpush1.msra.mxu0 0.0
    %2012 = vmatprep.subr.mxu0 0.0
    %2013 = vmatpush1.msra.mxu0 0.0
    %2014 = vmatprep.subr.mxu0 0.0
    %2015 = vmatpush1.msra.mxu0 0.0
    %2016 = vmatprep.subr.mxu0 0.0
    %2017 = vmatpush1.msra.mxu0 0.0
    %2018 = vmatprep.subr.mxu0 0.0
    %2019 = vmatpush1.msra.mxu0 0.0
    %2020 = vmatprep.subr.mxu0 0.0
    %2021 = vmatpush1.msra.mxu0 0.0
    %2022 = vmatprep.subr.mxu0 0.0
    %2023 = vmatpush1.msra.mxu0 0.0
    %2024 = vmatprep.subr.mxu0 0.0
    %2025 = vmatpush1.msra.mxu0 0.0
    %2026 = vmatprep.subr.mxu0 0.0
    %2027 = vmatpush1.msra.mxu0 0.0
    %2028 = vmatprep.subr.mxu0 0.0
    %2029 = vmatpush1.msra.mxu0 0.0
    %2030 = vmatprep.subr.mxu0 0.0
    %2031 = vmatpush1.msra.mxu0 0.0
    %2032 = vmatprep.subr.mxu0 0.0
    %2033 = vmatpush1.msra.mxu0 0.0
    %2034 = vmatprep.subr.mxu0 0.0
    %2035 = vmatpush1.msra.mxu0 0.0
    %2036 = vmatprep.subr.mxu0 0.0
    %2037 = vmatpush1.msra.mxu0 0.0
    %2038 = vmatprep.subr.mxu0 0.0
    %2039 = vmatpush1.msra.mxu0 0.0
    %2040 = vmatprep.subr.mxu0 0.0
    %2041 = vmatpush1.msra.mxu0 0.0
    %2042 = vmatprep.subr.mxu0 0.0
    %2043 = vmatpush1.msra.mxu0 0.0
    %2044 = vmatprep.subr.mxu0 0.0
    %2045 = vmatpush1.msra.mxu0 0.0
    %2046 = vmatprep.subr.mxu0 0.0
    %2047 = vmatpush1.msra.mxu0 0.0
    %2048 = vmatprep.subr.mxu0 0.0
    %2049 = vmatpush1.msra.mxu0 0.0
    %2050 = vmatprep.subr.mxu0 0.0
    %2051 = vmatpush1.msra.mxu0 0.0
    %2052 = vmatprep.subr.mxu0 0.0
    %2053 = vmatpush1.msra.mxu0 0.0
    %2054 = vmatprep.subr.mxu0 0.0
    %2055 = vmatpush1.msra.mxu0 0.0
    %2056 = vmatprep.mubr.f32.mxu0 0.0
    %2057 = vmatmul.mubr.f32.gmra.mrb[0].mxu0 %v1891
    %v2058 = vpop.f32.mrb[0].mxu0
    %v2059 = vadd.f32 %v1889, %v2058
    %v2060 = vpop.f32.mrb[0].mxu0
    %2061 = vmatprep.mubr.f32.mxu0 0.0
    %2062 = vmatmul.mubr.f32.gmra.mrb[0].mxu0 %v1894
    %v2063 = vpop.f32.mrb[0].mxu0
    %v2064 = vadd.f32 %v1889, %v2063
    %v2065 = vpop.f32.mrb[0].mxu0
    %2066 = vmatprep.mubr.f32.mxu0 0.0
    %2067 = vmatmul.mubr.f32.gmra.mrb[0].mxu0 %v1897
    %v2068 = vpop.f32.mrb[0].mxu0
    %v2069 = vadd.f32 %v1889, %v2068
    %v2070 = vpop.f32.mrb[0].mxu0
    %2071 = vmatprep.mubr.f32.mxu0 0.0
    %2072 = vmatmul.mubr.f32.gmra.mrb[0].mxu0 %v1900
    %v2073 = vpop.f32.mrb[0].mxu0
    %v2074 = vadd.f32 %v1889, %v2073
    %v2075 = vpop.f32.mrb[0].mxu0
    %2076 = vmatprep.mubr.f32.mxu0 0.0
    %2077 = vmatmul.mubr.f32.gmra.mrb[0].mxu0 %v1903
    %v2078 = vpop.f32.mrb[0].mxu0
    %v2079 = vadd.f32 %v1889, %v2078
    %v2080 = vpop.f32.mrb[0].mxu0
    %2081 = vmatprep.mubr.f32.mxu0 0.0
    %2082 = vmatmul.mubr.f32.gmra.mrb[0].mxu0 %v1906
    %v2083 = vpop.f32.mrb[0].mxu0
    %v2084 = vadd.f32 %v1889, %v2083
    %v2085 = vpop.f32.mrb[0].mxu0
    %2086 = vmatprep.mubr.f32.mxu0 0.0
    %2087 = vmatmul.mubr.f32.gmra.mrb[0].mxu0 %v1909
    %v2088 = vpop.f32.mrb[0].mxu0
    %v2089 = vadd.f32 %v1889, %v2088
    %v2090 = vpop.f32.mrb[0].mxu0
    %2091 = vmatprep.mubr.f32.mxu0 0.0
    %2092 = vmatmul.mubr.f32.gmra.mrb[0].mxu0 %v1912
    %v2093 = vpop.f32.mrb[0].mxu0
    %v2094 = vadd.f32 %v1889, %v2093
    %v2095 = vpop.f32.mrb[0].mxu0
    %2096 = vmatprep.mubr.f32.mxu0 0.0
    %2097 = vmatmul.mubr.f32.gmra.mrb[0].mxu0 %v1915
    %v2098 = vpop.f32.mrb[0].mxu0
    %v2099 = vadd.f32 %v1889, %v2098
    %v2100 = vpop.f32.mrb[0].mxu0
    %2101 = vmatprep.mubr.f32.mxu0 0.0
    %2102 = vmatmul.mubr.f32.gmra.mrb[0].mxu0 %v1918
    %v2103 = vpop.f32.mrb[0].mxu0
    %v2104 = vadd.f32 %v1889, %v2103
    %v2105 = vpop.f32.mrb[0].mxu0
    %2106 = vmatprep.mubr.f32.mxu0 0.0
    %2107 = vmatmul.mubr.f32.gmra.mrb[0].mxu0 %v1921
    %v2108 = vpop.f32.mrb[0].mxu0
    %v2109 = vadd.f32 %v1889, %v2108
    %v2110 = vpop.f32.mrb[0].mxu0
    %2111 = vmatprep.mubr.f32.mxu0 0.0
    %2112 = vmatmul.mubr.f32.gmra.mrb[0].mxu0 %v1924
    %v2113 = vpop.f32.mrb[0].mxu0
    %v2114 = vadd.f32 %v1889, %v2113
    %v2115 = vpop.f32.mrb[0].mxu0
    %2116 = vmatprep.mubr.f32.mxu0 0.0
    %2117 = vmatmul.mubr.f32.gmra.mrb[0].mxu0 %v1927
    %v2118 = vpop.f32.mrb[0].mxu0
    %v2119 = vadd.f32 %v1889, %v2118
    %v2120 = vpop.f32.mrb[0].mxu0
    %2121 = vmatprep.mubr.f32.mxu0 0.0
    %2122 = vmatmul.mubr.f32.gmra.mrb[0].mxu0 %v1930
    %v2123 = vpop.f32.mrb[0].mxu0
    %v2124 = vadd.f32 %v1889, %v2123
    %v2125 = vpop.f32.mrb[0].mxu0
    %2126 = vmatprep.mubr.f32.mxu0 0.0
    %2127 = vmatmul.mubr.f32.gmra.mrb[0].mxu0 %v1933
    %v2128 = vpop.f32.mrb[0].mxu0
    %v2129 = vadd.f32 %v1889, %v2128
    %v2130 = vpop.f32.mrb[0].mxu0
    %2131 = vmatprep.mubr.f32.mxu0 0.0
    %2132 = vmatmul.mubr.f32.gmra.mrb[0].mxu0 %v1936
    %v2133 = vpop.f32.mrb[0].mxu0
    %v2134 = vadd.f32 %v1889, %v2133
    %v2135 = vpop.f32.mrb[0].mxu0
    %2136 = vmatprep.mubr.f32.mxu0 0.0
    %2137 = vmatmul.mubr.f32.gmra.mrb[0].mxu0 %v1939
    %v2138 = vpop.f32.mrb[0].mxu0
    %v2139 = vadd.f32 %v1889, %v2138
    %v2140 = vpop.f32.mrb[0].mxu0
    %2141 = vmatprep.mubr.f32.mxu0 0.0
    %2142 = vmatmul.mubr.f32.gmra.mrb[0].mxu0 %v1942
    %v2143 = vpop.f32.mrb[0].mxu0
    %v2144 = vadd.f32 %v1889, %v2143
    %v2145 = vpop.f32.mrb[0].mxu0
    %2146 = vmatprep.mubr.f32.mxu0 0.0
    %2147 = vmatmul.mubr.f32.gmra.mrb[0].mxu0 %v1945
    %v2148 = vpop.f32.mrb[0].mxu0
    %v2149 = vadd.f32 %v1889, %v2148
    %v2150 = vpop.f32.mrb[0].mxu0
    %2151 = vmatprep.mubr.f32.mxu0 0.0
    %2152 = vmatmul.mubr.f32.gmra.mrb[0].mxu0 %v1948
    %v2153 = vpop.f32.mrb[0].mxu0
    %v2154 = vadd.f32 %v1889, %v2153
    %v2155 = vpop.f32.mrb[0].mxu0
    %2156 = vmatprep.mubr.f32.mxu0 0.0
    %2157 = vmatmul.mubr.f32.gmra.mrb[0].mxu0 %v1951
    %v2158 = vpop.f32.mrb[0].mxu0
    %v2159 = vadd.f32 %v1889, %v2158
    %v2160 = vpop.f32.mrb[0].mxu0
    %2161 = vmatprep.mubr.f32.mxu0 0.0
    %2162 = vmatmul.mubr.f32.gmra.mrb[0].mxu0 %v1954
    %v2163 = vpop.f32.mrb[0].mxu0
    %v2164 = vadd.f32 %v1889, %v2163
    %v2165 = vpop.f32.mrb[0].mxu0
    %2166 = vmatprep.mubr.f32.mxu0 0.0
    %2167 = vmatmul.mubr.f32.gmra.mrb[0].mxu0 %v1957
    %v2168 = vpop.f32.mrb[0].mxu0
    %v2169 = vadd.f32 %v1889, %v2168
    %v2170 = vpop.f32.mrb[0].mxu0
    %2171 = vmatprep.mubr.f32.mxu0 0.0
    %2172 = vmatmul.mubr.f32.gmra.mrb[0].mxu0 %v1960
    %v2173 = vpop.f32.mrb[0].mxu0
    %v2174 = vadd.f32 %v1889, %v2173
    %v2175 = vpop.f32.mrb[0].mxu0
    %2176 = vmatprep.mubr.f32.mxu0 0.0
    %2177 = vmatmul.mubr.f32.gmra.mrb[0].mxu0 %v1963
    %v2178 = vpop.f32.mrb[0].mxu0
    %v2179 = vadd.f32 %v1889, %v2178
    %v2180 = vpop.f32.mrb[0].mxu0
    %2181 = vmatprep.mubr.f32.mxu0 0.0
    %2182 = vmatmul.mubr.f32.gmra.mrb[0].mxu0 %v1966
    %v2183 = vpop.f32.mrb[0].mxu0
    %v2184 = vadd.f32 %v1889, %v2183
    %v2185 = vpop.f32.mrb[0].mxu0
    %2186 = vmatprep.mubr.f32.mxu0 0.0
    %2187 = vmatmul.mubr.f32.gmra.mrb[0].mxu0 %v1969
    %v2188 = vpop.f32.mrb[0].mxu0
    %v2189 = vadd.f32 %v1889, %v2188
    %v2190 = vpop.f32.mrb[0].mxu0
    %2191 = vmatprep.mubr.f32.mxu0 0.0
    %2192 = vmatmul.mubr.f32.gmra.mrb[0].mxu0 %v1972
    %v2193 = vpop.f32.mrb[0].mxu0
    %v2194 = vadd.f32 %v1889, %v2193
    %v2195 = vpop.f32.mrb[0].mxu0
    %2196 = vmatprep.mubr.f32.mxu0 0.0
    %2197 = vmatmul.mubr.f32.gmra.mrb[0].mxu0 %v1975
    %v2198 = vpop.f32.mrb[0].mxu0
    %v2199 = vadd.f32 %v1889, %v2198
    %v2200 = vpop.f32.mrb[0].mxu0
    %2201 = vmatprep.mubr.f32.mxu0 0.0
    %2202 = vmatmul.mubr.f32.gmra.mrb[0].mxu0 %v1978
    %v2203 = vpop.f32.mrb[0].mxu0
    %v2204 = vadd.f32 %v1889, %v2203
    %v2205 = vpop.f32.mrb[0].mxu0
    %2206 = vmatprep.mubr.f32.mxu0 0.0
    %2207 = vmatmul.mubr.f32.gmra.mrb[0].mxu0 %v1981
    %v2208 = vpop.f32.mrb[0].mxu0
    %v2209 = vadd.f32 %v1889, %v2208
    %v2210 = vpop.f32.mrb[0].mxu0
    %2211 = vmatprep.mubr.f32.mxu0 0.0
    %2212 = vmatmul.mubr.f32.gmra.mrb[0].mxu0 %v1984
    %v2213 = vpop.f32.mrb[0].mxu0
    %v2214 = vadd.f32 %v1889, %v2213
    %v2215 = vpop.f32.mrb[0].mxu0
    %2216 = vmatprep.mubr.f32.mxu0 0.0
    %2217 = vmatmul.mubr.f32.gmra.mrb[0].mxu0 %v1987
    %v2218 = vpop.f32.mrb[0].mxu0
    %v2219 = vadd.f32 %v1889, %v2218
    %v2220 = vpop.f32.mrb[0].mxu0
    %2221 = vmatprep.mubr.f32.mxu0 0.0
    %2222 = vmatmul.mubr.f32.gmra.mrb[0].mxu0 %v1990
    %v2223 = vpop.f32.mrb[0].mxu0
    %v2224 = vadd.f32 %v1889, %v2223
    %v2225 = vpop.f32.mrb[0].mxu0
    %2226 = vdwg.mxu0
    %vm2227 = vcmp.gt.f32.partialorder %v2059, 0.0
    %vm2228 = vcmp.gt.f32.partialorder %v2064, 0.0
    %vm2229 = vcmp.gt.f32.partialorder %v2069, 0.0
    %vm2230 = vcmp.gt.f32.partialorder %v2074, 0.0
    %vm2231 = vcmp.gt.f32.partialorder %v2079, 0.0
    %vm2232 = vcmp.gt.f32.partialorder %v2084, 0.0
    %vm2233 = vcmp.gt.f32.partialorder %v2089, 0.0
    %vm2234 = vcmp.gt.f32.partialorder %v2094, 0.0
    %vm2235 = vcmp.gt.f32.partialorder %v2099, 0.0
    %vm2236 = vcmp.gt.f32.partialorder %v2104, 0.0
    %vm2237 = vcmp.gt.f32.partialorder %v2109, 0.0
    %vm2238 = vcmp.gt.f32.partialorder %v2114, 0.0
    %vm2239 = vcmp.gt.f32.partialorder %v2119, 0.0
    %vm2240 = vcmp.gt.f32.partialorder %v2124, 0.0
    %vm2241 = vcmp.gt.f32.partialorder %v2129, 0.0
    %vm2242 = vcmp.gt.f32.partialorder %v2134, 0.0
    %vm2243 = vcmp.gt.f32.partialorder %v2139, 0.0
    %vm2244 = vcmp.gt.f32.partialorder %v2144, 0.0
    %vm2245 = vcmp.gt.f32.partialorder %v2149, 0.0
    %vm2246 = vcmp.gt.f32.partialorder %v2154, 0.0
    %vm2247 = vcmp.gt.f32.partialorder %v2159, 0.0
    %vm2248 = vcmp.gt.f32.partialorder %v2164, 0.0
    %vm2249 = vcmp.gt.f32.partialorder %v2169, 0.0
    %vm2250 = vcmp.gt.f32.partialorder %v2174, 0.0
    %vm2251 = vcmp.gt.f32.partialorder %v2179, 0.0
    %vm2252 = vcmp.gt.f32.partialorder %v2184, 0.0
    %vm2253 = vcmp.gt.f32.partialorder %v2189, 0.0
    %vm2254 = vcmp.gt.f32.partialorder %v2194, 0.0
    %vm2255 = vcmp.gt.f32.partialorder %v2199, 0.0
    %vm2256 = vcmp.gt.f32.partialorder %v2204, 0.0
    %vm2257 = vcmp.gt.f32.partialorder %v2209, 0.0
    %vm2258 = vcmp.gt.f32.partialorder %v2214, 0.0
    %vm2259 = vcmp.gt.f32.partialorder %v2219, 0.0
    %vm2260 = vcmp.gt.f32.partialorder %v2224, 0.0
    %v2261 = vmin.f32 %v2059, 0.0
    %v2262 = vmin.f32 %v2064, 0.0
    %v2263 = vmin.f32 %v2069, 0.0
    %v2264 = vmin.f32 %v2074, 0.0
    %v2265 = vmin.f32 %v2079, 0.0
    %v2266 = vmin.f32 %v2084, 0.0
    %v2267 = vmin.f32 %v2089, 0.0
    %v2268 = vmin.f32 %v2094, 0.0
    %v2269 = vmin.f32 %v2099, 0.0
    %v2270 = vmin.f32 %v2104, 0.0
    %v2271 = vmin.f32 %v2109, 0.0
    %v2272 = vmin.f32 %v2114, 0.0
    %v2273 = vmin.f32 %v2119, 0.0
    %v2274 = vmin.f32 %v2124, 0.0
    %v2275 = vmin.f32 %v2129, 0.0
    %v2276 = vmin.f32 %v2134, 0.0
    %v2277 = vmin.f32 %v2139, 0.0
    %v2278 = vmin.f32 %v2144, 0.0
    %v2279 = vmin.f32 %v2149, 0.0
    %v2280 = vmin.f32 %v2154, 0.0
    %v2281 = vmin.f32 %v2159, 0.0
    %v2282 = vmin.f32 %v2164, 0.0
    %v2283 = vmin.f32 %v2169, 0.0
    %v2284 = vmin.f32 %v2174, 0.0
    %v2285 = vmin.f32 %v2179, 0.0
    %v2286 = vmin.f32 %v2184, 0.0
    %v2287 = vmin.f32 %v2189, 0.0
    %v2288 = vmin.f32 %v2194, 0.0
    %v2289 = vmin.f32 %v2199, 0.0
    %v2290 = vmin.f32 %v2204, 0.0
    %v2291 = vmin.f32 %v2209, 0.0
    %v2292 = vmin.f32 %v2214, 0.0
    %v2293 = vmin.f32 %v2219, 0.0
    %v2294 = vmin.f32 %v2224, 0.0
    %v2295 = vmul.f32 %v2261, 1.442695
    %v2296 = vpow.pop %v2295
    %v2297 = vmul.f32 %v2262, 1.442695
    %v2298 = vpow.pop %v2297
    %v2299 = vmul.f32 %v2263, 1.442695
    %v2300 = vpow.pop %v2299
    %v2301 = vmul.f32 %v2264, 1.442695
    %v2302 = vpow.pop %v2301
    %v2303 = vmul.f32 %v2265, 1.442695
    %v2304 = vpow.pop %v2303
    %v2305 = vmul.f32 %v2266, 1.442695
    %v2306 = vpow.pop %v2305
    %v2307 = vmul.f32 %v2267, 1.442695
    %v2308 = vpow.pop %v2307
    %v2309 = vmul.f32 %v2268, 1.442695
    %v2310 = vpow.pop %v2309
    %v2311 = vmul.f32 %v2269, 1.442695
    %v2312 = vpow.pop %v2311
    %v2313 = vmul.f32 %v2270, 1.442695
    %v2314 = vpow.pop %v2313
    %v2315 = vmul.f32 %v2271, 1.442695
    %v2316 = vpow.pop %v2315
    %v2317 = vmul.f32 %v2272, 1.442695
    %v2318 = vpow.pop %v2317
    %v2319 = vmul.f32 %v2273, 1.442695
    %v2320 = vpow.pop %v2319
    %v2321 = vmul.f32 %v2274, 1.442695
    %v2322 = vpow.pop %v2321
    %v2323 = vmul.f32 %v2275, 1.442695
    %v2324 = vpow.pop %v2323
    %v2325 = vmul.f32 %v2276, 1.442695
    %v2326 = vpow.pop %v2325
    %v2327 = vmul.f32 %v2277, 1.442695
    %v2328 = vpow.pop %v2327
    %v2329 = vmul.f32 %v2278, 1.442695
    %v2330 = vpow.pop %v2329
    %v2331 = vmul.f32 %v2279, 1.442695
    %v2332 = vpow.pop %v2331
    %v2333 = vmul.f32 %v2280, 1.442695
    %v2334 = vpow.pop %v2333
    %v2335 = vmul.f32 %v2281, 1.442695
    %v2336 = vpow.pop %v2335
    %v2337 = vmul.f32 %v2282, 1.442695
    %v2338 = vpow.pop %v2337
    %v2339 = vmul.f32 %v2283, 1.442695
    %v2340 = vpow.pop %v2339
    %v2341 = vmul.f32 %v2284, 1.442695
    %v2342 = vpow.pop %v2341
    %v2343 = vmul.f32 %v2285, 1.442695
    %v2344 = vpow.pop %v2343
    %v2345 = vmul.f32 %v2286, 1.442695
    %v2346 = vpow.pop %v2345
    %v2347 = vmul.f32 %v2287, 1.442695
    %v2348 = vpow.pop %v2347
    %v2349 = vmul.f32 %v2288, 1.442695
    %v2350 = vpow.pop %v2349
    %v2351 = vmul.f32 %v2289, 1.442695
    %v2352 = vpow.pop %v2351
    %v2353 = vmul.f32 %v2290, 1.442695
    %v2354 = vpow.pop %v2353
    %v2355 = vmul.f32 %v2291, 1.442695
    %v2356 = vpow.pop %v2355
    %v2357 = vmul.f32 %v2292, 1.442695
    %v2358 = vpow.pop %v2357
    %v2359 = vmul.f32 %v2293, 1.442695
    %v2360 = vpow.pop %v2359
    %v2361 = vmul.f32 %v2294, 1.442695
    %v2362 = vpow.pop %v2361
    %v2363 = vsub.f32 %v2296, 1.0
    %v2364 = vsub.f32 %v2298, 1.0
    %v2365 = vsub.f32 %v2300, 1.0
    %v2366 = vsub.f32 %v2302, 1.0
    %v2367 = vsub.f32 %v2304, 1.0
    %v2368 = vsub.f32 %v2306, 1.0
    %v2369 = vsub.f32 %v2308, 1.0
    %v2370 = vsub.f32 %v2310, 1.0
    %v2371 = vsub.f32 %v2312, 1.0
    %v2372 = vsub.f32 %v2314, 1.0
    %v2373 = vsub.f32 %v2316, 1.0
    %v2374 = vsub.f32 %v2318, 1.0
    %v2375 = vsub.f32 %v2320, 1.0
    %v2376 = vsub.f32 %v2322, 1.0
    %v2377 = vsub.f32 %v2324, 1.0
    %v2378 = vsub.f32 %v2326, 1.0
    %v2379 = vsub.f32 %v2328, 1.0
    %v2380 = vsub.f32 %v2330, 1.0
    %v2381 = vsub.f32 %v2332, 1.0
    %v2382 = vsub.f32 %v2334, 1.0
    %v2383 = vsub.f32 %v2336, 1.0
    %v2384 = vsub.f32 %v2338, 1.0
    %v2385 = vsub.f32 %v2340, 1.0
    %v2386 = vsub.f32 %v2342, 1.0
    %v2387 = vsub.f32 %v2344, 1.0
    %v2388 = vsub.f32 %v2346, 1.0
    %v2389 = vsub.f32 %v2348, 1.0
    %v2390 = vsub.f32 %v2350, 1.0
    %v2391 = vsub.f32 %v2352, 1.0
    %v2392 = vsub.f32 %v2354, 1.0
    %v2393 = vsub.f32 %v2356, 1.0
    %v2394 = vsub.f32 %v2358, 1.0
    %v2395 = vsub.f32 %v2360, 1.0
    %v2396 = vsub.f32 %v2362, 1.0
    %v2397 = vsel %vm2227, %v2059, %v2363
    %v2398 = vsel %vm2228, %v2064, %v2364
    %v2399 = vsel %vm2229, %v2069, %v2365
    %v2400 = vsel %vm2230, %v2074, %v2366
    %v2401 = vsel %vm2231, %v2079, %v2367
    %v2402 = vsel %vm2232, %v2084, %v2368
    %v2403 = vsel %vm2233, %v2089, %v2369
    %v2404 = vsel %vm2234, %v2094, %v2370
    %v2405 = vsel %vm2235, %v2099, %v2371
    %v2406 = vsel %vm2236, %v2104, %v2372
    %v2407 = vsel %vm2237, %v2109, %v2373
    %v2408 = vsel %vm2238, %v2114, %v2374
    %v2409 = vsel %vm2239, %v2119, %v2375
    %v2410 = vsel %vm2240, %v2124, %v2376
    %v2411 = vsel %vm2241, %v2129, %v2377
    %v2412 = vsel %vm2242, %v2134, %v2378
    %v2413 = vsel %vm2243, %v2139, %v2379
    %v2414 = vsel %vm2244, %v2144, %v2380
    %v2415 = vsel %vm2245, %v2149, %v2381
    %v2416 = vsel %vm2246, %v2154, %v2382
    %v2417 = vsel %vm2247, %v2159, %v2383
    %v2418 = vsel %vm2248, %v2164, %v2384
    %v2419 = vsel %vm2249, %v2169, %v2385
    %v2420 = vsel %vm2250, %v2174, %v2386
    %v2421 = vsel %vm2251, %v2179, %v2387
    %v2422 = vsel %vm2252, %v2184, %v2388
    %v2423 = vsel %vm2253, %v2189, %v2389
    %v2424 = vsel %vm2254, %v2194, %v2390
    %v2425 = vsel %vm2255, %v2199, %v2391
    %v2426 = vsel %vm2256, %v2204, %v2392
    %v2427 = vsel %vm2257, %v2209, %v2393
    %v2428 = vsel %vm2258, %v2214, %v2394
    %v2429 = vsel %vm2259, %v2219, %v2395
    %v2430 = vsel %vm2260, %v2224, %v2396
    %v2431 = vadd.f32 %v2397, 1.0
    %v2432 = vadd.f32 %v2398, 1.0
    %v2433 = vadd.f32 %v2399, 1.0
    %v2434 = vadd.f32 %v2400, 1.0
    %v2435 = vadd.f32 %v2401, 1.0
    %v2436 = vadd.f32 %v2402, 1.0
    %v2437 = vadd.f32 %v2403, 1.0
    %v2438 = vadd.f32 %v2404, 1.0
    %v2439 = vadd.f32 %v2405, 1.0
    %v2440 = vadd.f32 %v2406, 1.0
    %v2441 = vadd.f32 %v2407, 1.0
    %v2442 = vadd.f32 %v2408, 1.0
    %v2443 = vadd.f32 %v2409, 1.0
    %v2444 = vadd.f32 %v2410, 1.0
    %v2445 = vadd.f32 %v2411, 1.0
    %v2446 = vadd.f32 %v2412, 1.0
    %v2447 = vadd.f32 %v2413, 1.0
    %v2448 = vadd.f32 %v2414, 1.0
    %v2449 = vadd.f32 %v2415, 1.0
    %v2450 = vadd.f32 %v2416, 1.0
    %v2451 = vadd.f32 %v2417, 1.0
    %v2452 = vadd.f32 %v2418, 1.0
    %v2453 = vadd.f32 %v2419, 1.0
    %v2454 = vadd.f32 %v2420, 1.0
    %v2455 = vadd.f32 %v2421, 1.0
    %v2456 = vadd.f32 %v2422, 1.0
    %v2457 = vadd.f32 %v2423, 1.0
    %v2458 = vadd.f32 %v2424, 1.0
    %v2459 = vadd.f32 %v2425, 1.0
    %v2460 = vadd.f32 %v2426, 1.0
    %v2461 = vadd.f32 %v2427, 1.0
    %v2462 = vadd.f32 %v2428, 1.0
    %v2463 = vadd.f32 %v2429, 1.0
    %v2464 = vadd.f32 %v2430, 1.0
    %v2465 = vmul.f32 %v2431, 0.0036764706
    %v2466 = vmul.f32 %v2432, 0.0036764706
    %v2467 = vmul.f32 %v2433, 0.0378589
    %v2468 = vmul.f32 %v2434, 0.0378589
    %v2469 = vmul.f32 %v2435, 0.074992135
    %v2470 = vmul.f32 %v2436, 0.074992135
    %v2471 = vmul.f32 %v2437, 0.10939575
    %v2472 = vmul.f32 %v2438, 0.10939575
    %v2473 = vmul.f32 %v2439, 0.13846627
    %v2474 = vmul.f32 %v2440, 0.13846627
    %v2475 = vmul.f32 %v2441, 0.16366287
    %v2476 = vmul.f32 %v2442, 0.16366287
    %v2477 = vmul.f32 %v2443, 0.18098359
    %v2478 = vmul.f32 %v2444, 0.18098359
    %v2479 = vmul.f32 %v2445, 0.19300406
    %v2480 = vmul.f32 %v2446, 0.19300406
    %v2481 = vmul.f32 %v2447, 0.19591993
    %v2482 = vmul.f32 %v2448, 0.19591993
    %v2483 = vmul.f32 %v2449, 0.19300406
    %v2484 = vmul.f32 %v2450, 0.19300406
    %v2485 = vmul.f32 %v2451, 0.18098359
    %v2486 = vmul.f32 %v2452, 0.18098359
    %v2487 = vmul.f32 %v2453, 0.16366287
    %v2488 = vmul.f32 %v2454, 0.16366287
    %v2489 = vmul.f32 %v2455, 0.13846627
    %v2490 = vmul.f32 %v2456, 0.13846627
    %v2491 = vmul.f32 %v2457, 0.10939575
    %v2492 = vmul.f32 %v2458, 0.10939575
    %v2493 = vmul.f32 %v2459, 0.074992135
    %v2494 = vmul.f32 %v2460, 0.074992135
    %v2495 = vmul.f32 %v2461, 0.0378589
    %v2496 = vmul.f32 %v2462, 0.0378589
    %v2497 = vmul.f32 %v2463, 0.0036764706
    %v2498 = vmul.f32 %v2464, 0.0036764706
    %v2499 = vadd.f32 %v2465, %v2467
    %v2500 = vadd.f32 %v2466, %v2468
    %v2501 = vadd.f32 %v2469, %v2471
    %v2502 = vadd.f32 %v2470, %v2472
    %v2503 = vadd.f32 %v2473, %v2475
    %v2504 = vadd.f32 %v2474, %v2476
    %v2505 = vadd.f32 %v2477, %v2479
    %v2506 = vadd.f32 %v2478, %v2480
    %v2507 = vadd.f32 %v2481, %v2483
    %v2508 = vadd.f32 %v2482, %v2484
    %v2509 = vadd.f32 %v2485, %v2487
    %v2510 = vadd.f32 %v2486, %v2488
    %v2511 = vadd.f32 %v2489, %v2491
    %v2512 = vadd.f32 %v2490, %v2492
    %v2513 = vadd.f32 %v2493, %v2495
    %v2514 = vadd.f32 %v2494, %v2496
    %v2515 = vadd.f32 %v2499, %v2501
    %v2516 = vadd.f32 %v2500, %v2502
    %v2517 = vadd.f32 %v2503, %v2505
    %v2518 = vadd.f32 %v2504, %v2506
    %v2519 = vadd.f32 %v2507, %v2509
    %v2520 = vadd.f32 %v2508, %v2510
    %v2521 = vadd.f32 %v2511, %v2513
    %v2522 = vadd.f32 %v2512, %v2514
    %v2523 = vadd.f32 %v2515, %v2517
    %v2524 = vadd.f32 %v2516, %v2518
    %v2525 = vadd.f32 %v2519, %v2521
    %v2526 = vadd.f32 %v2520, %v2522
    %v2527 = vadd.f32 %v2523, %v2525
    %v2528 = vadd.f32 %v2524, %v2526
    %v2529 = vadd.f32 %v2527, %v2497
    %v2530 = vadd.f32 %v2528, %v2498
    %v2531 = vmul.f32 %v2529, %v1389
    %v2532 = vmul.f32 %v2530, %v1392
    %v2533 = vmul.f32 %v2531, 0.5
    %v2534 = vmul.f32 %v2532, 0.5
    %2537 = vrot.lane.b32.xlu0 %v2533, 7
    %v2538 = vpop.permute.xlu0 %2537
    %2539 = vrot.lane.b32.xlu0 %v2534, 7
    %v2540 = vpop.permute.xlu0 %2539
    %v2543 = vmul.f32 %v392, %v2538
    %v2544 = vmul.f32 %v394, %v2540
    %v2545 = vadd.f32 %v2543, %v1362
    %v2546 = vadd.f32 %v2544, %v1364
    %2548 = vset.pattern.permute.xlu0 7
    %2549 = vperm.xlu0 %2548, %v2545
    %v2550 = vpop.permute.xlu0 %2549
    %2553 = vset.pattern.permute.xlu0 7
    %2554 = vperm.xlu0 %2553, %v2546
    %v2555 = vpop.permute.xlu0 %2554
    %2557 = vst [vmem:[%s3] sm:$0xff] %v2550
    %2558 = vst [vmem:[%s3 + $0x8] sm:$0xff] %v2555
    // Predicated region
    $region18: #{forward.1} parent=1 // pred_check
      _
    $region19: #{forward.1} parent=1 // pred_check_branch
      %2560 = sbr.rel (0) target = $region21
    $region20: #{forward.1} parent=1 // pred_region
      _
    $region21: #{forward.1} parent=1 // pred_fallthru
      _
    // Predicated region
    $region22: #{forward.1} parent=1 // pred_check
      _
    $region23: #{forward.1} parent=1 // pred_check_branch
      %2562 = sbr.rel (0) target = $region25
    $region24: #{forward.1} parent=1 // pred_region
      _
    $region25: #{forward.1} parent=1 // pred_fallthru
      _
    %2563 = vsyncpa [#allocation3], 1

</llo_original>
